<compile_context>
chip_gen: v6e
topology: v6e:2x2x1
jax: 0.10.0
libtpu: 0.0.40
codegen_flags: <defaults>
</compile_context>

<pallas_src>
import jax
import jax.numpy as jnp
from jax.experimental import pallas as pl
from jax.experimental.pallas import tpu as pltpu

IN_FEATURES = 12288        # 3 * 64 * 64
HIDDEN = 128
OUT_FEATURES = 96
OUT_PADDED = 128           # lane-dense output width
K_SPLIT = 2                # small K chunking under the fused reduction grid
K_CHUNK = IN_FEATURES // K_SPLIT


def nn7_fused_kernel(x_ref, w1_ref, b1_ref, w2_ref, b2_ref, w3_ref, b3_ref,
                     o_ref, acc_ref):
    """Fused NN7 forward.  Grid = (batch_tiles, K_SPLIT); K is the reduction
    axis.  acc_ref is a (BM, 128) f32 VMEM accumulator for fc_1."""
    k = pl.program_id(1)

    @pl.when(k == 0)
    def _():
        acc_ref[...] = jnp.zeros_like(acc_ref)

    # fc_1 partial: cast the x tile to bf16 in-kernel (hidden under W1 DMA).
    x_bf = x_ref[...].astype(jnp.bfloat16)
    acc_ref[...] += jnp.dot(x_bf, w1_ref[...],
                            preferred_element_type=jnp.float32)

    @pl.when(k == pl.num_programs(1) - 1)
    def _():
        h1 = jnp.maximum(acc_ref[...] + b1_ref[...], 0.0)
        # Dropout(p=0.25): identity at inference.
        # TODO(synk): training-mode dropout (PRNG mask + 1/(1-p) scaling).
        h2 = jnp.dot(h1.astype(jnp.bfloat16), w2_ref[...],
                     preferred_element_type=jnp.float32) + b2_ref[...]
        h2 = jnp.maximum(h2, 0.0)
        out = jnp.dot(h2.astype(jnp.bfloat16), w3_ref[...],
                      preferred_element_type=jnp.float32) + b3_ref[...]
        o_ref[...] = out.astype(o_ref.dtype)


def prepare_params(w1, b1, w2, b2, w3, b3):
    """One-time packing: weights -> bf16 (halves the dominant W1 HBM stream;
    single-pass MXU for fc_2/fc_3); W3/b3 zero-padded to 128 output lanes."""
    w1_bf = w1.astype(jnp.bfloat16)
    w2_bf = w2.astype(jnp.bfloat16)
    w3_p = jnp.pad(w3, ((0, 0), (0, OUT_PADDED - OUT_FEATURES)))
    w3_p_bf = w3_p.astype(jnp.bfloat16)
    b3_p = jnp.pad(b3, ((0, 0), (0, OUT_PADDED - OUT_FEATURES)))
    return w1_bf, b1, w2_bf, b2, w3_p_bf, b3_p


def _batch_tile(B):
    """Batch tile (<=128 rows) keeping VMEM bounded; fall back to full B."""
    if B <= 128:
        return B
    for t in (128, 64, 32, 16, 8):
        if B % t == 0:
            return t
    return B


@jax.jit
def nn7_forward(x_nchw, w1_bf, b1, w2_bf, b2, w3_p_bf, b3_p):
    B = x_nchw.shape[0]
    x = x_nchw.reshape(B, IN_FEATURES)      # nn.Flatten; stays f32 in HBM
    BM = _batch_tile(B)
    nb = B // BM

    cost = pl.CostEstimate(
        flops=2 * B * (IN_FEATURES * HIDDEN
                       + HIDDEN * HIDDEN
                       + HIDDEN * OUT_PADDED),
        transcendentals=0,
        bytes_accessed=(nb * IN_FEATURES * HIDDEN * 2     # W1 bf16 stream
                        + B * IN_FEATURES * 4             # x f32
                        + (HIDDEN * HIDDEN + HIDDEN * OUT_PADDED) * 2
                        + B * OUT_PADDED * 4),            # output
    )

    out_padded = pl.pallas_call(
        nn7_fused_kernel,
        out_shape=jax.ShapeDtypeStruct((B, OUT_PADDED), jnp.float32),
        grid_spec=pltpu.PrefetchScalarGridSpec(
            num_scalar_prefetch=0,
            grid=(nb, K_SPLIT),
            in_specs=[
                pl.BlockSpec((BM, K_CHUNK), lambda b, k: (b, k)),        # x
                pl.BlockSpec((K_CHUNK, HIDDEN), lambda b, k: (k, 0)),    # W1
                pl.BlockSpec((1, HIDDEN), lambda b, k: (0, 0)),          # b1
                pl.BlockSpec((HIDDEN, HIDDEN), lambda b, k: (0, 0)),     # W2
                pl.BlockSpec((1, HIDDEN), lambda b, k: (0, 0)),          # b2
                pl.BlockSpec((HIDDEN, OUT_PADDED), lambda b, k: (0, 0)), # W3 pad
                pl.BlockSpec((1, OUT_PADDED), lambda b, k: (0, 0)),      # b3 pad
            ],
            out_specs=pl.BlockSpec((BM, OUT_PADDED), lambda b, k: (b, 0)),
            scratch_shapes=[pltpu.VMEM((BM, HIDDEN), jnp.float32)],
        ),
        compiler_params=pltpu.CompilerParams(
            dimension_semantics=("parallel", "arbitrary"),
            vmem_limit_bytes=32 * 1024 * 1024,
        ),
        cost_estimate=cost,
    )(x, w1_bf, b1, w2_bf, b2, w3_p_bf, b3_p)

    return out_padded[:, :OUT_FEATURES]


def init_params(key):
    """PyTorch Linear default init U(-1/sqrt(in), 1/sqrt(in)); weights already
    transposed to (in, out), biases as (1, out)."""
    k1, k2, k3, k4, k5, k6 = jax.random.split(key, 6)

    def lin(kw, kb, fan_in, fan_out):
        bound = 1.0 / jnp.sqrt(fan_in)
        w = jax.random.uniform(kw, (fan_in, fan_out), jnp.float32, -bound, bound)
        b = jax.random.uniform(kb, (1, fan_out), jnp.float32, -bound, bound)
        return w, b

    w1, b1 = lin(k1, k2, IN_FEATURES, HIDDEN)
    w2, b2 = lin(k3, k4, HIDDEN, HIDDEN)
    w3, b3 = lin(k5, k6, HIDDEN, OUT_FEATURES)
    return w1, b1, w2, b2, w3, b3


if __name__ == "__main__":
    key = jax.random.PRNGKey(0)
    kx, kp = jax.random.split(key)

    B = 2
    x = jax.random.normal(kx, (B, 3, 64, 64), jnp.float32)  # NCHW -> 12288 feats
    w1, b1, w2, b2, w3, b3 = init_params(kp)
    packed = prepare_params(w1, b1, w2, b2, w3, b3)   # one-time bf16/pad packing

    out = nn7_forward(x, *packed)
    out = jax.block_until_ready(out)
    assert out.shape == (B, OUT_FEATURES), out.shape

    # Pure-JAX reference matched to the kernel's precision recipe
    # (bf16 matmul inputs, f32 accumulation; dropout identity at inference).
    hp = jax.lax.Precision.HIGHEST
    xf = x.reshape(B, IN_FEATURES)
    xq = xf.astype(jnp.bfloat16).astype(jnp.float32)
    w1q = w1.astype(jnp.bfloat16).astype(jnp.float32)
    w2q = w2.astype(jnp.bfloat16).astype(jnp.float32)
    w3q = w3.astype(jnp.bfloat16).astype(jnp.float32)
    h1 = jnp.maximum(jnp.dot(xq, w1q, precision=hp) + b1, 0.0)
    h1q = h1.astype(jnp.bfloat16).astype(jnp.float32)
    h2 = jnp.maximum(jnp.dot(h1q, w2q, precision=hp) + b2, 0.0)
    h2q = h2.astype(jnp.bfloat16).astype(jnp.float32)
    ref = jnp.dot(h2q, w3q, precision=hp) + b3
    max_err = float(jnp.max(jnp.abs(out - ref)))
    assert jnp.allclose(out, ref, atol=5e-3, rtol=5e-3), max_err

    print("KERNEL_OK")
</pallas_src>

<mosaic_0001>
module attributes {stable_mosaic.version = 11 : i64} {
  func.func @nn7_fused_kernel(%arg0: i32, %arg1: i32, %arg2: memref<2x6144xf32, #tpu.memory_space<vmem>>, %arg3: memref<6144x128xbf16, #tpu.memory_space<vmem>>, %arg4: memref<1x128xf32, #tpu.memory_space<vmem>>, %arg5: memref<128x128xbf16, #tpu.memory_space<vmem>>, %arg6: memref<1x128xf32, #tpu.memory_space<vmem>>, %arg7: memref<128x128xbf16, #tpu.memory_space<vmem>>, %arg8: memref<1x128xf32, #tpu.memory_space<vmem>>, %arg9: memref<2x128xf32, #tpu.memory_space<vmem>>, %arg10: memref<2x128xf32, #tpu.memory_space<vmem>>) attributes {dimension_semantics = [#tpu.dimension_semantics<parallel>, #tpu.dimension_semantics<arbitrary>], iteration_bounds = array<i64: 1, 2>, scalar_prefetch = 0 : i64, scratch_operands = 1 : i64, tpu.core_type = #tpu.core_type<tc>, window_params = [{transform_indices = @transform_0, window_bounds = array<i64: 2, 6144>}, {transform_indices = @transform_1, window_bounds = array<i64: 6144, 128>}, {pipeline_mode = #tpu.pipeline_mode<synchronous>, transform_indices = @transform_2, window_bounds = array<i64: 1, 128>}, {pipeline_mode = #tpu.pipeline_mode<synchronous>, transform_indices = @transform_3, window_bounds = array<i64: 128, 128>}, {pipeline_mode = #tpu.pipeline_mode<synchronous>, transform_indices = @transform_4, window_bounds = array<i64: 1, 128>}, {pipeline_mode = #tpu.pipeline_mode<synchronous>, transform_indices = @transform_5, window_bounds = array<i64: 128, 128>}, {pipeline_mode = #tpu.pipeline_mode<synchronous>, transform_indices = @transform_6, window_bounds = array<i64: 1, 128>}, {transform_indices = @transform_7, window_bounds = array<i64: 2, 128>}]} {
    %c0_i32 = arith.constant 0 : i32
    %0 = arith.cmpi eq, %arg1, %c0_i32 : i32
    %1 = arith.extui %0 : i1 to i32
    %c0_i32_0 = arith.constant 0 : i32
    %2 = arith.cmpi ne, %1, %c0_i32_0 : i32
    scf.if %2 {
      %cst_9 = arith.constant 0.000000e+00 : f32
      %13 = vector.broadcast %cst_9 : f32 to vector<2x128xf32>
      %c0_10 = arith.constant 0 : index
      %c0_11 = arith.constant 0 : index
      %14 = vector.load %arg10[%c0_10, %c0_11] : memref<2x128xf32, #tpu.memory_space<vmem>>, vector<2x128xf32>
      tpu.vector_store %arg10[%c0_10, %c0_11], %13 {strides = array<i32>} : memref<2x128xf32, #tpu.memory_space<vmem>>, vector<2x128xf32>,
    } else {
    }
    %c0 = arith.constant 0 : index
    %c0_1 = arith.constant 0 : index
    %3 = vector.load %arg2[%c0, %c0_1] : memref<2x6144xf32, #tpu.memory_space<vmem>>, vector<2x6144xf32>
    %4 = arith.truncf %3 : vector<2x6144xf32> to vector<2x6144xbf16>
    %c0_2 = arith.constant 0 : index
    %c0_3 = arith.constant 0 : index
    %5 = vector.load %arg10[%c0_2, %c0_3] : memref<2x128xf32, #tpu.memory_space<vmem>>, vector<2x128xf32>
    %c0_4 = arith.constant 0 : index
    %c0_5 = arith.constant 0 : index
    %6 = vector.load %arg3[%c0_4, %c0_5] : memref<6144x128xbf16, #tpu.memory_space<vmem>>, vector<6144x128xbf16>
    %cst = arith.constant dense<0.000000e+00> : vector<2x128xf32>
    %7 = tpu.matmul %4, %6, %cst {dimension_numbers = #tpu.dot_dimension_numbers<[1], [0], [0], [1], [0, 0, 1, 1], [], []>} : vector<2x6144xbf16>, vector<6144x128xbf16>, vector<2x128xf32> -> vector<2x128xf32>
    %8 = arith.addf %5, %7 : vector<2x128xf32>
    %c0_6 = arith.constant 0 : index
    %c0_7 = arith.constant 0 : index
    %9 = vector.load %arg10[%c0_6, %c0_7] : memref<2x128xf32, #tpu.memory_space<vmem>>, vector<2x128xf32>
    tpu.vector_store %arg10[%c0_6, %c0_7], %8 {strides = array<i32>} : memref<2x128xf32, #tpu.memory_space<vmem>>, vector<2x128xf32>,
    %c1_i32 = arith.constant 1 : i32
    %10 = arith.cmpi eq, %arg1, %c1_i32 : i32
    %11 = arith.extui %10 : i1 to i32
    %c0_i32_8 = arith.constant 0 : i32
    %12 = arith.cmpi ne, %11, %c0_i32_8 : i32
    scf.if %12 {
      %c0_9 = arith.constant 0 : index
      %c0_10 = arith.constant 0 : index
      %13 = vector.load %arg10[%c0_9, %c0_10] : memref<2x128xf32, #tpu.memory_space<vmem>>, vector<2x128xf32>
      %c0_11 = arith.constant 0 : index
      %c0_12 = arith.constant 0 : index
      %14 = vector.load %arg4[%c0_11, %c0_12] : memref<1x128xf32, #tpu.memory_space<vmem>>, vector<1x128xf32>
      %15 = vector.broadcast %14 : vector<1x128xf32> to vector<2x128xf32>
      %16 = arith.addf %13, %15 : vector<2x128xf32>
      %cst_13 = arith.constant 0.000000e+00 : f32
      %17 = vector.broadcast %cst_13 : f32 to vector<2x128xf32>
      %18 = arith.maximumf %16, %17 : vector<2x128xf32>
      %19 = arith.truncf %18 : vector<2x128xf32> to vector<2x128xbf16>
      %c0_14 = arith.constant 0 : index
      %c0_15 = arith.constant 0 : index
      %20 = vector.load %arg5[%c0_14, %c0_15] : memref<128x128xbf16, #tpu.memory_space<vmem>>, vector<128x128xbf16>
      %cst_16 = arith.constant dense<0.000000e+00> : vector<2x128xf32>
      %21 = tpu.matmul %19, %20, %cst_16 {dimension_numbers = #tpu.dot_dimension_numbers<[1], [0], [0], [1], [0, 0, 1, 1], [], []>} : vector<2x128xbf16>, vector<128x128xbf16>, vector<2x128xf32> -> vector<2x128xf32>
      %c0_17 = arith.constant 0 : index
      %c0_18 = arith.constant 0 : index
      %22 = vector.load %arg6[%c0_17, %c0_18] : memref<1x128xf32, #tpu.memory_space<vmem>>, vector<1x128xf32>
      %23 = vector.broadcast %22 : vector<1x128xf32> to vector<2x128xf32>
      %24 = arith.addf %21, %23 : vector<2x128xf32>
      %cst_19 = arith.constant 0.000000e+00 : f32
      %25 = vector.broadcast %cst_19 : f32 to vector<2x128xf32>
      %26 = arith.maximumf %24, %25 : vector<2x128xf32>
      %27 = arith.truncf %26 : vector<2x128xf32> to vector<2x128xbf16>
      %c0_20 = arith.constant 0 : index
      %c0_21 = arith.constant 0 : index
      %28 = vector.load %arg7[%c0_20, %c0_21] : memref<128x128xbf16, #tpu.memory_space<vmem>>, vector<128x128xbf16>
      %cst_22 = arith.constant dense<0.000000e+00> : vector<2x128xf32>
      %29 = tpu.matmul %27, %28, %cst_22 {dimension_numbers = #tpu.dot_dimension_numbers<[1], [0], [0], [1], [0, 0, 1, 1], [], []>} : vector<2x128xbf16>, vector<128x128xbf16>, vector<2x128xf32> -> vector<2x128xf32>
      %c0_23 = arith.constant 0 : index
      %c0_24 = arith.constant 0 : index
      %30 = vector.load %arg8[%c0_23, %c0_24] : memref<1x128xf32, #tpu.memory_space<vmem>>, vector<1x128xf32>
      %31 = vector.broadcast %30 : vector<1x128xf32> to vector<2x128xf32>
      %32 = arith.addf %29, %31 : vector<2x128xf32>
      %c0_25 = arith.constant 0 : index
      %c0_26 = arith.constant 0 : index
      %33 = vector.load %arg9[%c0_25, %c0_26] : memref<2x128xf32, #tpu.memory_space<vmem>>, vector<2x128xf32>
      tpu.vector_store %arg9[%c0_25, %c0_26], %32 {strides = array<i32>} : memref<2x128xf32, #tpu.memory_space<vmem>>, vector<2x128xf32>,
    } else {
    }
    return
  }
  func.func @transform_0(%arg0: i32, %arg1: i32) -> (i32, i32) {
    %c0_i32 = arith.constant 0 : i32
    return %arg0, %arg1 : i32, i32
  }
  func.func @transform_1(%arg0: i32, %arg1: i32) -> (i32, i32) {
    %c0_i32 = arith.constant 0 : i32
    %c0_i32_0 = arith.constant 0 : i32
    return %arg1, %c0_i32 : i32, i32
  }
  func.func @transform_2(%arg0: i32, %arg1: i32) -> (i32, i32) {
    %c0_i32 = arith.constant 0 : i32
    %c0_i32_0 = arith.constant 0 : i32
    %c0_i32_1 = arith.constant 0 : i32
    return %c0_i32, %c0_i32_0 : i32, i32
  }
  func.func @transform_3(%arg0: i32, %arg1: i32) -> (i32, i32) {
    %c0_i32 = arith.constant 0 : i32
    %c0_i32_0 = arith.constant 0 : i32
    %c0_i32_1 = arith.constant 0 : i32
    return %c0_i32, %c0_i32_0 : i32, i32
  }
  func.func @transform_4(%arg0: i32, %arg1: i32) -> (i32, i32) {
    %c0_i32 = arith.constant 0 : i32
    %c0_i32_0 = arith.constant 0 : i32
    %c0_i32_1 = arith.constant 0 : i32
    return %c0_i32, %c0_i32_0 : i32, i32
  }
  func.func @transform_5(%arg0: i32, %arg1: i32) -> (i32, i32) {
    %c0_i32 = arith.constant 0 : i32
    %c0_i32_0 = arith.constant 0 : i32
    %c0_i32_1 = arith.constant 0 : i32
    return %c0_i32, %c0_i32_0 : i32, i32
  }
  func.func @transform_6(%arg0: i32, %arg1: i32) -> (i32, i32) {
    %c0_i32 = arith.constant 0 : i32
    %c0_i32_0 = arith.constant 0 : i32
    %c0_i32_1 = arith.constant 0 : i32
    return %c0_i32, %c0_i32_0 : i32, i32
  }
  func.func @transform_7(%arg0: i32, %arg1: i32) -> (i32, i32) {
    %c0_i32 = arith.constant 0 : i32
    %c0_i32_0 = arith.constant 0 : i32
    return %arg0, %c0_i32 : i32, i32
  }
}

</mosaic_0001>

<llo_original>
// kernel: nn7_forward.1
$region0: #{nn7_forward.1}
  #allocation0 [shape = 'u32[]', space=smem, size = 0x4, offset = 0x4, fixed_abs, tag = 'smem constant byte address 0x4 - core index']
  #allocation1 [shape = 'u32[144,128]{1,0:T(1,128)}', space=vmem, size = 0x12000, scoped, tag = 'internal scratch']
  #allocation2 [shape = 'f32[2,128]{1,0:T(2,128)}', space=vmem, size = 0x400, scoped, tag = 'scratch operand']
  %s0 = inlined_call_operand.vmem [shape: f32[2,12288], index: 0, kind: input, shape index: {}]
  %s1 = inlined_call_operand.hbm [shape: bf16[12288,128], index: 1, kind: input, shape index: {}]
  %s2 = inlined_call_operand.hbm [shape: f32[1,128], index: 2, kind: input, shape index: {}]
  %s3 = inlined_call_operand.hbm [shape: bf16[128,128], index: 3, kind: input, shape index: {}]
  %s4 = inlined_call_operand.hbm [shape: f32[1,128], index: 4, kind: input, shape index: {}]
  %s5 = inlined_call_operand.hbm [shape: bf16[128,128], index: 5, kind: input, shape index: {}]
  %s6 = inlined_call_operand.hbm [shape: f32[1,128], index: 6, kind: input, shape index: {}]
  %s7 = inlined_call_operand.hbm [shape: f32[2,128], index: 7, kind: output, shape index: {}]
  %s8 = sld [smem:[#allocation0]]
  $region93: #{nn7_forward.1} parent=0
    _
  %s10 = ssub.s32 1, %s8
  %s11 = scalar_select 0, %s10, %s8
  $region1: #{nn7_forward.1} parent=0
    #allocation3 [shape = 'u8[3145728]{0}', space=vmem, size = 0x300000, scoped, tag = 'input window, operand 1']
    #allocation4 [shape = 's32[2]{0}', space=sflag, size = 0x8, scoped, tag = 'scoped memory for nn7_forward.1']
    #allocation5 [shape = 's32[2]{0}', space=sflag, size = 0x8, scoped, tag = 'scoped memory for nn7_forward.1']
    #allocation6 [shape = 'u8[512]{0}', space=vmem, size = 0x400, scoped, tag = 'input window, operand 2, single buffered']
    #allocation7 [shape = 's32[1]{0}', space=sflag, size = 0x4, scoped, tag = 'scoped memory for nn7_forward.1']
    #allocation8 [shape = 'u8[32768]{0}', space=vmem, size = 0x8000, scoped, tag = 'input window, operand 3, single buffered']
    #allocation9 [shape = 'u8[512]{0}', space=vmem, size = 0x400, scoped, tag = 'input window, operand 4, single buffered']
    #allocation10 [shape = 's32[1]{0}', space=sflag, size = 0x4, scoped, tag = 'scoped memory for nn7_forward.1']
    #allocation11 [shape = 'u8[32768]{0}', space=vmem, size = 0x8000, scoped, tag = 'input window, operand 5, single buffered']
    #allocation12 [shape = 'u8[512]{0}', space=vmem, size = 0x400, scoped, tag = 'input window, operand 6, single buffered']
    #allocation13 [shape = 's32[1]{0}', space=sflag, size = 0x4, scoped, tag = 'scoped memory for nn7_forward.1']
    #allocation14 [shape = 'u8[1024]{0}', space=vmem, size = 0x400, scoped, tag = 'output window, operand 0, single buffered']
    %12 = vsyncpa [#allocation4], 0
    %s13 = scalar_lea.sflag [#allocation4], 1
    %14 = vsyncpa %s13, 0
    %15 = vsyncpa [#allocation7], 0
    %16 = vsyncpa [#allocation10], 0
    %17 = vsyncpa [#allocation13], 0
    %18 = vsyncpa [#allocation5], 0
    loop: start=0, step=1, limit=4
    $region2: #{nn7_forward.1} parent=1 // loop_pre_header
      _
    $region3: #{nn7_forward.1} parent=1 // loop_header
      %s20 = sphi 0, %s24
      %p21 = scmp.ge.s32.totalorder %s20, 4
      %s27 = sphi 0, %s39
      %s28 = sphi 0, %s35
      %s29 = sphi 0, %s27
      %s30 = sphi 0, %s28
      %s31 = sphi 0, %s29
      %s32 = sphi 0, %s30
      %s44 = sphi 0, %s46
      %s47 = sphi 0, %s44
      %s48 = sphi 0, %s47
      %s64 = sphi 0, %s48
      %s70 = sphi 0, %s72
      %s73 = sphi 0, %s70
      %s74 = sphi 0, %s73
      %s90 = sphi 0, %s74
      %s94 = sphi 0, %s94
      %s96 = sphi 0, %s94
      %s97 = sphi 0, %s96
      %s111 = sphi 0, %s97
      %s115 = sphi 0, %s115
      %s117 = sphi 0, %s115
      %s118 = sphi 0, %s117
      %s132 = sphi 0, %s118
      %s136 = sphi 0, %s136
      %s138 = sphi 0, %s136
      %s139 = sphi 0, %s138
      %s153 = sphi 0, %s139
      %s157 = sphi 0, %s157
      %s159 = sphi 0, %s157
      %s160 = sphi 0, %s159
      %s174 = sphi 0, %s160
      %s178 = sphi 0, %s178
      %s180 = sphi 0, %s178
      %s181 = sphi 0, %s180
      %s195 = sphi 0, %s181
      %s201 = sphi 0, %s203
      %s204 = sphi 0, %s201
      %s205 = sphi 0, %s204
      %s221 = sphi 0, %s205
    $region4: #{nn7_forward.1} parent=1 // loop_header_branch
      %23 = sbr.rel (%p21) target = $region8
    $region5: #{nn7_forward.1} parent=1 // loop_body
      %s25 = ssub.s32 %s20, 1
      %s26 = ssub.s32 %s20, 2
      %s33 = sadd.s32 1, %s28
      %p34 = scmp.ge.s32.totalorder %s33, 2
      %s35 = scalar_select %p34, 0, %s33
      %s36 = sadd.s32 1, %s27
      %s37 = scalar_select %p34, %s36, %s27
      %p38 = scmp.ge.s32.totalorder %s37, 1
      %s39 = scalar_select %p38, 0, %s37
      %s40 = ssub.s32 %s27, %s39
      %s41 = ssub.s32 %s28, %s35
      %s42 = sor.u32 %s40, %s41
      %p43 = scmp.eq.s32.totalorder %s42, 0
      %s45 = sadd.s32 %s44, 1
      %s46 = scalar_select %p43, %s44, %s45
      %p49 = pneg %p43
      %p50 = scmp.eq.s32.totalorder %s20, 1
      %p51 = por %p49, %p50
      %p52 = scmp.ne.s32.totalorder %s44, %s47
      %p53 = scmp.eq.s32.totalorder %s20, 0
      %p54 = por %p52, %p53
      %p55 = scmp.ne.s32.totalorder %s44, %s47
      %p56 = scmp.eq.s32.totalorder %s25, 1
      %p57 = por %p55, %p56
      %p58 = scmp.ne.s32.totalorder %s47, %s48
      %p59 = scmp.eq.s32.totalorder %s25, 0
      %p60 = por %p58, %p59
      %p61 = scmp.ne.s32.totalorder %s47, %s48
      %p62 = scmp.eq.s32.totalorder %s26, 1
      %p63 = por %p61, %p62
      %p65 = scmp.ne.s32.totalorder %s48, %s64
      %p66 = scmp.eq.s32.totalorder %s26, 0
      %p67 = por %p65, %p66
      %s68 = ssub.s32 %s28, %s35
      %p69 = scmp.eq.s32.totalorder %s68, 0
      %s71 = sadd.s32 %s70, 1
      %s72 = scalar_select %p69, %s70, %s71
      %p75 = pneg %p69
      %p76 = scmp.eq.s32.totalorder %s20, 1
      %p77 = por %p75, %p76
      %p78 = scmp.ne.s32.totalorder %s70, %s73
      %p79 = scmp.eq.s32.totalorder %s20, 0
      %p80 = por %p78, %p79
      %p81 = scmp.ne.s32.totalorder %s70, %s73
      %p82 = scmp.eq.s32.totalorder %s25, 1
      %p83 = por %p81, %p82
      %p84 = scmp.ne.s32.totalorder %s73, %s74
      %p85 = scmp.eq.s32.totalorder %s25, 0
      %p86 = por %p84, %p85
      %p87 = scmp.ne.s32.totalorder %s73, %s74
      %p88 = scmp.eq.s32.totalorder %s26, 1
      %p89 = por %p87, %p88
      %p91 = scmp.ne.s32.totalorder %s74, %s90
      %p92 = scmp.eq.s32.totalorder %s26, 0
      %p93 = por %p91, %p92
      %s95 = sadd.s32 %s94, 1
      %p98 = scmp.eq.s32.totalorder %s20, 1
      %p99 = scmp.ne.s32.totalorder %s94, %s96
      %p100 = scmp.eq.s32.totalorder %s20, 0
      %p101 = por %p99, %p100
      %p102 = scmp.ne.s32.totalorder %s94, %s96
      %p103 = scmp.eq.s32.totalorder %s25, 1
      %p104 = por %p102, %p103
      %p105 = scmp.ne.s32.totalorder %s96, %s97
      %p106 = scmp.eq.s32.totalorder %s25, 0
      %p107 = por %p105, %p106
      %p108 = scmp.ne.s32.totalorder %s96, %s97
      %p109 = scmp.eq.s32.totalorder %s26, 1
      %p110 = por %p108, %p109
      %p112 = scmp.ne.s32.totalorder %s97, %s111
      %p113 = scmp.eq.s32.totalorder %s26, 0
      %p114 = por %p112, %p113
      %s116 = sadd.s32 %s115, 1
      %p119 = scmp.eq.s32.totalorder %s20, 1
      %p120 = scmp.ne.s32.totalorder %s115, %s117
      %p121 = scmp.eq.s32.totalorder %s20, 0
      %p122 = por %p120, %p121
      %p123 = scmp.ne.s32.totalorder %s115, %s117
      %p124 = scmp.eq.s32.totalorder %s25, 1
      %p125 = por %p123, %p124
      %p126 = scmp.ne.s32.totalorder %s117, %s118
      %p127 = scmp.eq.s32.totalorder %s25, 0
      %p128 = por %p126, %p127
      %p129 = scmp.ne.s32.totalorder %s117, %s118
      %p130 = scmp.eq.s32.totalorder %s26, 1
      %p131 = por %p129, %p130
      %p133 = scmp.ne.s32.totalorder %s118, %s132
      %p134 = scmp.eq.s32.totalorder %s26, 0
      %p135 = por %p133, %p134
      %s137 = sadd.s32 %s136, 1
      %p140 = scmp.eq.s32.totalorder %s20, 1
      %p141 = scmp.ne.s32.totalorder %s136, %s138
      %p142 = scmp.eq.s32.totalorder %s20, 0
      %p143 = por %p141, %p142
      %p144 = scmp.ne.s32.totalorder %s136, %s138
      %p145 = scmp.eq.s32.totalorder %s25, 1
      %p146 = por %p144, %p145
      %p147 = scmp.ne.s32.totalorder %s138, %s139
      %p148 = scmp.eq.s32.totalorder %s25, 0
      %p149 = por %p147, %p148
      %p150 = scmp.ne.s32.totalorder %s138, %s139
      %p151 = scmp.eq.s32.totalorder %s26, 1
      %p152 = por %p150, %p151
      %p154 = scmp.ne.s32.totalorder %s139, %s153
      %p155 = scmp.eq.s32.totalorder %s26, 0
      %p156 = por %p154, %p155
      %s158 = sadd.s32 %s157, 1
      %p161 = scmp.eq.s32.totalorder %s20, 1
      %p162 = scmp.ne.s32.totalorder %s157, %s159
      %p163 = scmp.eq.s32.totalorder %s20, 0
      %p164 = por %p162, %p163
      %p165 = scmp.ne.s32.totalorder %s157, %s159
      %p166 = scmp.eq.s32.totalorder %s25, 1
      %p167 = por %p165, %p166
      %p168 = scmp.ne.s32.totalorder %s159, %s160
      %p169 = scmp.eq.s32.totalorder %s25, 0
      %p170 = por %p168, %p169
      %p171 = scmp.ne.s32.totalorder %s159, %s160
      %p172 = scmp.eq.s32.totalorder %s26, 1
      %p173 = por %p171, %p172
      %p175 = scmp.ne.s32.totalorder %s160, %s174
      %p176 = scmp.eq.s32.totalorder %s26, 0
      %p177 = por %p175, %p176
      %s179 = sadd.s32 %s178, 1
      %p182 = scmp.eq.s32.totalorder %s20, 1
      %p183 = scmp.ne.s32.totalorder %s178, %s180
      %p184 = scmp.eq.s32.totalorder %s20, 0
      %p185 = por %p183, %p184
      %p186 = scmp.ne.s32.totalorder %s178, %s180
      %p187 = scmp.eq.s32.totalorder %s25, 1
      %p188 = por %p186, %p187
      %p189 = scmp.ne.s32.totalorder %s180, %s181
      %p190 = scmp.eq.s32.totalorder %s25, 0
      %p191 = por %p189, %p190
      %p192 = scmp.ne.s32.totalorder %s180, %s181
      %p193 = scmp.eq.s32.totalorder %s26, 1
      %p194 = por %p192, %p193
      %p196 = scmp.ne.s32.totalorder %s181, %s195
      %p197 = scmp.eq.s32.totalorder %s26, 0
      %p198 = por %p196, %p197
      %s199 = ssub.s32 %s27, %s39
      %p200 = scmp.eq.s32.totalorder %s199, 0
      %s202 = sadd.s32 %s201, 1
      %s203 = scalar_select %p200, %s201, %s202
      %p206 = pneg %p200
      %p207 = scmp.eq.s32.totalorder %s20, 1
      %p208 = por %p206, %p207
      %p209 = scmp.ne.s32.totalorder %s201, %s204
      %p210 = scmp.eq.s32.totalorder %s20, 0
      %p211 = por %p209, %p210
      %p212 = scmp.ne.s32.totalorder %s201, %s204
      %p213 = scmp.eq.s32.totalorder %s25, 1
      %p214 = por %p212, %p213
      %p215 = scmp.ne.s32.totalorder %s204, %s205
      %p216 = scmp.eq.s32.totalorder %s25, 0
      %p217 = por %p215, %p216
      %p218 = scmp.ne.s32.totalorder %s204, %s205
      %p219 = scmp.eq.s32.totalorder %s26, 1
      %p220 = por %p218, %p219
      %p222 = scmp.ne.s32.totalorder %s205, %s221
      %p223 = scmp.eq.s32.totalorder %s26, 0
      %p224 = por %p222, %p223
      %p225 = scmp.le.s32.totalorder 1, %s20
      %p226 = scmp.lt.s32.totalorder %s20, 3
      %p227 = pnand %p225, %p226
      %p228 = pneg %p227
      // Predicated region
      $region9: #{nn7_forward.1} parent=5 // pred_check
        _
      $region10: #{nn7_forward.1} parent=5 // pred_check_branch
        %230 = sbr.rel (%p227) target = $region12
      $region11: #{nn7_forward.1} parent=5 // pred_region
        %s231 = ssub.s32 %s20, 1
        // Predicated region
        $region13: #{nn7_forward.1} parent=11 // pred_check
          %p232 = pneg %p107
        $region14: #{nn7_forward.1} parent=11 // pred_check_branch
          %234 = sbr.rel (%p232) target = $region16
        $region15: #{nn7_forward.1} parent=11 // pred_region
          %s236 = ssub.s32 16, 16
          %237 = vsyncadd [#allocation7], %s236
          %s239 = sshll.u32 [#allocation6], 4
          %s240 = int_to_ptr.vmem [resolvable:$true] %s239
          %242 = dma.hbm_to_vmem [thread:$0]  %s2, 16, %s240, [#allocation7]
        $region16: #{nn7_forward.1} parent=11 // pred_fallthru
          _
        // Predicated region
        $region17: #{nn7_forward.1} parent=11 // pred_check
          %p243 = pneg %p128
        $region18: #{nn7_forward.1} parent=11 // pred_check_branch
          %245 = sbr.rel (%p243) target = $region20
        $region19: #{nn7_forward.1} parent=11 // pred_region
          %s247 = ssub.s32 1024, 1024
          %248 = vsyncadd [#allocation7], %s247
          %s249 = sshll.u32 [#allocation8], 4
          %s250 = int_to_ptr.vmem [resolvable:$true] %s249
          %255 = dma.hbm_to_vmem [thread:$0]  %s3, 1024, %s250, [#allocation7], 64, 64, 4
        $region20: #{nn7_forward.1} parent=11 // pred_fallthru
          _
        // Predicated region
        $region21: #{nn7_forward.1} parent=11 // pred_check
          %p256 = pneg %p149
        $region22: #{nn7_forward.1} parent=11 // pred_check_branch
          %258 = sbr.rel (%p256) target = $region24
        $region23: #{nn7_forward.1} parent=11 // pred_region
          %s260 = ssub.s32 16, 16
          %261 = vsyncadd [#allocation10], %s260
          %s263 = sshll.u32 [#allocation9], 4
          %s264 = int_to_ptr.vmem [resolvable:$true] %s263
          %266 = dma.hbm_to_vmem [thread:$0]  %s4, 16, %s264, [#allocation10]
        $region24: #{nn7_forward.1} parent=11 // pred_fallthru
          _
        // Predicated region
        $region25: #{nn7_forward.1} parent=11 // pred_check
          %p267 = pneg %p170
        $region26: #{nn7_forward.1} parent=11 // pred_check_branch
          %269 = sbr.rel (%p267) target = $region28
        $region27: #{nn7_forward.1} parent=11 // pred_region
          %s271 = ssub.s32 1024, 1024
          %272 = vsyncadd [#allocation10], %s271
          %s273 = sshll.u32 [#allocation11], 4
          %s274 = int_to_ptr.vmem [resolvable:$true] %s273
          %279 = dma.hbm_to_vmem [thread:$0]  %s5, 1024, %s274, [#allocation10], 64, 64, 4
        $region28: #{nn7_forward.1} parent=11 // pred_fallthru
          _
        // Predicated region
        $region29: #{nn7_forward.1} parent=11 // pred_check
          %p280 = pneg %p191
        $region30: #{nn7_forward.1} parent=11 // pred_check_branch
          %282 = sbr.rel (%p280) target = $region32
        $region31: #{nn7_forward.1} parent=11 // pred_region
          %s284 = ssub.s32 16, 16
          %285 = vsyncadd [#allocation13], %s284
          %s287 = sshll.u32 [#allocation12], 4
          %s288 = int_to_ptr.vmem [resolvable:$true] %s287
          %290 = dma.hbm_to_vmem [thread:$0]  %s6, 16, %s288, [#allocation13]
        $region32: #{nn7_forward.1} parent=11 // pred_fallthru
          _
      $region12: #{nn7_forward.1} parent=5 // pred_fallthru
        _
      %p291 = scmp.lt.s32.totalorder %s20, 2
      // Predicated region
      $region33: #{nn7_forward.1} parent=5 // pred_check
        %p292 = pneg %p291
      $region34: #{nn7_forward.1} parent=5 // pred_check_branch
        %294 = sbr.rel (%p292) target = $region36
      $region35: #{nn7_forward.1} parent=5 // pred_region
        // Predicated region
        $region37: #{nn7_forward.1} parent=35 // pred_check
          %p295 = pneg %p54
        $region38: #{nn7_forward.1} parent=35 // pred_check_branch
          %297 = sbr.rel (%p295) target = $region40
        $region39: #{nn7_forward.1} parent=35 // pred_region
          %s298 = smul.u32 48, %s28
          %p299 = scmp.lt.s32.totalorder %s27, 0
          %s300 = scalar_select %p299, %s27, 0
          %p301 = scmp.lt.s32.totalorder %s298, 95
          %s302 = scalar_select %p301, %s298, 95
          %s303 = smul.addr %s300, 96
          %s304 = sadd.s32 %s302, %s303
          %s305 = smul.addr %s304, 2
          %s306 = scalar_lea.vmem %s0, %s305
          %s307 = smul.u32 48, %s28
        $region40: #{nn7_forward.1} parent=35 // pred_fallthru
          _
        // Predicated region
        $region41: #{nn7_forward.1} parent=35 // pred_check
          %p308 = pneg %p80
        $region42: #{nn7_forward.1} parent=35 // pred_check_branch
          %310 = sbr.rel (%p308) target = $region44
        $region43: #{nn7_forward.1} parent=35 // pred_region
          %s311 = sand.u32 %s70, 1
          %s312 = scalar_lea.sflag [#allocation4], %s311
          %s313 = sand.u32 %s70, 1
          %s314 = smul.addr %s313, 3072
          %s315 = scalar_lea.vmem [#allocation3], %s314
          %s316 = smul.u32 768, %s28
          %s318 = ssub.s32 49152, 49152
          %319 = vsyncadd %s312, %s318
          %s320 = smul.addr %s316, 64
          %s321 = scalar_lea.hbm %s1, %s320
          %s322 = sshll.u32 %s315, 4
          %s323 = int_to_ptr.vmem [resolvable:$true] %s322
          %328 = dma.hbm_to_vmem [thread:$0]  %s321, 49152, %s323, %s312, 64, 64, 4
        $region44: #{nn7_forward.1} parent=35 // pred_fallthru
          _
      $region36: #{nn7_forward.1} parent=5 // pred_fallthru
        _
      %p329 = scmp.le.s32.totalorder 1, %s20
      %p330 = scmp.lt.s32.totalorder %s20, 3
      %p331 = pnand %p329, %p330
      %p332 = pneg %p331
      // Predicated region
      $region45: #{nn7_forward.1} parent=5 // pred_check
        _
      $region46: #{nn7_forward.1} parent=5 // pred_check_branch
        %334 = sbr.rel (%p331) target = $region48
      $region47: #{nn7_forward.1} parent=5 // pred_region
        %s335 = ssub.s32 %s20, 1
        %s336 = sand.u32 %s73, 1
        %s337 = scalar_lea.sflag [#allocation4], %s336
        %s338 = sand.u32 %s73, 1
        %s339 = smul.addr %s338, 3072
        %s340 = scalar_lea.vmem [#allocation3], %s339
        // Predicated region
        $region49: #{nn7_forward.1} parent=47 // pred_check
          %p341 = pneg %p86
        $region50: #{nn7_forward.1} parent=47 // pred_check_branch
          %343 = sbr.rel (%p341) target = $region52
        $region51: #{nn7_forward.1} parent=47 // pred_region
          %344 = dma.done %s337, 49152
        $region52: #{nn7_forward.1} parent=47 // pred_fallthru
          _
        // Predicated region
        $region53: #{nn7_forward.1} parent=47 // pred_check
          %p345 = pneg %p107
        $region54: #{nn7_forward.1} parent=47 // pred_check_branch
          %347 = sbr.rel (%p345) target = $region56
        $region55: #{nn7_forward.1} parent=47 // pred_region
          %348 = dma.done [#allocation7], 16
        $region56: #{nn7_forward.1} parent=47 // pred_fallthru
          _
        // Predicated region
        $region57: #{nn7_forward.1} parent=47 // pred_check
          %p349 = pneg %p128
        $region58: #{nn7_forward.1} parent=47 // pred_check_branch
          %351 = sbr.rel (%p349) target = $region60
        $region59: #{nn7_forward.1} parent=47 // pred_region
          %352 = dma.done [#allocation7], 1024
        $region60: #{nn7_forward.1} parent=47 // pred_fallthru
          _
        // Predicated region
        $region61: #{nn7_forward.1} parent=47 // pred_check
          %p353 = pneg %p149
        $region62: #{nn7_forward.1} parent=47 // pred_check_branch
          %355 = sbr.rel (%p353) target = $region64
        $region63: #{nn7_forward.1} parent=47 // pred_region
          %356 = dma.done [#allocation10], 16
        $region64: #{nn7_forward.1} parent=47 // pred_fallthru
          _
        // Predicated region
        $region65: #{nn7_forward.1} parent=47 // pred_check
          %p357 = pneg %p170
        $region66: #{nn7_forward.1} parent=47 // pred_check_branch
          %359 = sbr.rel (%p357) target = $region68
        $region67: #{nn7_forward.1} parent=47 // pred_region
          %360 = dma.done [#allocation10], 1024
        $region68: #{nn7_forward.1} parent=47 // pred_fallthru
          _
        // Predicated region
        $region69: #{nn7_forward.1} parent=47 // pred_check
          %p361 = pneg %p191
        $region70: #{nn7_forward.1} parent=47 // pred_check_branch
          %363 = sbr.rel (%p361) target = $region72
        $region71: #{nn7_forward.1} parent=47 // pred_region
          %364 = dma.done [#allocation13], 16
        $region72: #{nn7_forward.1} parent=47 // pred_fallthru
          _
        %s365 = smul.u32 48, %s30
        %p366 = scmp.lt.s32.totalorder %s29, 0
        %s367 = scalar_select %p366, %s29, 0
        %p368 = scmp.lt.s32.totalorder %s365, 95
        %s369 = scalar_select %p368, %s365, 95
        %s370 = smul.addr %s367, 96
        %s371 = sadd.s32 %s369, %s370
        %s372 = smul.addr %s371, 2
        %s373 = scalar_lea.vmem %s0, %s372
        %p374 = pneg %p60
        %p375 = pneg %p57
        %s376 = sand.u32 %s73, 1
        %s377 = scalar_lea.sflag [#allocation4], %s376
        %s378 = sand.u32 %s73, 1
        %s379 = smul.addr %s378, 3072
        %s380 = scalar_lea.vmem [#allocation3], %s379
        %p381 = pneg %p86
        %p382 = pneg %p83
        %p383 = pneg %p107
        %p384 = pneg %p104
        %p385 = pneg %p128
        %p386 = pneg %p125
        %p387 = pneg %p149
        %p388 = pneg %p146
        %p389 = pneg %p170
        %p390 = pneg %p167
        %p391 = pneg %p191
        %p392 = pneg %p188
        %p393 = pneg %p217
        %p394 = pneg %p214
        %s395 = smul.u32 48, %s30
        %p396 = scmp.lt.s32.totalorder %s29, 0
        %s397 = scalar_select %p396, %s29, 0
        %p398 = scmp.lt.s32.totalorder %s395, 95
        %s399 = scalar_select %p398, %s395, 95
        %s400 = smul.addr %s397, 96
        %s401 = sadd.s32 %s399, %s400
        %s402 = smul.addr %s401, 2
        %s403 = scalar_lea.vmem %s0, %s402
        %s404 = smul.u32 48, %s30
        %s405 = smul.u32 768, %s30
        %p407 = scmp.eq.s32.totalorder %s30, 0
        // Predicated region
        $region73: #{nn7_forward.1} parent=47 // pred_check
          %p408 = pneg %p407
        $region74: #{nn7_forward.1} parent=47 // pred_check_branch
          %410 = sbr.rel (%p408) target = $region76
        $region75: #{nn7_forward.1} parent=47 // pred_region
          %411 = vst [vmem:[#allocation2] sm:$0x3] 0.0
        $region76: #{nn7_forward.1} parent=47 // pred_fallthru
          _
        %v412 = vld [vmem:[%s403] sm:$0xff]
        %v413 = vld [vmem:[%s403 + $0x8] sm:$0xff]
        %v414 = vld [vmem:[%s403 + $0x10] sm:$0xff]
        %v415 = vld [vmem:[%s403 + $0x18] sm:$0xff]
        %v416 = vld [vmem:[%s403 + $0x20] sm:$0xff]
        %v417 = vld [vmem:[%s403 + $0x28] sm:$0xff]
        %v418 = vld [vmem:[%s403 + $0x30] sm:$0xff]
        %v419 = vld [vmem:[%s403 + $0x38] sm:$0xff]
        %v420 = vld [vmem:[%s403 + $0x40] sm:$0xff]
        %v421 = vld [vmem:[%s403 + $0x48] sm:$0xff]
        %v422 = vld [vmem:[%s403 + $0x50] sm:$0xff]
        %v423 = vld [vmem:[%s403 + $0x58] sm:$0xff]
        %v436 = vcombine.high %v412, %v412
        %v438 = vunpack.c.l.s4 1983009808
        %v439 = vunpack.c.0.s8 %v438
        %v440 = vlaneseq
        %v441 = vshrl.u32 %v440, 7
        %v442 = vsub.s32 %v439, %v441
        %v443 = vrot.slane %v412, %v442
        %v445 = vunpack.c.l.s4 1983009808
        %v446 = vunpack.c.0.s8 %v445
        %v447 = vlaneseq
        %v448 = vshrl.u32 %v447, 7
        %v449 = vsub.s32 %v446, %v448
        %v450 = vrot.slane %v436, %v449
        %v451 = vcombine.high %v443, %v443
        %v452 = vcombine.high %v450, %v450
        %v453 = vcombine.high %v413, %v413
        %v455 = vunpack.c.l.s4 1983009808
        %v456 = vunpack.c.0.s8 %v455
        %v457 = vlaneseq
        %v458 = vshrl.u32 %v457, 7
        %v459 = vsub.s32 %v456, %v458
        %v460 = vrot.slane %v413, %v459
        %v462 = vunpack.c.l.s4 1983009808
        %v463 = vunpack.c.0.s8 %v462
        %v464 = vlaneseq
        %v465 = vshrl.u32 %v464, 7
        %v466 = vsub.s32 %v463, %v465
        %v467 = vrot.slane %v453, %v466
        %v468 = vcombine.high %v460, %v460
        %v469 = vcombine.high %v467, %v467
        %v470 = vcombine.high %v414, %v414
        %v472 = vunpack.c.l.s4 1983009808
        %v473 = vunpack.c.0.s8 %v472
        %v474 = vlaneseq
        %v475 = vshrl.u32 %v474, 7
        %v476 = vsub.s32 %v473, %v475
        %v477 = vrot.slane %v414, %v476
        %v479 = vunpack.c.l.s4 1983009808
        %v480 = vunpack.c.0.s8 %v479
        %v481 = vlaneseq
        %v482 = vshrl.u32 %v481, 7
        %v483 = vsub.s32 %v480, %v482
        %v484 = vrot.slane %v470, %v483
        %v485 = vcombine.high %v477, %v477
        %v486 = vcombine.high %v484, %v484
        %v487 = vcombine.high %v415, %v415
        %v489 = vunpack.c.l.s4 1983009808
        %v490 = vunpack.c.0.s8 %v489
        %v491 = vlaneseq
        %v492 = vshrl.u32 %v491, 7
        %v493 = vsub.s32 %v490, %v492
        %v494 = vrot.slane %v415, %v493
        %v496 = vunpack.c.l.s4 1983009808
        %v497 = vunpack.c.0.s8 %v496
        %v498 = vlaneseq
        %v499 = vshrl.u32 %v498, 7
        %v500 = vsub.s32 %v497, %v499
        %v501 = vrot.slane %v487, %v500
        %v502 = vcombine.high %v494, %v494
        %v503 = vcombine.high %v501, %v501
        %v504 = vcombine.high %v416, %v416
        %v506 = vunpack.c.l.s4 1983009808
        %v507 = vunpack.c.0.s8 %v506
        %v508 = vlaneseq
        %v509 = vshrl.u32 %v508, 7
        %v510 = vsub.s32 %v507, %v509
        %v511 = vrot.slane %v416, %v510
        %v513 = vunpack.c.l.s4 1983009808
        %v514 = vunpack.c.0.s8 %v513
        %v515 = vlaneseq
        %v516 = vshrl.u32 %v515, 7
        %v517 = vsub.s32 %v514, %v516
        %v518 = vrot.slane %v504, %v517
        %v519 = vcombine.high %v511, %v511
        %v520 = vcombine.high %v518, %v518
        %v521 = vcombine.high %v417, %v417
        %v523 = vunpack.c.l.s4 1983009808
        %v524 = vunpack.c.0.s8 %v523
        %v525 = vlaneseq
        %v526 = vshrl.u32 %v525, 7
        %v527 = vsub.s32 %v524, %v526
        %v528 = vrot.slane %v417, %v527
        %v530 = vunpack.c.l.s4 1983009808
        %v531 = vunpack.c.0.s8 %v530
        %v532 = vlaneseq
        %v533 = vshrl.u32 %v532, 7
        %v534 = vsub.s32 %v531, %v533
        %v535 = vrot.slane %v521, %v534
        %v536 = vcombine.high %v528, %v528
        %v537 = vcombine.high %v535, %v535
        %v538 = vcombine.high %v418, %v418
        %v540 = vunpack.c.l.s4 1983009808
        %v541 = vunpack.c.0.s8 %v540
        %v542 = vlaneseq
        %v543 = vshrl.u32 %v542, 7
        %v544 = vsub.s32 %v541, %v543
        %v545 = vrot.slane %v418, %v544
        %v547 = vunpack.c.l.s4 1983009808
        %v548 = vunpack.c.0.s8 %v547
        %v549 = vlaneseq
        %v550 = vshrl.u32 %v549, 7
        %v551 = vsub.s32 %v548, %v550
        %v552 = vrot.slane %v538, %v551
        %v553 = vcombine.high %v545, %v545
        %v554 = vcombine.high %v552, %v552
        %v555 = vcombine.high %v419, %v419
        %v557 = vunpack.c.l.s4 1983009808
        %v558 = vunpack.c.0.s8 %v557
        %v559 = vlaneseq
        %v560 = vshrl.u32 %v559, 7
        %v561 = vsub.s32 %v558, %v560
        %v562 = vrot.slane %v419, %v561
        %v564 = vunpack.c.l.s4 1983009808
        %v565 = vunpack.c.0.s8 %v564
        %v566 = vlaneseq
        %v567 = vshrl.u32 %v566, 7
        %v568 = vsub.s32 %v565, %v567
        %v569 = vrot.slane %v555, %v568
        %v570 = vcombine.high %v562, %v562
        %v571 = vcombine.high %v569, %v569
        %v572 = vcombine.high %v420, %v420
        %v574 = vunpack.c.l.s4 1983009808
        %v575 = vunpack.c.0.s8 %v574
        %v576 = vlaneseq
        %v577 = vshrl.u32 %v576, 7
        %v578 = vsub.s32 %v575, %v577
        %v579 = vrot.slane %v420, %v578
        %v581 = vunpack.c.l.s4 1983009808
        %v582 = vunpack.c.0.s8 %v581
        %v583 = vlaneseq
        %v584 = vshrl.u32 %v583, 7
        %v585 = vsub.s32 %v582, %v584
        %v586 = vrot.slane %v572, %v585
        %v587 = vcombine.high %v579, %v579
        %v588 = vcombine.high %v586, %v586
        %v589 = vcombine.high %v421, %v421
        %v591 = vunpack.c.l.s4 1983009808
        %v592 = vunpack.c.0.s8 %v591
        %v593 = vlaneseq
        %v594 = vshrl.u32 %v593, 7
        %v595 = vsub.s32 %v592, %v594
        %v596 = vrot.slane %v421, %v595
        %v598 = vunpack.c.l.s4 1983009808
        %v599 = vunpack.c.0.s8 %v598
        %v600 = vlaneseq
        %v601 = vshrl.u32 %v600, 7
        %v602 = vsub.s32 %v599, %v601
        %v603 = vrot.slane %v589, %v602
        %v604 = vcombine.high %v596, %v596
        %v605 = vcombine.high %v603, %v603
        %v606 = vcombine.high %v422, %v422
        %v608 = vunpack.c.l.s4 1983009808
        %v609 = vunpack.c.0.s8 %v608
        %v610 = vlaneseq
        %v611 = vshrl.u32 %v610, 7
        %v612 = vsub.s32 %v609, %v611
        %v613 = vrot.slane %v422, %v612
        %v615 = vunpack.c.l.s4 1983009808
        %v616 = vunpack.c.0.s8 %v615
        %v617 = vlaneseq
        %v618 = vshrl.u32 %v617, 7
        %v619 = vsub.s32 %v616, %v618
        %v620 = vrot.slane %v606, %v619
        %v621 = vcombine.high %v613, %v613
        %v622 = vcombine.high %v620, %v620
        %v623 = vcombine.high %v423, %v423
        %v625 = vunpack.c.l.s4 1983009808
        %v626 = vunpack.c.0.s8 %v625
        %v627 = vlaneseq
        %v628 = vshrl.u32 %v627, 7
        %v629 = vsub.s32 %v626, %v628
        %v630 = vrot.slane %v423, %v629
        %v632 = vunpack.c.l.s4 1983009808
        %v633 = vunpack.c.0.s8 %v632
        %v634 = vlaneseq
        %v635 = vshrl.u32 %v634, 7
        %v636 = vsub.s32 %v633, %v635
        %v637 = vrot.slane %v623, %v636
        %v638 = vcombine.high %v630, %v630
        %v639 = vcombine.high %v637, %v637
        %v688 = vpack.c.bf16 %v443, %v443
        %v689 = vpack.c.bf16 %v451, %v451
        %v690 = vpack.c.bf16 %v450, %v450
        %v691 = vpack.c.bf16 %v452, %v452
        %v692 = vpack.c.bf16 %v460, %v460
        %v693 = vpack.c.bf16 %v468, %v468
        %v694 = vpack.c.bf16 %v467, %v467
        %v695 = vpack.c.bf16 %v469, %v469
        %v696 = vpack.c.bf16 %v477, %v477
        %v697 = vpack.c.bf16 %v485, %v485
        %v698 = vpack.c.bf16 %v484, %v484
        %v699 = vpack.c.bf16 %v486, %v486
        %v700 = vpack.c.bf16 %v494, %v494
        %v701 = vpack.c.bf16 %v502, %v502
        %v702 = vpack.c.bf16 %v501, %v501
        %v703 = vpack.c.bf16 %v503, %v503
        %v704 = vpack.c.bf16 %v511, %v511
        %v705 = vpack.c.bf16 %v519, %v519
        %v706 = vpack.c.bf16 %v518, %v518
        %v707 = vpack.c.bf16 %v520, %v520
        %v708 = vpack.c.bf16 %v528, %v528
        %v709 = vpack.c.bf16 %v536, %v536
        %v710 = vpack.c.bf16 %v535, %v535
        %v711 = vpack.c.bf16 %v537, %v537
        %v712 = vpack.c.bf16 %v545, %v545
        %v713 = vpack.c.bf16 %v553, %v553
        %v714 = vpack.c.bf16 %v552, %v552
        %v715 = vpack.c.bf16 %v554, %v554
        %v716 = vpack.c.bf16 %v562, %v562
        %v717 = vpack.c.bf16 %v570, %v570
        %v718 = vpack.c.bf16 %v569, %v569
        %v719 = vpack.c.bf16 %v571, %v571
        %v720 = vpack.c.bf16 %v579, %v579
        %v721 = vpack.c.bf16 %v587, %v587
        %v722 = vpack.c.bf16 %v586, %v586
        %v723 = vpack.c.bf16 %v588, %v588
        %v724 = vpack.c.bf16 %v596, %v596
        %v725 = vpack.c.bf16 %v604, %v604
        %v726 = vpack.c.bf16 %v603, %v603
        %v727 = vpack.c.bf16 %v605, %v605
        %v728 = vpack.c.bf16 %v613, %v613
        %v729 = vpack.c.bf16 %v621, %v621
        %v730 = vpack.c.bf16 %v620, %v620
        %v731 = vpack.c.bf16 %v622, %v622
        %v732 = vpack.c.bf16 %v630, %v630
        %v733 = vpack.c.bf16 %v638, %v638
        %v734 = vpack.c.bf16 %v637, %v637
        %v735 = vpack.c.bf16 %v639, %v639
        %v736 = vld [vmem:[#allocation2] sm:$0x3]
        %v737 = vld [vmem:[%s340] sm:$0xf]
        %v738 = vld [vmem:[%s340 + $0x4] sm:$0xf]
        %v739 = vld [vmem:[%s340 + $0x8] sm:$0xf]
        %v740 = vld [vmem:[%s340 + $0xc] sm:$0xf]
        %v741 = vld [vmem:[%s340 + $0x10] sm:$0xf]
        %v742 = vld [vmem:[%s340 + $0x14] sm:$0xf]
        %v743 = vld [vmem:[%s340 + $0x18] sm:$0xf]
        %v744 = vld [vmem:[%s340 + $0x1c] sm:$0xf]
        %v745 = vld [vmem:[%s340 + $0x20] sm:$0xf]
        %v746 = vld [vmem:[%s340 + $0x24] sm:$0xf]
        %v747 = vld [vmem:[%s340 + $0x28] sm:$0xf]
        %v748 = vld [vmem:[%s340 + $0x2c] sm:$0xf]
        %v749 = vld [vmem:[%s340 + $0x30] sm:$0xf]
        %v750 = vld [vmem:[%s340 + $0x34] sm:$0xf]
        %v751 = vld [vmem:[%s340 + $0x38] sm:$0xf]
        %v752 = vld [vmem:[%s340 + $0x3c] sm:$0xf]
        %v753 = vld [vmem:[%s340 + $0x40] sm:$0xf]
        %v754 = vld [vmem:[%s340 + $0x44] sm:$0xf]
        %v755 = vld [vmem:[%s340 + $0x48] sm:$0xf]
        %v756 = vld [vmem:[%s340 + $0x4c] sm:$0xf]
        %v757 = vld [vmem:[%s340 + $0x50] sm:$0xf]
        %v758 = vld [vmem:[%s340 + $0x54] sm:$0xf]
        %v759 = vld [vmem:[%s340 + $0x58] sm:$0xf]
        %v760 = vld [vmem:[%s340 + $0x5c] sm:$0xf]
        %v761 = vld [vmem:[%s340 + $0x60] sm:$0xf]
        %v762 = vld [vmem:[%s340 + $0x64] sm:$0xf]
        %v763 = vld [vmem:[%s340 + $0x68] sm:$0xf]
        %v764 = vld [vmem:[%s340 + $0x6c] sm:$0xf]
        %v765 = vld [vmem:[%s340 + $0x70] sm:$0xf]
        %v766 = vld [vmem:[%s340 + $0x74] sm:$0xf]
        %v767 = vld [vmem:[%s340 + $0x78] sm:$0xf]
        %v768 = vld [vmem:[%s340 + $0x7c] sm:$0xf]
        %v769 = vld [vmem:[%s340 + $0x80] sm:$0xf]
        %v770 = vld [vmem:[%s340 + $0x84] sm:$0xf]
        %v771 = vld [vmem:[%s340 + $0x88] sm:$0xf]
        %v772 = vld [vmem:[%s340 + $0x8c] sm:$0xf]
        %v773 = vld [vmem:[%s340 + $0x90] sm:$0xf]
        %v774 = vld [vmem:[%s340 + $0x94] sm:$0xf]
        %v775 = vld [vmem:[%s340 + $0x98] sm:$0xf]
        %v776 = vld [vmem:[%s340 + $0x9c] sm:$0xf]
        %v777 = vld [vmem:[%s340 + $0xa0] sm:$0xf]
        %v778 = vld [vmem:[%s340 + $0xa4] sm:$0xf]
        %v779 = vld [vmem:[%s340 + $0xa8] sm:$0xf]
        %v780 = vld [vmem:[%s340 + $0xac] sm:$0xf]
        %v781 = vld [vmem:[%s340 + $0xb0] sm:$0xf]
        %v782 = vld [vmem:[%s340 + $0xb4] sm:$0xf]
        %v783 = vld [vmem:[%s340 + $0xb8] sm:$0xf]
        %v784 = vld [vmem:[%s340 + $0xbc] sm:$0xf]
        %v785 = vld [vmem:[%s340 + $0xc0] sm:$0xf]
        %v786 = vld [vmem:[%s340 + $0xc4] sm:$0xf]
        %v787 = vld [vmem:[%s340 + $0xc8] sm:$0xf]
        %v788 = vld [vmem:[%s340 + $0xcc] sm:$0xf]
        %v789 = vld [vmem:[%s340 + $0xd0] sm:$0xf]
        %v790 = vld [vmem:[%s340 + $0xd4] sm:$0xf]
        %v791 = vld [vmem:[%s340 + $0xd8] sm:$0xf]
        %v792 = vld [vmem:[%s340 + $0xdc] sm:$0xf]
        %v793 = vld [vmem:[%s340 + $0xe0] sm:$0xf]
        %v794 = vld [vmem:[%s340 + $0xe4] sm:$0xf]
        %v795 = vld [vmem:[%s340 + $0xe8] sm:$0xf]
        %v796 = vld [vmem:[%s340 + $0xec] sm:$0xf]
        %v797 = vld [vmem:[%s340 + $0xf0] sm:$0xf]
        %v798 = vld [vmem:[%s340 + $0xf4] sm:$0xf]
        %v799 = vld [vmem:[%s340 + $0xf8] sm:$0xf]
        %v800 = vld [vmem:[%s340 + $0xfc] sm:$0xf]
        %v801 = vld [vmem:[%s340 + $0x100] sm:$0xf]
        %v802 = vld [vmem:[%s340 + $0x104] sm:$0xf]
        %v803 = vld [vmem:[%s340 + $0x108] sm:$0xf]
        %v804 = vld [vmem:[%s340 + $0x10c] sm:$0xf]
        %v805 = vld [vmem:[%s340 + $0x110] sm:$0xf]
        %v806 = vld [vmem:[%s340 + $0x114] sm:$0xf]
        %v807 = vld [vmem:[%s340 + $0x118] sm:$0xf]
        %v808 = vld [vmem:[%s340 + $0x11c] sm:$0xf]
        %v809 = vld [vmem:[%s340 + $0x120] sm:$0xf]
        %v810 = vld [vmem:[%s340 + $0x124] sm:$0xf]
        %v811 = vld [vmem:[%s340 + $0x128] sm:$0xf]
        %v812 = vld [vmem:[%s340 + $0x12c] sm:$0xf]
        %v813 = vld [vmem:[%s340 + $0x130] sm:$0xf]
        %v814 = vld [vmem:[%s340 + $0x134] sm:$0xf]
        %v815 = vld [vmem:[%s340 + $0x138] sm:$0xf]
        %v816 = vld [vmem:[%s340 + $0x13c] sm:$0xf]
        %v817 = vld [vmem:[%s340 + $0x140] sm:$0xf]
        %v818 = vld [vmem:[%s340 + $0x144] sm:$0xf]
        %v819 = vld [vmem:[%s340 + $0x148] sm:$0xf]
        %v820 = vld [vmem:[%s340 + $0x14c] sm:$0xf]
        %v821 = vld [vmem:[%s340 + $0x150] sm:$0xf]
        %v822 = vld [vmem:[%s340 + $0x154] sm:$0xf]
        %v823 = vld [vmem:[%s340 + $0x158] sm:$0xf]
        %v824 = vld [vmem:[%s340 + $0x15c] sm:$0xf]
        %v825 = vld [vmem:[%s340 + $0x160] sm:$0xf]
        %v826 = vld [vmem:[%s340 + $0x164] sm:$0xf]
        %v827 = vld [vmem:[%s340 + $0x168] sm:$0xf]
        %v828 = vld [vmem:[%s340 + $0x16c] sm:$0xf]
        %v829 = vld [vmem:[%s340 + $0x170] sm:$0xf]
        %v830 = vld [vmem:[%s340 + $0x174] sm:$0xf]
        %v831 = vld [vmem:[%s340 + $0x178] sm:$0xf]
        %v832 = vld [vmem:[%s340 + $0x17c] sm:$0xf]
        %v833 = vld [vmem:[%s340 + $0x180] sm:$0xf]
        %v834 = vld [vmem:[%s340 + $0x184] sm:$0xf]
        %v835 = vld [vmem:[%s340 + $0x188] sm:$0xf]
        %v836 = vld [vmem:[%s340 + $0x18c] sm:$0xf]
        %v837 = vld [vmem:[%s340 + $0x190] sm:$0xf]
        %v838 = vld [vmem:[%s340 + $0x194] sm:$0xf]
        %v839 = vld [vmem:[%s340 + $0x198] sm:$0xf]
        %v840 = vld [vmem:[%s340 + $0x19c] sm:$0xf]
        %v841 = vld [vmem:[%s340 + $0x1a0] sm:$0xf]
        %v842 = vld [vmem:[%s340 + $0x1a4] sm:$0xf]
        %v843 = vld [vmem:[%s340 + $0x1a8] sm:$0xf]
        %v844 = vld [vmem:[%s340 + $0x1ac] sm:$0xf]
        %v845 = vld [vmem:[%s340 + $0x1b0] sm:$0xf]
        %v846 = vld [vmem:[%s340 + $0x1b4] sm:$0xf]
        %v847 = vld [vmem:[%s340 + $0x1b8] sm:$0xf]
        %v848 = vld [vmem:[%s340 + $0x1bc] sm:$0xf]
        %v849 = vld [vmem:[%s340 + $0x1c0] sm:$0xf]
        %v850 = vld [vmem:[%s340 + $0x1c4] sm:$0xf]
        %v851 = vld [vmem:[%s340 + $0x1c8] sm:$0xf]
        %v852 = vld [vmem:[%s340 + $0x1cc] sm:$0xf]
        %v853 = vld [vmem:[%s340 + $0x1d0] sm:$0xf]
        %v854 = vld [vmem:[%s340 + $0x1d4] sm:$0xf]
        %v855 = vld [vmem:[%s340 + $0x1d8] sm:$0xf]
        %v856 = vld [vmem:[%s340 + $0x1dc] sm:$0xf]
        %v857 = vld [vmem:[%s340 + $0x1e0] sm:$0xf]
        %v858 = vld [vmem:[%s340 + $0x1e4] sm:$0xf]
        %v859 = vld [vmem:[%s340 + $0x1e8] sm:$0xf]
        %v860 = vld [vmem:[%s340 + $0x1ec] sm:$0xf]
        %v861 = vld [vmem:[%s340 + $0x1f0] sm:$0xf]
        %v862 = vld [vmem:[%s340 + $0x1f4] sm:$0xf]
        %v863 = vld [vmem:[%s340 + $0x1f8] sm:$0xf]
        %v864 = vld [vmem:[%s340 + $0x1fc] sm:$0xf]
        %v865 = vld [vmem:[%s340 + $0x200] sm:$0xf]
        %v866 = vld [vmem:[%s340 + $0x204] sm:$0xf]
        %v867 = vld [vmem:[%s340 + $0x208] sm:$0xf]
        %v868 = vld [vmem:[%s340 + $0x20c] sm:$0xf]
        %v869 = vld [vmem:[%s340 + $0x210] sm:$0xf]
        %v870 = vld [vmem:[%s340 + $0x214] sm:$0xf]
        %v871 = vld [vmem:[%s340 + $0x218] sm:$0xf]
        %v872 = vld [vmem:[%s340 + $0x21c] sm:$0xf]
        %v873 = vld [vmem:[%s340 + $0x220] sm:$0xf]
        %v874 = vld [vmem:[%s340 + $0x224] sm:$0xf]
        %v875 = vld [vmem:[%s340 + $0x228] sm:$0xf]
        %v876 = vld [vmem:[%s340 + $0x22c] sm:$0xf]
        %v877 = vld [vmem:[%s340 + $0x230] sm:$0xf]
        %v878 = vld [vmem:[%s340 + $0x234] sm:$0xf]
        %v879 = vld [vmem:[%s340 + $0x238] sm:$0xf]
        %v880 = vld [vmem:[%s340 + $0x23c] sm:$0xf]
        %v881 = vld [vmem:[%s340 + $0x240] sm:$0xf]
        %v882 = vld [vmem:[%s340 + $0x244] sm:$0xf]
        %v883 = vld [vmem:[%s340 + $0x248] sm:$0xf]
        %v884 = vld [vmem:[%s340 + $0x24c] sm:$0xf]
        %v885 = vld [vmem:[%s340 + $0x250] sm:$0xf]
        %v886 = vld [vmem:[%s340 + $0x254] sm:$0xf]
        %v887 = vld [vmem:[%s340 + $0x258] sm:$0xf]
        %v888 = vld [vmem:[%s340 + $0x25c] sm:$0xf]
        %v889 = vld [vmem:[%s340 + $0x260] sm:$0xf]
        %v890 = vld [vmem:[%s340 + $0x264] sm:$0xf]
        %v891 = vld [vmem:[%s340 + $0x268] sm:$0xf]
        %v892 = vld [vmem:[%s340 + $0x26c] sm:$0xf]
        %v893 = vld [vmem:[%s340 + $0x270] sm:$0xf]
        %v894 = vld [vmem:[%s340 + $0x274] sm:$0xf]
        %v895 = vld [vmem:[%s340 + $0x278] sm:$0xf]
        %v896 = vld [vmem:[%s340 + $0x27c] sm:$0xf]
        %v897 = vld [vmem:[%s340 + $0x280] sm:$0xf]
        %v898 = vld [vmem:[%s340 + $0x284] sm:$0xf]
        %v899 = vld [vmem:[%s340 + $0x288] sm:$0xf]
        %v900 = vld [vmem:[%s340 + $0x28c] sm:$0xf]
        %v901 = vld [vmem:[%s340 + $0x290] sm:$0xf]
        %v902 = vld [vmem:[%s340 + $0x294] sm:$0xf]
        %v903 = vld [vmem:[%s340 + $0x298] sm:$0xf]
        %v904 = vld [vmem:[%s340 + $0x29c] sm:$0xf]
        %v905 = vld [vmem:[%s340 + $0x2a0] sm:$0xf]
        %v906 = vld [vmem:[%s340 + $0x2a4] sm:$0xf]
        %v907 = vld [vmem:[%s340 + $0x2a8] sm:$0xf]
        %v908 = vld [vmem:[%s340 + $0x2ac] sm:$0xf]
        %v909 = vld [vmem:[%s340 + $0x2b0] sm:$0xf]
        %v910 = vld [vmem:[%s340 + $0x2b4] sm:$0xf]
        %v911 = vld [vmem:[%s340 + $0x2b8] sm:$0xf]
        %v912 = vld [vmem:[%s340 + $0x2bc] sm:$0xf]
        %v913 = vld [vmem:[%s340 + $0x2c0] sm:$0xf]
        %v914 = vld [vmem:[%s340 + $0x2c4] sm:$0xf]
        %v915 = vld [vmem:[%s340 + $0x2c8] sm:$0xf]
        %v916 = vld [vmem:[%s340 + $0x2cc] sm:$0xf]
        %v917 = vld [vmem:[%s340 + $0x2d0] sm:$0xf]
        %v918 = vld [vmem:[%s340 + $0x2d4] sm:$0xf]
        %v919 = vld [vmem:[%s340 + $0x2d8] sm:$0xf]
        %v920 = vld [vmem:[%s340 + $0x2dc] sm:$0xf]
        %v921 = vld [vmem:[%s340 + $0x2e0] sm:$0xf]
        %v922 = vld [vmem:[%s340 + $0x2e4] sm:$0xf]
        %v923 = vld [vmem:[%s340 + $0x2e8] sm:$0xf]
        %v924 = vld [vmem:[%s340 + $0x2ec] sm:$0xf]
        %v925 = vld [vmem:[%s340 + $0x2f0] sm:$0xf]
        %v926 = vld [vmem:[%s340 + $0x2f4] sm:$0xf]
        %v927 = vld [vmem:[%s340 + $0x2f8] sm:$0xf]
        %v928 = vld [vmem:[%s340 + $0x2fc] sm:$0xf]
        %v929 = vld [vmem:[%s340 + $0x300] sm:$0xf]
        %v930 = vld [vmem:[%s340 + $0x304] sm:$0xf]
        %v931 = vld [vmem:[%s340 + $0x308] sm:$0xf]
        %v932 = vld [vmem:[%s340 + $0x30c] sm:$0xf]
        %v933 = vld [vmem:[%s340 + $0x310] sm:$0xf]
        %v934 = vld [vmem:[%s340 + $0x314] sm:$0xf]
        %v935 = vld [vmem:[%s340 + $0x318] sm:$0xf]
        %v936 = vld [vmem:[%s340 + $0x31c] sm:$0xf]
        %v937 = vld [vmem:[%s340 + $0x320] sm:$0xf]
        %v938 = vld [vmem:[%s340 + $0x324] sm:$0xf]
        %v939 = vld [vmem:[%s340 + $0x328] sm:$0xf]
        %v940 = vld [vmem:[%s340 + $0x32c] sm:$0xf]
        %v941 = vld [vmem:[%s340 + $0x330] sm:$0xf]
        %v942 = vld [vmem:[%s340 + $0x334] sm:$0xf]
        %v943 = vld [vmem:[%s340 + $0x338] sm:$0xf]
        %v944 = vld [vmem:[%s340 + $0x33c] sm:$0xf]
        %v945 = vld [vmem:[%s340 + $0x340] sm:$0xf]
        %v946 = vld [vmem:[%s340 + $0x344] sm:$0xf]
        %v947 = vld [vmem:[%s340 + $0x348] sm:$0xf]
        %v948 = vld [vmem:[%s340 + $0x34c] sm:$0xf]
        %v949 = vld [vmem:[%s340 + $0x350] sm:$0xf]
        %v950 = vld [vmem:[%s340 + $0x354] sm:$0xf]
        %v951 = vld [vmem:[%s340 + $0x358] sm:$0xf]
        %v952 = vld [vmem:[%s340 + $0x35c] sm:$0xf]
        %v953 = vld [vmem:[%s340 + $0x360] sm:$0xf]
        %v954 = vld [vmem:[%s340 + $0x364] sm:$0xf]
        %v955 = vld [vmem:[%s340 + $0x368] sm:$0xf]
        %v956 = vld [vmem:[%s340 + $0x36c] sm:$0xf]
        %v957 = vld [vmem:[%s340 + $0x370] sm:$0xf]
        %v958 = vld [vmem:[%s340 + $0x374] sm:$0xf]
        %v959 = vld [vmem:[%s340 + $0x378] sm:$0xf]
        %v960 = vld [vmem:[%s340 + $0x37c] sm:$0xf]
        %v961 = vld [vmem:[%s340 + $0x380] sm:$0xf]
        %v962 = vld [vmem:[%s340 + $0x384] sm:$0xf]
        %v963 = vld [vmem:[%s340 + $0x388] sm:$0xf]
        %v964 = vld [vmem:[%s340 + $0x38c] sm:$0xf]
        %v965 = vld [vmem:[%s340 + $0x390] sm:$0xf]
        %v966 = vld [vmem:[%s340 + $0x394] sm:$0xf]
        %v967 = vld [vmem:[%s340 + $0x398] sm:$0xf]
        %v968 = vld [vmem:[%s340 + $0x39c] sm:$0xf]
        %v969 = vld [vmem:[%s340 + $0x3a0] sm:$0xf]
        %v970 = vld [vmem:[%s340 + $0x3a4] sm:$0xf]
        %v971 = vld [vmem:[%s340 + $0x3a8] sm:$0xf]
        %v972 = vld [vmem:[%s340 + $0x3ac] sm:$0xf]
        %v973 = vld [vmem:[%s340 + $0x3b0] sm:$0xf]
        %v974 = vld [vmem:[%s340 + $0x3b4] sm:$0xf]
        %v975 = vld [vmem:[%s340 + $0x3b8] sm:$0xf]
        %v976 = vld [vmem:[%s340 + $0x3bc] sm:$0xf]
        %v977 = vld [vmem:[%s340 + $0x3c0] sm:$0xf]
        %v978 = vld [vmem:[%s340 + $0x3c4] sm:$0xf]
        %v979 = vld [vmem:[%s340 + $0x3c8] sm:$0xf]
        %v980 = vld [vmem:[%s340 + $0x3cc] sm:$0xf]
        %v981 = vld [vmem:[%s340 + $0x3d0] sm:$0xf]
        %v982 = vld [vmem:[%s340 + $0x3d4] sm:$0xf]
        %v983 = vld [vmem:[%s340 + $0x3d8] sm:$0xf]
        %v984 = vld [vmem:[%s340 + $0x3dc] sm:$0xf]
        %v985 = vld [vmem:[%s340 + $0x3e0] sm:$0xf]
        %v986 = vld [vmem:[%s340 + $0x3e4] sm:$0xf]
        %v987 = vld [vmem:[%s340 + $0x3e8] sm:$0xf]
        %v988 = vld [vmem:[%s340 + $0x3ec] sm:$0xf]
        %v989 = vld [vmem:[%s340 + $0x3f0] sm:$0xf]
        %v990 = vld [vmem:[%s340 + $0x3f4] sm:$0xf]
        %v991 = vld [vmem:[%s340 + $0x3f8] sm:$0xf]
        %v992 = vld [vmem:[%s340 + $0x3fc] sm:$0xf]
        %v993 = vld [vmem:[%s340 + $0x400] sm:$0xf]
        %v994 = vld [vmem:[%s340 + $0x404] sm:$0xf]
        %v995 = vld [vmem:[%s340 + $0x408] sm:$0xf]
        %v996 = vld [vmem:[%s340 + $0x40c] sm:$0xf]
        %v997 = vld [vmem:[%s340 + $0x410] sm:$0xf]
        %v998 = vld [vmem:[%s340 + $0x414] sm:$0xf]
        %v999 = vld [vmem:[%s340 + $0x418] sm:$0xf]
        %v1000 = vld [vmem:[%s340 + $0x41c] sm:$0xf]
        %v1001 = vld [vmem:[%s340 + $0x420] sm:$0xf]
        %v1002 = vld [vmem:[%s340 + $0x424] sm:$0xf]
        %v1003 = vld [vmem:[%s340 + $0x428] sm:$0xf]
        %v1004 = vld [vmem:[%s340 + $0x42c] sm:$0xf]
        %v1005 = vld [vmem:[%s340 + $0x430] sm:$0xf]
        %v1006 = vld [vmem:[%s340 + $0x434] sm:$0xf]
        %v1007 = vld [vmem:[%s340 + $0x438] sm:$0xf]
        %v1008 = vld [vmem:[%s340 + $0x43c] sm:$0xf]
        %v1009 = vld [vmem:[%s340 + $0x440] sm:$0xf]
        %v1010 = vld [vmem:[%s340 + $0x444] sm:$0xf]
        %v1011 = vld [vmem:[%s340 + $0x448] sm:$0xf]
        %v1012 = vld [vmem:[%s340 + $0x44c] sm:$0xf]
        %v1013 = vld [vmem:[%s340 + $0x450] sm:$0xf]
        %v1014 = vld [vmem:[%s340 + $0x454] sm:$0xf]
        %v1015 = vld [vmem:[%s340 + $0x458] sm:$0xf]
        %v1016 = vld [vmem:[%s340 + $0x45c] sm:$0xf]
        %v1017 = vld [vmem:[%s340 + $0x460] sm:$0xf]
        %v1018 = vld [vmem:[%s340 + $0x464] sm:$0xf]
        %v1019 = vld [vmem:[%s340 + $0x468] sm:$0xf]
        %v1020 = vld [vmem:[%s340 + $0x46c] sm:$0xf]
        %v1021 = vld [vmem:[%s340 + $0x470] sm:$0xf]
        %v1022 = vld [vmem:[%s340 + $0x474] sm:$0xf]
        %v1023 = vld [vmem:[%s340 + $0x478] sm:$0xf]
        %v1024 = vld [vmem:[%s340 + $0x47c] sm:$0xf]
        %v1025 = vld [vmem:[%s340 + $0x480] sm:$0xf]
        %v1026 = vld [vmem:[%s340 + $0x484] sm:$0xf]
        %v1027 = vld [vmem:[%s340 + $0x488] sm:$0xf]
        %v1028 = vld [vmem:[%s340 + $0x48c] sm:$0xf]
        %v1029 = vld [vmem:[%s340 + $0x490] sm:$0xf]
        %v1030 = vld [vmem:[%s340 + $0x494] sm:$0xf]
        %v1031 = vld [vmem:[%s340 + $0x498] sm:$0xf]
        %v1032 = vld [vmem:[%s340 + $0x49c] sm:$0xf]
        %v1033 = vld [vmem:[%s340 + $0x4a0] sm:$0xf]
        %v1034 = vld [vmem:[%s340 + $0x4a4] sm:$0xf]
        %v1035 = vld [vmem:[%s340 + $0x4a8] sm:$0xf]
        %v1036 = vld [vmem:[%s340 + $0x4ac] sm:$0xf]
        %v1037 = vld [vmem:[%s340 + $0x4b0] sm:$0xf]
        %v1038 = vld [vmem:[%s340 + $0x4b4] sm:$0xf]
        %v1039 = vld [vmem:[%s340 + $0x4b8] sm:$0xf]
        %v1040 = vld [vmem:[%s340 + $0x4bc] sm:$0xf]
        %v1041 = vld [vmem:[%s340 + $0x4c0] sm:$0xf]
        %v1042 = vld [vmem:[%s340 + $0x4c4] sm:$0xf]
        %v1043 = vld [vmem:[%s340 + $0x4c8] sm:$0xf]
        %v1044 = vld [vmem:[%s340 + $0x4cc] sm:$0xf]
        %v1045 = vld [vmem:[%s340 + $0x4d0] sm:$0xf]
        %v1046 = vld [vmem:[%s340 + $0x4d4] sm:$0xf]
        %v1047 = vld [vmem:[%s340 + $0x4d8] sm:$0xf]
        %v1048 = vld [vmem:[%s340 + $0x4dc] sm:$0xf]
        %v1049 = vld [vmem:[%s340 + $0x4e0] sm:$0xf]
        %v1050 = vld [vmem:[%s340 + $0x4e4] sm:$0xf]
        %v1051 = vld [vmem:[%s340 + $0x4e8] sm:$0xf]
        %v1052 = vld [vmem:[%s340 + $0x4ec] sm:$0xf]
        %v1053 = vld [vmem:[%s340 + $0x4f0] sm:$0xf]
        %v1054 = vld [vmem:[%s340 + $0x4f4] sm:$0xf]
        %v1055 = vld [vmem:[%s340 + $0x4f8] sm:$0xf]
        %v1056 = vld [vmem:[%s340 + $0x4fc] sm:$0xf]
        %v1057 = vld [vmem:[%s340 + $0x500] sm:$0xf]
        %v1058 = vld [vmem:[%s340 + $0x504] sm:$0xf]
        %v1059 = vld [vmem:[%s340 + $0x508] sm:$0xf]
        %v1060 = vld [vmem:[%s340 + $0x50c] sm:$0xf]
        %v1061 = vld [vmem:[%s340 + $0x510] sm:$0xf]
        %v1062 = vld [vmem:[%s340 + $0x514] sm:$0xf]
        %v1063 = vld [vmem:[%s340 + $0x518] sm:$0xf]
        %v1064 = vld [vmem:[%s340 + $0x51c] sm:$0xf]
        %v1065 = vld [vmem:[%s340 + $0x520] sm:$0xf]
        %v1066 = vld [vmem:[%s340 + $0x524] sm:$0xf]
        %v1067 = vld [vmem:[%s340 + $0x528] sm:$0xf]
        %v1068 = vld [vmem:[%s340 + $0x52c] sm:$0xf]
        %v1069 = vld [vmem:[%s340 + $0x530] sm:$0xf]
        %v1070 = vld [vmem:[%s340 + $0x534] sm:$0xf]
        %v1071 = vld [vmem:[%s340 + $0x538] sm:$0xf]
        %v1072 = vld [vmem:[%s340 + $0x53c] sm:$0xf]
        %v1073 = vld [vmem:[%s340 + $0x540] sm:$0xf]
        %v1074 = vld [vmem:[%s340 + $0x544] sm:$0xf]
        %v1075 = vld [vmem:[%s340 + $0x548] sm:$0xf]
        %v1076 = vld [vmem:[%s340 + $0x54c] sm:$0xf]
        %v1077 = vld [vmem:[%s340 + $0x550] sm:$0xf]
        %v1078 = vld [vmem:[%s340 + $0x554] sm:$0xf]
        %v1079 = vld [vmem:[%s340 + $0x558] sm:$0xf]
        %v1080 = vld [vmem:[%s340 + $0x55c] sm:$0xf]
        %v1081 = vld [vmem:[%s340 + $0x560] sm:$0xf]
        %v1082 = vld [vmem:[%s340 + $0x564] sm:$0xf]
        %v1083 = vld [vmem:[%s340 + $0x568] sm:$0xf]
        %v1084 = vld [vmem:[%s340 + $0x56c] sm:$0xf]
        %v1085 = vld [vmem:[%s340 + $0x570] sm:$0xf]
        %v1086 = vld [vmem:[%s340 + $0x574] sm:$0xf]
        %v1087 = vld [vmem:[%s340 + $0x578] sm:$0xf]
        %v1088 = vld [vmem:[%s340 + $0x57c] sm:$0xf]
        %v1089 = vld [vmem:[%s340 + $0x580] sm:$0xf]
        %v1090 = vld [vmem:[%s340 + $0x584] sm:$0xf]
        %v1091 = vld [vmem:[%s340 + $0x588] sm:$0xf]
        %v1092 = vld [vmem:[%s340 + $0x58c] sm:$0xf]
        %v1093 = vld [vmem:[%s340 + $0x590] sm:$0xf]
        %v1094 = vld [vmem:[%s340 + $0x594] sm:$0xf]
        %v1095 = vld [vmem:[%s340 + $0x598] sm:$0xf]
        %v1096 = vld [vmem:[%s340 + $0x59c] sm:$0xf]
        %v1097 = vld [vmem:[%s340 + $0x5a0] sm:$0xf]
        %v1098 = vld [vmem:[%s340 + $0x5a4] sm:$0xf]
        %v1099 = vld [vmem:[%s340 + $0x5a8] sm:$0xf]
        %v1100 = vld [vmem:[%s340 + $0x5ac] sm:$0xf]
        %v1101 = vld [vmem:[%s340 + $0x5b0] sm:$0xf]
        %v1102 = vld [vmem:[%s340 + $0x5b4] sm:$0xf]
        %v1103 = vld [vmem:[%s340 + $0x5b8] sm:$0xf]
        %v1104 = vld [vmem:[%s340 + $0x5bc] sm:$0xf]
        %v1105 = vld [vmem:[%s340 + $0x5c0] sm:$0xf]
        %v1106 = vld [vmem:[%s340 + $0x5c4] sm:$0xf]
        %v1107 = vld [vmem:[%s340 + $0x5c8] sm:$0xf]
        %v1108 = vld [vmem:[%s340 + $0x5cc] sm:$0xf]
        %v1109 = vld [vmem:[%s340 + $0x5d0] sm:$0xf]
        %v1110 = vld [vmem:[%s340 + $0x5d4] sm:$0xf]
        %v1111 = vld [vmem:[%s340 + $0x5d8] sm:$0xf]
        %v1112 = vld [vmem:[%s340 + $0x5dc] sm:$0xf]
        %v1113 = vld [vmem:[%s340 + $0x5e0] sm:$0xf]
        %v1114 = vld [vmem:[%s340 + $0x5e4] sm:$0xf]
        %v1115 = vld [vmem:[%s340 + $0x5e8] sm:$0xf]
        %v1116 = vld [vmem:[%s340 + $0x5ec] sm:$0xf]
        %v1117 = vld [vmem:[%s340 + $0x5f0] sm:$0xf]
        %v1118 = vld [vmem:[%s340 + $0x5f4] sm:$0xf]
        %v1119 = vld [vmem:[%s340 + $0x5f8] sm:$0xf]
        %v1120 = vld [vmem:[%s340 + $0x5fc] sm:$0xf]
        %v1121 = vld [vmem:[%s340 + $0x600] sm:$0xf]
        %v1122 = vld [vmem:[%s340 + $0x604] sm:$0xf]
        %v1123 = vld [vmem:[%s340 + $0x608] sm:$0xf]
        %v1124 = vld [vmem:[%s340 + $0x60c] sm:$0xf]
        %v1125 = vld [vmem:[%s340 + $0x610] sm:$0xf]
        %v1126 = vld [vmem:[%s340 + $0x614] sm:$0xf]
        %v1127 = vld [vmem:[%s340 + $0x618] sm:$0xf]
        %v1128 = vld [vmem:[%s340 + $0x61c] sm:$0xf]
        %v1129 = vld [vmem:[%s340 + $0x620] sm:$0xf]
        %v1130 = vld [vmem:[%s340 + $0x624] sm:$0xf]
        %v1131 = vld [vmem:[%s340 + $0x628] sm:$0xf]
        %v1132 = vld [vmem:[%s340 + $0x62c] sm:$0xf]
        %v1133 = vld [vmem:[%s340 + $0x630] sm:$0xf]
        %v1134 = vld [vmem:[%s340 + $0x634] sm:$0xf]
        %v1135 = vld [vmem:[%s340 + $0x638] sm:$0xf]
        %v1136 = vld [vmem:[%s340 + $0x63c] sm:$0xf]
        %v1137 = vld [vmem:[%s340 + $0x640] sm:$0xf]
        %v1138 = vld [vmem:[%s340 + $0x644] sm:$0xf]
        %v1139 = vld [vmem:[%s340 + $0x648] sm:$0xf]
        %v1140 = vld [vmem:[%s340 + $0x64c] sm:$0xf]
        %v1141 = vld [vmem:[%s340 + $0x650] sm:$0xf]
        %v1142 = vld [vmem:[%s340 + $0x654] sm:$0xf]
        %v1143 = vld [vmem:[%s340 + $0x658] sm:$0xf]
        %v1144 = vld [vmem:[%s340 + $0x65c] sm:$0xf]
        %v1145 = vld [vmem:[%s340 + $0x660] sm:$0xf]
        %v1146 = vld [vmem:[%s340 + $0x664] sm:$0xf]
        %v1147 = vld [vmem:[%s340 + $0x668] sm:$0xf]
        %v1148 = vld [vmem:[%s340 + $0x66c] sm:$0xf]
        %v1149 = vld [vmem:[%s340 + $0x670] sm:$0xf]
        %v1150 = vld [vmem:[%s340 + $0x674] sm:$0xf]
        %v1151 = vld [vmem:[%s340 + $0x678] sm:$0xf]
        %v1152 = vld [vmem:[%s340 + $0x67c] sm:$0xf]
        %v1153 = vld [vmem:[%s340 + $0x680] sm:$0xf]
        %v1154 = vld [vmem:[%s340 + $0x684] sm:$0xf]
        %v1155 = vld [vmem:[%s340 + $0x688] sm:$0xf]
        %v1156 = vld [vmem:[%s340 + $0x68c] sm:$0xf]
        %v1157 = vld [vmem:[%s340 + $0x690] sm:$0xf]
        %v1158 = vld [vmem:[%s340 + $0x694] sm:$0xf]
        %v1159 = vld [vmem:[%s340 + $0x698] sm:$0xf]
        %v1160 = vld [vmem:[%s340 + $0x69c] sm:$0xf]
        %v1161 = vld [vmem:[%s340 + $0x6a0] sm:$0xf]
        %v1162 = vld [vmem:[%s340 + $0x6a4] sm:$0xf]
        %v1163 = vld [vmem:[%s340 + $0x6a8] sm:$0xf]
        %v1164 = vld [vmem:[%s340 + $0x6ac] sm:$0xf]
        %v1165 = vld [vmem:[%s340 + $0x6b0] sm:$0xf]
        %v1166 = vld [vmem:[%s340 + $0x6b4] sm:$0xf]
        %v1167 = vld [vmem:[%s340 + $0x6b8] sm:$0xf]
        %v1168 = vld [vmem:[%s340 + $0x6bc] sm:$0xf]
        %v1169 = vld [vmem:[%s340 + $0x6c0] sm:$0xf]
        %v1170 = vld [vmem:[%s340 + $0x6c4] sm:$0xf]
        %v1171 = vld [vmem:[%s340 + $0x6c8] sm:$0xf]
        %v1172 = vld [vmem:[%s340 + $0x6cc] sm:$0xf]
        %v1173 = vld [vmem:[%s340 + $0x6d0] sm:$0xf]
        %v1174 = vld [vmem:[%s340 + $0x6d4] sm:$0xf]
        %v1175 = vld [vmem:[%s340 + $0x6d8] sm:$0xf]
        %v1176 = vld [vmem:[%s340 + $0x6dc] sm:$0xf]
        %v1177 = vld [vmem:[%s340 + $0x6e0] sm:$0xf]
        %v1178 = vld [vmem:[%s340 + $0x6e4] sm:$0xf]
        %v1179 = vld [vmem:[%s340 + $0x6e8] sm:$0xf]
        %v1180 = vld [vmem:[%s340 + $0x6ec] sm:$0xf]
        %v1181 = vld [vmem:[%s340 + $0x6f0] sm:$0xf]
        %v1182 = vld [vmem:[%s340 + $0x6f4] sm:$0xf]
        %v1183 = vld [vmem:[%s340 + $0x6f8] sm:$0xf]
        %v1184 = vld [vmem:[%s340 + $0x6fc] sm:$0xf]
        %v1185 = vld [vmem:[%s340 + $0x700] sm:$0xf]
        %v1186 = vld [vmem:[%s340 + $0x704] sm:$0xf]
        %v1187 = vld [vmem:[%s340 + $0x708] sm:$0xf]
        %v1188 = vld [vmem:[%s340 + $0x70c] sm:$0xf]
        %v1189 = vld [vmem:[%s340 + $0x710] sm:$0xf]
        %v1190 = vld [vmem:[%s340 + $0x714] sm:$0xf]
        %v1191 = vld [vmem:[%s340 + $0x718] sm:$0xf]
        %v1192 = vld [vmem:[%s340 + $0x71c] sm:$0xf]
        %v1193 = vld [vmem:[%s340 + $0x720] sm:$0xf]
        %v1194 = vld [vmem:[%s340 + $0x724] sm:$0xf]
        %v1195 = vld [vmem:[%s340 + $0x728] sm:$0xf]
        %v1196 = vld [vmem:[%s340 + $0x72c] sm:$0xf]
        %v1197 = vld [vmem:[%s340 + $0x730] sm:$0xf]
        %v1198 = vld [vmem:[%s340 + $0x734] sm:$0xf]
        %v1199 = vld [vmem:[%s340 + $0x738] sm:$0xf]
        %v1200 = vld [vmem:[%s340 + $0x73c] sm:$0xf]
        %v1201 = vld [vmem:[%s340 + $0x740] sm:$0xf]
        %v1202 = vld [vmem:[%s340 + $0x744] sm:$0xf]
        %v1203 = vld [vmem:[%s340 + $0x748] sm:$0xf]
        %v1204 = vld [vmem:[%s340 + $0x74c] sm:$0xf]
        %v1205 = vld [vmem:[%s340 + $0x750] sm:$0xf]
        %v1206 = vld [vmem:[%s340 + $0x754] sm:$0xf]
        %v1207 = vld [vmem:[%s340 + $0x758] sm:$0xf]
        %v1208 = vld [vmem:[%s340 + $0x75c] sm:$0xf]
        %v1209 = vld [vmem:[%s340 + $0x760] sm:$0xf]
        %v1210 = vld [vmem:[%s340 + $0x764] sm:$0xf]
        %v1211 = vld [vmem:[%s340 + $0x768] sm:$0xf]
        %v1212 = vld [vmem:[%s340 + $0x76c] sm:$0xf]
        %v1213 = vld [vmem:[%s340 + $0x770] sm:$0xf]
        %v1214 = vld [vmem:[%s340 + $0x774] sm:$0xf]
        %v1215 = vld [vmem:[%s340 + $0x778] sm:$0xf]
        %v1216 = vld [vmem:[%s340 + $0x77c] sm:$0xf]
        %v1217 = vld [vmem:[%s340 + $0x780] sm:$0xf]
        %v1218 = vld [vmem:[%s340 + $0x784] sm:$0xf]
        %v1219 = vld [vmem:[%s340 + $0x788] sm:$0xf]
        %v1220 = vld [vmem:[%s340 + $0x78c] sm:$0xf]
        %v1221 = vld [vmem:[%s340 + $0x790] sm:$0xf]
        %v1222 = vld [vmem:[%s340 + $0x794] sm:$0xf]
        %v1223 = vld [vmem:[%s340 + $0x798] sm:$0xf]
        %v1224 = vld [vmem:[%s340 + $0x79c] sm:$0xf]
        %v1225 = vld [vmem:[%s340 + $0x7a0] sm:$0xf]
        %v1226 = vld [vmem:[%s340 + $0x7a4] sm:$0xf]
        %v1227 = vld [vmem:[%s340 + $0x7a8] sm:$0xf]
        %v1228 = vld [vmem:[%s340 + $0x7ac] sm:$0xf]
        %v1229 = vld [vmem:[%s340 + $0x7b0] sm:$0xf]
        %v1230 = vld [vmem:[%s340 + $0x7b4] sm:$0xf]
        %v1231 = vld [vmem:[%s340 + $0x7b8] sm:$0xf]
        %v1232 = vld [vmem:[%s340 + $0x7bc] sm:$0xf]
        %v1233 = vld [vmem:[%s340 + $0x7c0] sm:$0xf]
        %v1234 = vld [vmem:[%s340 + $0x7c4] sm:$0xf]
        %v1235 = vld [vmem:[%s340 + $0x7c8] sm:$0xf]
        %v1236 = vld [vmem:[%s340 + $0x7cc] sm:$0xf]
        %v1237 = vld [vmem:[%s340 + $0x7d0] sm:$0xf]
        %v1238 = vld [vmem:[%s340 + $0x7d4] sm:$0xf]
        %v1239 = vld [vmem:[%s340 + $0x7d8] sm:$0xf]
        %v1240 = vld [vmem:[%s340 + $0x7dc] sm:$0xf]
        %v1241 = vld [vmem:[%s340 + $0x7e0] sm:$0xf]
        %v1242 = vld [vmem:[%s340 + $0x7e4] sm:$0xf]
        %v1243 = vld [vmem:[%s340 + $0x7e8] sm:$0xf]
        %v1244 = vld [vmem:[%s340 + $0x7ec] sm:$0xf]
        %v1245 = vld [vmem:[%s340 + $0x7f0] sm:$0xf]
        %v1246 = vld [vmem:[%s340 + $0x7f4] sm:$0xf]
        %v1247 = vld [vmem:[%s340 + $0x7f8] sm:$0xf]
        %v1248 = vld [vmem:[%s340 + $0x7fc] sm:$0xf]
        %v1249 = vld [vmem:[%s340 + $0x800] sm:$0xf]
        %v1250 = vld [vmem:[%s340 + $0x804] sm:$0xf]
        %v1251 = vld [vmem:[%s340 + $0x808] sm:$0xf]
        %v1252 = vld [vmem:[%s340 + $0x80c] sm:$0xf]
        %v1253 = vld [vmem:[%s340 + $0x810] sm:$0xf]
        %v1254 = vld [vmem:[%s340 + $0x814] sm:$0xf]
        %v1255 = vld [vmem:[%s340 + $0x818] sm:$0xf]
        %v1256 = vld [vmem:[%s340 + $0x81c] sm:$0xf]
        %v1257 = vld [vmem:[%s340 + $0x820] sm:$0xf]
        %v1258 = vld [vmem:[%s340 + $0x824] sm:$0xf]
        %v1259 = vld [vmem:[%s340 + $0x828] sm:$0xf]
        %v1260 = vld [vmem:[%s340 + $0x82c] sm:$0xf]
        %v1261 = vld [vmem:[%s340 + $0x830] sm:$0xf]
        %v1262 = vld [vmem:[%s340 + $0x834] sm:$0xf]
        %v1263 = vld [vmem:[%s340 + $0x838] sm:$0xf]
        %v1264 = vld [vmem:[%s340 + $0x83c] sm:$0xf]
        %v1265 = vld [vmem:[%s340 + $0x840] sm:$0xf]
        %v1266 = vld [vmem:[%s340 + $0x844] sm:$0xf]
        %v1267 = vld [vmem:[%s340 + $0x848] sm:$0xf]
        %v1268 = vld [vmem:[%s340 + $0x84c] sm:$0xf]
        %v1269 = vld [vmem:[%s340 + $0x850] sm:$0xf]
        %v1270 = vld [vmem:[%s340 + $0x854] sm:$0xf]
        %v1271 = vld [vmem:[%s340 + $0x858] sm:$0xf]
        %v1272 = vld [vmem:[%s340 + $0x85c] sm:$0xf]
        %v1273 = vld [vmem:[%s340 + $0x860] sm:$0xf]
        %v1274 = vld [vmem:[%s340 + $0x864] sm:$0xf]
        %v1275 = vld [vmem:[%s340 + $0x868] sm:$0xf]
        %v1276 = vld [vmem:[%s340 + $0x86c] sm:$0xf]
        %v1277 = vld [vmem:[%s340 + $0x870] sm:$0xf]
        %v1278 = vld [vmem:[%s340 + $0x874] sm:$0xf]
        %v1279 = vld [vmem:[%s340 + $0x878] sm:$0xf]
        %v1280 = vld [vmem:[%s340 + $0x87c] sm:$0xf]
        %v1281 = vld [vmem:[%s340 + $0x880] sm:$0xf]
        %v1282 = vld [vmem:[%s340 + $0x884] sm:$0xf]
        %v1283 = vld [vmem:[%s340 + $0x888] sm:$0xf]
        %v1284 = vld [vmem:[%s340 + $0x88c] sm:$0xf]
        %v1285 = vld [vmem:[%s340 + $0x890] sm:$0xf]
        %v1286 = vld [vmem:[%s340 + $0x894] sm:$0xf]
        %v1287 = vld [vmem:[%s340 + $0x898] sm:$0xf]
        %v1288 = vld [vmem:[%s340 + $0x89c] sm:$0xf]
        %v1289 = vld [vmem:[%s340 + $0x8a0] sm:$0xf]
        %v1290 = vld [vmem:[%s340 + $0x8a4] sm:$0xf]
        %v1291 = vld [vmem:[%s340 + $0x8a8] sm:$0xf]
        %v1292 = vld [vmem:[%s340 + $0x8ac] sm:$0xf]
        %v1293 = vld [vmem:[%s340 + $0x8b0] sm:$0xf]
        %v1294 = vld [vmem:[%s340 + $0x8b4] sm:$0xf]
        %v1295 = vld [vmem:[%s340 + $0x8b8] sm:$0xf]
        %v1296 = vld [vmem:[%s340 + $0x8bc] sm:$0xf]
        %v1297 = vld [vmem:[%s340 + $0x8c0] sm:$0xf]
        %v1298 = vld [vmem:[%s340 + $0x8c4] sm:$0xf]
        %v1299 = vld [vmem:[%s340 + $0x8c8] sm:$0xf]
        %v1300 = vld [vmem:[%s340 + $0x8cc] sm:$0xf]
        %v1301 = vld [vmem:[%s340 + $0x8d0] sm:$0xf]
        %v1302 = vld [vmem:[%s340 + $0x8d4] sm:$0xf]
        %v1303 = vld [vmem:[%s340 + $0x8d8] sm:$0xf]
        %v1304 = vld [vmem:[%s340 + $0x8dc] sm:$0xf]
        %v1305 = vld [vmem:[%s340 + $0x8e0] sm:$0xf]
        %v1306 = vld [vmem:[%s340 + $0x8e4] sm:$0xf]
        %v1307 = vld [vmem:[%s340 + $0x8e8] sm:$0xf]
        %v1308 = vld [vmem:[%s340 + $0x8ec] sm:$0xf]
        %v1309 = vld [vmem:[%s340 + $0x8f0] sm:$0xf]
        %v1310 = vld [vmem:[%s340 + $0x8f4] sm:$0xf]
        %v1311 = vld [vmem:[%s340 + $0x8f8] sm:$0xf]
        %v1312 = vld [vmem:[%s340 + $0x8fc] sm:$0xf]
        %v1313 = vld [vmem:[%s340 + $0x900] sm:$0xf]
        %v1314 = vld [vmem:[%s340 + $0x904] sm:$0xf]
        %v1315 = vld [vmem:[%s340 + $0x908] sm:$0xf]
        %v1316 = vld [vmem:[%s340 + $0x90c] sm:$0xf]
        %v1317 = vld [vmem:[%s340 + $0x910] sm:$0xf]
        %v1318 = vld [vmem:[%s340 + $0x914] sm:$0xf]
        %v1319 = vld [vmem:[%s340 + $0x918] sm:$0xf]
        %v1320 = vld [vmem:[%s340 + $0x91c] sm:$0xf]
        %v1321 = vld [vmem:[%s340 + $0x920] sm:$0xf]
        %v1322 = vld [vmem:[%s340 + $0x924] sm:$0xf]
        %v1323 = vld [vmem:[%s340 + $0x928] sm:$0xf]
        %v1324 = vld [vmem:[%s340 + $0x92c] sm:$0xf]
        %v1325 = vld [vmem:[%s340 + $0x930] sm:$0xf]
        %v1326 = vld [vmem:[%s340 + $0x934] sm:$0xf]
        %v1327 = vld [vmem:[%s340 + $0x938] sm:$0xf]
        %v1328 = vld [vmem:[%s340 + $0x93c] sm:$0xf]
        %v1329 = vld [vmem:[%s340 + $0x940] sm:$0xf]
        %v1330 = vld [vmem:[%s340 + $0x944] sm:$0xf]
        %v1331 = vld [vmem:[%s340 + $0x948] sm:$0xf]
        %v1332 = vld [vmem:[%s340 + $0x94c] sm:$0xf]
        %v1333 = vld [vmem:[%s340 + $0x950] sm:$0xf]
        %v1334 = vld [vmem:[%s340 + $0x954] sm:$0xf]
        %v1335 = vld [vmem:[%s340 + $0x958] sm:$0xf]
        %v1336 = vld [vmem:[%s340 + $0x95c] sm:$0xf]
        %v1337 = vld [vmem:[%s340 + $0x960] sm:$0xf]
        %v1338 = vld [vmem:[%s340 + $0x964] sm:$0xf]
        %v1339 = vld [vmem:[%s340 + $0x968] sm:$0xf]
        %v1340 = vld [vmem:[%s340 + $0x96c] sm:$0xf]
        %v1341 = vld [vmem:[%s340 + $0x970] sm:$0xf]
        %v1342 = vld [vmem:[%s340 + $0x974] sm:$0xf]
        %v1343 = vld [vmem:[%s340 + $0x978] sm:$0xf]
        %v1344 = vld [vmem:[%s340 + $0x97c] sm:$0xf]
        %v1345 = vld [vmem:[%s340 + $0x980] sm:$0xf]
        %v1346 = vld [vmem:[%s340 + $0x984] sm:$0xf]
        %v1347 = vld [vmem:[%s340 + $0x988] sm:$0xf]
        %v1348 = vld [vmem:[%s340 + $0x98c] sm:$0xf]
        %v1349 = vld [vmem:[%s340 + $0x990] sm:$0xf]
        %v1350 = vld [vmem:[%s340 + $0x994] sm:$0xf]
        %v1351 = vld [vmem:[%s340 + $0x998] sm:$0xf]
        %v1352 = vld [vmem:[%s340 + $0x99c] sm:$0xf]
        %v1353 = vld [vmem:[%s340 + $0x9a0] sm:$0xf]
        %v1354 = vld [vmem:[%s340 + $0x9a4] sm:$0xf]
        %v1355 = vld [vmem:[%s340 + $0x9a8] sm:$0xf]
        %v1356 = vld [vmem:[%s340 + $0x9ac] sm:$0xf]
        %v1357 = vld [vmem:[%s340 + $0x9b0] sm:$0xf]
        %v1358 = vld [vmem:[%s340 + $0x9b4] sm:$0xf]
        %v1359 = vld [vmem:[%s340 + $0x9b8] sm:$0xf]
        %v1360 = vld [vmem:[%s340 + $0x9bc] sm:$0xf]
        %v1361 = vld [vmem:[%s340 + $0x9c0] sm:$0xf]
        %v1362 = vld [vmem:[%s340 + $0x9c4] sm:$0xf]
        %v1363 = vld [vmem:[%s340 + $0x9c8] sm:$0xf]
        %v1364 = vld [vmem:[%s340 + $0x9cc] sm:$0xf]
        %v1365 = vld [vmem:[%s340 + $0x9d0] sm:$0xf]
        %v1366 = vld [vmem:[%s340 + $0x9d4] sm:$0xf]
        %v1367 = vld [vmem:[%s340 + $0x9d8] sm:$0xf]
        %v1368 = vld [vmem:[%s340 + $0x9dc] sm:$0xf]
        %v1369 = vld [vmem:[%s340 + $0x9e0] sm:$0xf]
        %v1370 = vld [vmem:[%s340 + $0x9e4] sm:$0xf]
        %v1371 = vld [vmem:[%s340 + $0x9e8] sm:$0xf]
        %v1372 = vld [vmem:[%s340 + $0x9ec] sm:$0xf]
        %v1373 = vld [vmem:[%s340 + $0x9f0] sm:$0xf]
        %v1374 = vld [vmem:[%s340 + $0x9f4] sm:$0xf]
        %v1375 = vld [vmem:[%s340 + $0x9f8] sm:$0xf]
        %v1376 = vld [vmem:[%s340 + $0x9fc] sm:$0xf]
        %v1377 = vld [vmem:[%s340 + $0xa00] sm:$0xf]
        %v1378 = vld [vmem:[%s340 + $0xa04] sm:$0xf]
        %v1379 = vld [vmem:[%s340 + $0xa08] sm:$0xf]
        %v1380 = vld [vmem:[%s340 + $0xa0c] sm:$0xf]
        %v1381 = vld [vmem:[%s340 + $0xa10] sm:$0xf]
        %v1382 = vld [vmem:[%s340 + $0xa14] sm:$0xf]
        %v1383 = vld [vmem:[%s340 + $0xa18] sm:$0xf]
        %v1384 = vld [vmem:[%s340 + $0xa1c] sm:$0xf]
        %v1385 = vld [vmem:[%s340 + $0xa20] sm:$0xf]
        %v1386 = vld [vmem:[%s340 + $0xa24] sm:$0xf]
        %v1387 = vld [vmem:[%s340 + $0xa28] sm:$0xf]
        %v1388 = vld [vmem:[%s340 + $0xa2c] sm:$0xf]
        %v1389 = vld [vmem:[%s340 + $0xa30] sm:$0xf]
        %v1390 = vld [vmem:[%s340 + $0xa34] sm:$0xf]
        %v1391 = vld [vmem:[%s340 + $0xa38] sm:$0xf]
        %v1392 = vld [vmem:[%s340 + $0xa3c] sm:$0xf]
        %v1393 = vld [vmem:[%s340 + $0xa40] sm:$0xf]
        %v1394 = vld [vmem:[%s340 + $0xa44] sm:$0xf]
        %v1395 = vld [vmem:[%s340 + $0xa48] sm:$0xf]
        %v1396 = vld [vmem:[%s340 + $0xa4c] sm:$0xf]
        %v1397 = vld [vmem:[%s340 + $0xa50] sm:$0xf]
        %v1398 = vld [vmem:[%s340 + $0xa54] sm:$0xf]
        %v1399 = vld [vmem:[%s340 + $0xa58] sm:$0xf]
        %v1400 = vld [vmem:[%s340 + $0xa5c] sm:$0xf]
        %v1401 = vld [vmem:[%s340 + $0xa60] sm:$0xf]
        %v1402 = vld [vmem:[%s340 + $0xa64] sm:$0xf]
        %v1403 = vld [vmem:[%s340 + $0xa68] sm:$0xf]
        %v1404 = vld [vmem:[%s340 + $0xa6c] sm:$0xf]
        %v1405 = vld [vmem:[%s340 + $0xa70] sm:$0xf]
        %v1406 = vld [vmem:[%s340 + $0xa74] sm:$0xf]
        %v1407 = vld [vmem:[%s340 + $0xa78] sm:$0xf]
        %v1408 = vld [vmem:[%s340 + $0xa7c] sm:$0xf]
        %v1409 = vld [vmem:[%s340 + $0xa80] sm:$0xf]
        %v1410 = vld [vmem:[%s340 + $0xa84] sm:$0xf]
        %v1411 = vld [vmem:[%s340 + $0xa88] sm:$0xf]
        %v1412 = vld [vmem:[%s340 + $0xa8c] sm:$0xf]
        %v1413 = vld [vmem:[%s340 + $0xa90] sm:$0xf]
        %v1414 = vld [vmem:[%s340 + $0xa94] sm:$0xf]
        %v1415 = vld [vmem:[%s340 + $0xa98] sm:$0xf]
        %v1416 = vld [vmem:[%s340 + $0xa9c] sm:$0xf]
        %v1417 = vld [vmem:[%s340 + $0xaa0] sm:$0xf]
        %v1418 = vld [vmem:[%s340 + $0xaa4] sm:$0xf]
        %v1419 = vld [vmem:[%s340 + $0xaa8] sm:$0xf]
        %v1420 = vld [vmem:[%s340 + $0xaac] sm:$0xf]
        %v1421 = vld [vmem:[%s340 + $0xab0] sm:$0xf]
        %v1422 = vld [vmem:[%s340 + $0xab4] sm:$0xf]
        %v1423 = vld [vmem:[%s340 + $0xab8] sm:$0xf]
        %v1424 = vld [vmem:[%s340 + $0xabc] sm:$0xf]
        %v1425 = vld [vmem:[%s340 + $0xac0] sm:$0xf]
        %v1426 = vld [vmem:[%s340 + $0xac4] sm:$0xf]
        %v1427 = vld [vmem:[%s340 + $0xac8] sm:$0xf]
        %v1428 = vld [vmem:[%s340 + $0xacc] sm:$0xf]
        %v1429 = vld [vmem:[%s340 + $0xad0] sm:$0xf]
        %v1430 = vld [vmem:[%s340 + $0xad4] sm:$0xf]
        %v1431 = vld [vmem:[%s340 + $0xad8] sm:$0xf]
        %v1432 = vld [vmem:[%s340 + $0xadc] sm:$0xf]
        %v1433 = vld [vmem:[%s340 + $0xae0] sm:$0xf]
        %v1434 = vld [vmem:[%s340 + $0xae4] sm:$0xf]
        %v1435 = vld [vmem:[%s340 + $0xae8] sm:$0xf]
        %v1436 = vld [vmem:[%s340 + $0xaec] sm:$0xf]
        %v1437 = vld [vmem:[%s340 + $0xaf0] sm:$0xf]
        %v1438 = vld [vmem:[%s340 + $0xaf4] sm:$0xf]
        %v1439 = vld [vmem:[%s340 + $0xaf8] sm:$0xf]
        %v1440 = vld [vmem:[%s340 + $0xafc] sm:$0xf]
        %v1441 = vld [vmem:[%s340 + $0xb00] sm:$0xf]
        %v1442 = vld [vmem:[%s340 + $0xb04] sm:$0xf]
        %v1443 = vld [vmem:[%s340 + $0xb08] sm:$0xf]
        %v1444 = vld [vmem:[%s340 + $0xb0c] sm:$0xf]
        %v1445 = vld [vmem:[%s340 + $0xb10] sm:$0xf]
        %v1446 = vld [vmem:[%s340 + $0xb14] sm:$0xf]
        %v1447 = vld [vmem:[%s340 + $0xb18] sm:$0xf]
        %v1448 = vld [vmem:[%s340 + $0xb1c] sm:$0xf]
        %v1449 = vld [vmem:[%s340 + $0xb20] sm:$0xf]
        %v1450 = vld [vmem:[%s340 + $0xb24] sm:$0xf]
        %v1451 = vld [vmem:[%s340 + $0xb28] sm:$0xf]
        %v1452 = vld [vmem:[%s340 + $0xb2c] sm:$0xf]
        %v1453 = vld [vmem:[%s340 + $0xb30] sm:$0xf]
        %v1454 = vld [vmem:[%s340 + $0xb34] sm:$0xf]
        %v1455 = vld [vmem:[%s340 + $0xb38] sm:$0xf]
        %v1456 = vld [vmem:[%s340 + $0xb3c] sm:$0xf]
        %v1457 = vld [vmem:[%s340 + $0xb40] sm:$0xf]
        %v1458 = vld [vmem:[%s340 + $0xb44] sm:$0xf]
        %v1459 = vld [vmem:[%s340 + $0xb48] sm:$0xf]
        %v1460 = vld [vmem:[%s340 + $0xb4c] sm:$0xf]
        %v1461 = vld [vmem:[%s340 + $0xb50] sm:$0xf]
        %v1462 = vld [vmem:[%s340 + $0xb54] sm:$0xf]
        %v1463 = vld [vmem:[%s340 + $0xb58] sm:$0xf]
        %v1464 = vld [vmem:[%s340 + $0xb5c] sm:$0xf]
        %v1465 = vld [vmem:[%s340 + $0xb60] sm:$0xf]
        %v1466 = vld [vmem:[%s340 + $0xb64] sm:$0xf]
        %v1467 = vld [vmem:[%s340 + $0xb68] sm:$0xf]
        %v1468 = vld [vmem:[%s340 + $0xb6c] sm:$0xf]
        %v1469 = vld [vmem:[%s340 + $0xb70] sm:$0xf]
        %v1470 = vld [vmem:[%s340 + $0xb74] sm:$0xf]
        %v1471 = vld [vmem:[%s340 + $0xb78] sm:$0xf]
        %v1472 = vld [vmem:[%s340 + $0xb7c] sm:$0xf]
        %v1473 = vld [vmem:[%s340 + $0xb80] sm:$0xf]
        %v1474 = vld [vmem:[%s340 + $0xb84] sm:$0xf]
        %v1475 = vld [vmem:[%s340 + $0xb88] sm:$0xf]
        %v1476 = vld [vmem:[%s340 + $0xb8c] sm:$0xf]
        %v1477 = vld [vmem:[%s340 + $0xb90] sm:$0xf]
        %v1478 = vld [vmem:[%s340 + $0xb94] sm:$0xf]
        %v1479 = vld [vmem:[%s340 + $0xb98] sm:$0xf]
        %v1480 = vld [vmem:[%s340 + $0xb9c] sm:$0xf]
        %v1481 = vld [vmem:[%s340 + $0xba0] sm:$0xf]
        %v1482 = vld [vmem:[%s340 + $0xba4] sm:$0xf]
        %v1483 = vld [vmem:[%s340 + $0xba8] sm:$0xf]
        %v1484 = vld [vmem:[%s340 + $0xbac] sm:$0xf]
        %v1485 = vld [vmem:[%s340 + $0xbb0] sm:$0xf]
        %v1486 = vld [vmem:[%s340 + $0xbb4] sm:$0xf]
        %v1487 = vld [vmem:[%s340 + $0xbb8] sm:$0xf]
        %v1488 = vld [vmem:[%s340 + $0xbbc] sm:$0xf]
        %v1489 = vld [vmem:[%s340 + $0xbc0] sm:$0xf]
        %v1490 = vld [vmem:[%s340 + $0xbc4] sm:$0xf]
        %v1491 = vld [vmem:[%s340 + $0xbc8] sm:$0xf]
        %v1492 = vld [vmem:[%s340 + $0xbcc] sm:$0xf]
        %v1493 = vld [vmem:[%s340 + $0xbd0] sm:$0xf]
        %v1494 = vld [vmem:[%s340 + $0xbd4] sm:$0xf]
        %v1495 = vld [vmem:[%s340 + $0xbd8] sm:$0xf]
        %v1496 = vld [vmem:[%s340 + $0xbdc] sm:$0xf]
        %v1497 = vld [vmem:[%s340 + $0xbe0] sm:$0xf]
        %v1498 = vld [vmem:[%s340 + $0xbe4] sm:$0xf]
        %v1499 = vld [vmem:[%s340 + $0xbe8] sm:$0xf]
        %v1500 = vld [vmem:[%s340 + $0xbec] sm:$0xf]
        %v1501 = vld [vmem:[%s340 + $0xbf0] sm:$0xf]
        %v1502 = vld [vmem:[%s340 + $0xbf4] sm:$0xf]
        %v1503 = vld [vmem:[%s340 + $0xbf8] sm:$0xf]
        %v1504 = vld [vmem:[%s340 + $0xbfc] sm:$0xf]
        %v2273 = vunpack.c.l.b16 %v737
        %v2274 = vunpack.c.l.b16 %v738
        %v2275 = vunpack.c.l.b16 %v739
        %v2276 = vunpack.c.l.b16 %v740
        %v2277 = vunpack.c.l.b16 %v741
        %v2278 = vunpack.c.l.b16 %v742
        %v2279 = vunpack.c.l.b16 %v743
        %v2280 = vunpack.c.l.b16 %v744
        %v2281 = vunpack.c.l.b16 %v745
        %v2282 = vunpack.c.l.b16 %v746
        %v2283 = vunpack.c.l.b16 %v747
        %v2284 = vunpack.c.l.b16 %v748
        %v2285 = vunpack.c.l.b16 %v749
        %v2286 = vunpack.c.l.b16 %v750
        %v2287 = vunpack.c.l.b16 %v751
        %v2288 = vunpack.c.l.b16 %v752
        %v2289 = vunpack.c.l.b16 %v753
        %v2290 = vunpack.c.l.b16 %v754
        %v2291 = vunpack.c.l.b16 %v755
        %v2292 = vunpack.c.l.b16 %v756
        %v2293 = vunpack.c.l.b16 %v757
        %v2294 = vunpack.c.l.b16 %v758
        %v2295 = vunpack.c.l.b16 %v759
        %v2296 = vunpack.c.l.b16 %v760
        %v2297 = vunpack.c.l.b16 %v761
        %v2298 = vunpack.c.l.b16 %v762
        %v2299 = vunpack.c.l.b16 %v763
        %v2300 = vunpack.c.l.b16 %v764
        %v2301 = vunpack.c.l.b16 %v765
        %v2302 = vunpack.c.l.b16 %v766
        %v2303 = vunpack.c.l.b16 %v767
        %v2304 = vunpack.c.l.b16 %v768
        %v2305 = vunpack.c.l.b16 %v769
        %v2306 = vunpack.c.l.b16 %v770
        %v2307 = vunpack.c.l.b16 %v771
        %v2308 = vunpack.c.l.b16 %v772
        %v2309 = vunpack.c.l.b16 %v773
        %v2310 = vunpack.c.l.b16 %v774
        %v2311 = vunpack.c.l.b16 %v775
        %v2312 = vunpack.c.l.b16 %v776
        %v2313 = vunpack.c.l.b16 %v777
        %v2314 = vunpack.c.l.b16 %v778
        %v2315 = vunpack.c.l.b16 %v779
        %v2316 = vunpack.c.l.b16 %v780
        %v2317 = vunpack.c.l.b16 %v781
        %v2318 = vunpack.c.l.b16 %v782
        %v2319 = vunpack.c.l.b16 %v783
        %v2320 = vunpack.c.l.b16 %v784
        %v2321 = vunpack.c.l.b16 %v785
        %v2322 = vunpack.c.l.b16 %v786
        %v2323 = vunpack.c.l.b16 %v787
        %v2324 = vunpack.c.l.b16 %v788
        %v2325 = vunpack.c.l.b16 %v789
        %v2326 = vunpack.c.l.b16 %v790
        %v2327 = vunpack.c.l.b16 %v791
        %v2328 = vunpack.c.l.b16 %v792
        %v2329 = vunpack.c.l.b16 %v793
        %v2330 = vunpack.c.l.b16 %v794
        %v2331 = vunpack.c.l.b16 %v795
        %v2332 = vunpack.c.l.b16 %v796
        %v2333 = vunpack.c.l.b16 %v797
        %v2334 = vunpack.c.l.b16 %v798
        %v2335 = vunpack.c.l.b16 %v799
        %v2336 = vunpack.c.l.b16 %v800
        %v2337 = vunpack.c.l.b16 %v801
        %v2338 = vunpack.c.l.b16 %v802
        %v2339 = vunpack.c.l.b16 %v803
        %v2340 = vunpack.c.l.b16 %v804
        %v2341 = vunpack.c.l.b16 %v805
        %v2342 = vunpack.c.l.b16 %v806
        %v2343 = vunpack.c.l.b16 %v807
        %v2344 = vunpack.c.l.b16 %v808
        %v2345 = vunpack.c.l.b16 %v809
        %v2346 = vunpack.c.l.b16 %v810
        %v2347 = vunpack.c.l.b16 %v811
        %v2348 = vunpack.c.l.b16 %v812
        %v2349 = vunpack.c.l.b16 %v813
        %v2350 = vunpack.c.l.b16 %v814
        %v2351 = vunpack.c.l.b16 %v815
        %v2352 = vunpack.c.l.b16 %v816
        %v2353 = vunpack.c.l.b16 %v817
        %v2354 = vunpack.c.l.b16 %v818
        %v2355 = vunpack.c.l.b16 %v819
        %v2356 = vunpack.c.l.b16 %v820
        %v2357 = vunpack.c.l.b16 %v821
        %v2358 = vunpack.c.l.b16 %v822
        %v2359 = vunpack.c.l.b16 %v823
        %v2360 = vunpack.c.l.b16 %v824
        %v2361 = vunpack.c.l.b16 %v825
        %v2362 = vunpack.c.l.b16 %v826
        %v2363 = vunpack.c.l.b16 %v827
        %v2364 = vunpack.c.l.b16 %v828
        %v2365 = vunpack.c.l.b16 %v829
        %v2366 = vunpack.c.l.b16 %v830
        %v2367 = vunpack.c.l.b16 %v831
        %v2368 = vunpack.c.l.b16 %v832
        %v2369 = vunpack.c.l.b16 %v833
        %v2370 = vunpack.c.l.b16 %v834
        %v2371 = vunpack.c.l.b16 %v835
        %v2372 = vunpack.c.l.b16 %v836
        %v2373 = vunpack.c.l.b16 %v837
        %v2374 = vunpack.c.l.b16 %v838
        %v2375 = vunpack.c.l.b16 %v839
        %v2376 = vunpack.c.l.b16 %v840
        %v2377 = vunpack.c.l.b16 %v841
        %v2378 = vunpack.c.l.b16 %v842
        %v2379 = vunpack.c.l.b16 %v843
        %v2380 = vunpack.c.l.b16 %v844
        %v2381 = vunpack.c.l.b16 %v845
        %v2382 = vunpack.c.l.b16 %v846
        %v2383 = vunpack.c.l.b16 %v847
        %v2384 = vunpack.c.l.b16 %v848
        %v2385 = vunpack.c.l.b16 %v849
        %v2386 = vunpack.c.l.b16 %v850
        %v2387 = vunpack.c.l.b16 %v851
        %v2388 = vunpack.c.l.b16 %v852
        %v2389 = vunpack.c.l.b16 %v853
        %v2390 = vunpack.c.l.b16 %v854
        %v2391 = vunpack.c.l.b16 %v855
        %v2392 = vunpack.c.l.b16 %v856
        %v2393 = vunpack.c.l.b16 %v857
        %v2394 = vunpack.c.l.b16 %v858
        %v2395 = vunpack.c.l.b16 %v859
        %v2396 = vunpack.c.l.b16 %v860
        %v2397 = vunpack.c.l.b16 %v861
        %v2398 = vunpack.c.l.b16 %v862
        %v2399 = vunpack.c.l.b16 %v863
        %v2400 = vunpack.c.l.b16 %v864
        %v2401 = vunpack.c.l.b16 %v865
        %v2402 = vunpack.c.l.b16 %v866
        %v2403 = vunpack.c.l.b16 %v867
        %v2404 = vunpack.c.l.b16 %v868
        %v2405 = vunpack.c.l.b16 %v869
        %v2406 = vunpack.c.l.b16 %v870
        %v2407 = vunpack.c.l.b16 %v871
        %v2408 = vunpack.c.l.b16 %v872
        %v2409 = vunpack.c.l.b16 %v873
        %v2410 = vunpack.c.l.b16 %v874
        %v2411 = vunpack.c.l.b16 %v875
        %v2412 = vunpack.c.l.b16 %v876
        %v2413 = vunpack.c.l.b16 %v877
        %v2414 = vunpack.c.l.b16 %v878
        %v2415 = vunpack.c.l.b16 %v879
        %v2416 = vunpack.c.l.b16 %v880
        %v2417 = vunpack.c.l.b16 %v881
        %v2418 = vunpack.c.l.b16 %v882
        %v2419 = vunpack.c.l.b16 %v883
        %v2420 = vunpack.c.l.b16 %v884
        %v2421 = vunpack.c.l.b16 %v885
        %v2422 = vunpack.c.l.b16 %v886
        %v2423 = vunpack.c.l.b16 %v887
        %v2424 = vunpack.c.l.b16 %v888
        %v2425 = vunpack.c.l.b16 %v889
        %v2426 = vunpack.c.l.b16 %v890
        %v2427 = vunpack.c.l.b16 %v891
        %v2428 = vunpack.c.l.b16 %v892
        %v2429 = vunpack.c.l.b16 %v893
        %v2430 = vunpack.c.l.b16 %v894
        %v2431 = vunpack.c.l.b16 %v895
        %v2432 = vunpack.c.l.b16 %v896
        %v2433 = vunpack.c.l.b16 %v897
        %v2434 = vunpack.c.l.b16 %v898
        %v2435 = vunpack.c.l.b16 %v899
        %v2436 = vunpack.c.l.b16 %v900
        %v2437 = vunpack.c.l.b16 %v901
        %v2438 = vunpack.c.l.b16 %v902
        %v2439 = vunpack.c.l.b16 %v903
        %v2440 = vunpack.c.l.b16 %v904
        %v2441 = vunpack.c.l.b16 %v905
        %v2442 = vunpack.c.l.b16 %v906
        %v2443 = vunpack.c.l.b16 %v907
        %v2444 = vunpack.c.l.b16 %v908
        %v2445 = vunpack.c.l.b16 %v909
        %v2446 = vunpack.c.l.b16 %v910
        %v2447 = vunpack.c.l.b16 %v911
        %v2448 = vunpack.c.l.b16 %v912
        %v2449 = vunpack.c.l.b16 %v913
        %v2450 = vunpack.c.l.b16 %v914
        %v2451 = vunpack.c.l.b16 %v915
        %v2452 = vunpack.c.l.b16 %v916
        %v2453 = vunpack.c.l.b16 %v917
        %v2454 = vunpack.c.l.b16 %v918
        %v2455 = vunpack.c.l.b16 %v919
        %v2456 = vunpack.c.l.b16 %v920
        %v2457 = vunpack.c.l.b16 %v921
        %v2458 = vunpack.c.l.b16 %v922
        %v2459 = vunpack.c.l.b16 %v923
        %v2460 = vunpack.c.l.b16 %v924
        %v2461 = vunpack.c.l.b16 %v925
        %v2462 = vunpack.c.l.b16 %v926
        %v2463 = vunpack.c.l.b16 %v927
        %v2464 = vunpack.c.l.b16 %v928
        %v2465 = vunpack.c.l.b16 %v929
        %v2466 = vunpack.c.l.b16 %v930
        %v2467 = vunpack.c.l.b16 %v931
        %v2468 = vunpack.c.l.b16 %v932
        %v2469 = vunpack.c.l.b16 %v933
        %v2470 = vunpack.c.l.b16 %v934
        %v2471 = vunpack.c.l.b16 %v935
        %v2472 = vunpack.c.l.b16 %v936
        %v2473 = vunpack.c.l.b16 %v937
        %v2474 = vunpack.c.l.b16 %v938
        %v2475 = vunpack.c.l.b16 %v939
        %v2476 = vunpack.c.l.b16 %v940
        %v2477 = vunpack.c.l.b16 %v941
        %v2478 = vunpack.c.l.b16 %v942
        %v2479 = vunpack.c.l.b16 %v943
        %v2480 = vunpack.c.l.b16 %v944
        %v2481 = vunpack.c.l.b16 %v945
        %v2482 = vunpack.c.l.b16 %v946
        %v2483 = vunpack.c.l.b16 %v947
        %v2484 = vunpack.c.l.b16 %v948
        %v2485 = vunpack.c.l.b16 %v949
        %v2486 = vunpack.c.l.b16 %v950
        %v2487 = vunpack.c.l.b16 %v951
        %v2488 = vunpack.c.l.b16 %v952
        %v2489 = vunpack.c.l.b16 %v953
        %v2490 = vunpack.c.l.b16 %v954
        %v2491 = vunpack.c.l.b16 %v955
        %v2492 = vunpack.c.l.b16 %v956
        %v2493 = vunpack.c.l.b16 %v957
        %v2494 = vunpack.c.l.b16 %v958
        %v2495 = vunpack.c.l.b16 %v959
        %v2496 = vunpack.c.l.b16 %v960
        %v2497 = vunpack.c.l.b16 %v961
        %v2498 = vunpack.c.l.b16 %v962
        %v2499 = vunpack.c.l.b16 %v963
        %v2500 = vunpack.c.l.b16 %v964
        %v2501 = vunpack.c.l.b16 %v965
        %v2502 = vunpack.c.l.b16 %v966
        %v2503 = vunpack.c.l.b16 %v967
        %v2504 = vunpack.c.l.b16 %v968
        %v2505 = vunpack.c.l.b16 %v969
        %v2506 = vunpack.c.l.b16 %v970
        %v2507 = vunpack.c.l.b16 %v971
        %v2508 = vunpack.c.l.b16 %v972
        %v2509 = vunpack.c.l.b16 %v973
        %v2510 = vunpack.c.l.b16 %v974
        %v2511 = vunpack.c.l.b16 %v975
        %v2512 = vunpack.c.l.b16 %v976
        %v2513 = vunpack.c.l.b16 %v977
        %v2514 = vunpack.c.l.b16 %v978
        %v2515 = vunpack.c.l.b16 %v979
        %v2516 = vunpack.c.l.b16 %v980
        %v2517 = vunpack.c.l.b16 %v981
        %v2518 = vunpack.c.l.b16 %v982
        %v2519 = vunpack.c.l.b16 %v983
        %v2520 = vunpack.c.l.b16 %v984
        %v2521 = vunpack.c.l.b16 %v985
        %v2522 = vunpack.c.l.b16 %v986
        %v2523 = vunpack.c.l.b16 %v987
        %v2524 = vunpack.c.l.b16 %v988
        %v2525 = vunpack.c.l.b16 %v989
        %v2526 = vunpack.c.l.b16 %v990
        %v2527 = vunpack.c.l.b16 %v991
        %v2528 = vunpack.c.l.b16 %v992
        %v2529 = vunpack.c.l.b16 %v993
        %v2530 = vunpack.c.l.b16 %v994
        %v2531 = vunpack.c.l.b16 %v995
        %v2532 = vunpack.c.l.b16 %v996
        %v2533 = vunpack.c.l.b16 %v997
        %v2534 = vunpack.c.l.b16 %v998
        %v2535 = vunpack.c.l.b16 %v999
        %v2536 = vunpack.c.l.b16 %v1000
        %v2537 = vunpack.c.l.b16 %v1001
        %v2538 = vunpack.c.l.b16 %v1002
        %v2539 = vunpack.c.l.b16 %v1003
        %v2540 = vunpack.c.l.b16 %v1004
        %v2541 = vunpack.c.l.b16 %v1005
        %v2542 = vunpack.c.l.b16 %v1006
        %v2543 = vunpack.c.l.b16 %v1007
        %v2544 = vunpack.c.l.b16 %v1008
        %v2545 = vunpack.c.l.b16 %v1009
        %v2546 = vunpack.c.l.b16 %v1010
        %v2547 = vunpack.c.l.b16 %v1011
        %v2548 = vunpack.c.l.b16 %v1012
        %v2549 = vunpack.c.l.b16 %v1013
        %v2550 = vunpack.c.l.b16 %v1014
        %v2551 = vunpack.c.l.b16 %v1015
        %v2552 = vunpack.c.l.b16 %v1016
        %v2553 = vunpack.c.l.b16 %v1017
        %v2554 = vunpack.c.l.b16 %v1018
        %v2555 = vunpack.c.l.b16 %v1019
        %v2556 = vunpack.c.l.b16 %v1020
        %v2557 = vunpack.c.l.b16 %v1021
        %v2558 = vunpack.c.l.b16 %v1022
        %v2559 = vunpack.c.l.b16 %v1023
        %v2560 = vunpack.c.l.b16 %v1024
        %v2561 = vunpack.c.l.b16 %v1025
        %v2562 = vunpack.c.l.b16 %v1026
        %v2563 = vunpack.c.l.b16 %v1027
        %v2564 = vunpack.c.l.b16 %v1028
        %v2565 = vunpack.c.l.b16 %v1029
        %v2566 = vunpack.c.l.b16 %v1030
        %v2567 = vunpack.c.l.b16 %v1031
        %v2568 = vunpack.c.l.b16 %v1032
        %v2569 = vunpack.c.l.b16 %v1033
        %v2570 = vunpack.c.l.b16 %v1034
        %v2571 = vunpack.c.l.b16 %v1035
        %v2572 = vunpack.c.l.b16 %v1036
        %v2573 = vunpack.c.l.b16 %v1037
        %v2574 = vunpack.c.l.b16 %v1038
        %v2575 = vunpack.c.l.b16 %v1039
        %v2576 = vunpack.c.l.b16 %v1040
        %v2577 = vunpack.c.l.b16 %v1041
        %v2578 = vunpack.c.l.b16 %v1042
        %v2579 = vunpack.c.l.b16 %v1043
        %v2580 = vunpack.c.l.b16 %v1044
        %v2581 = vunpack.c.l.b16 %v1045
        %v2582 = vunpack.c.l.b16 %v1046
        %v2583 = vunpack.c.l.b16 %v1047
        %v2584 = vunpack.c.l.b16 %v1048
        %v2585 = vunpack.c.l.b16 %v1049
        %v2586 = vunpack.c.l.b16 %v1050
        %v2587 = vunpack.c.l.b16 %v1051
        %v2588 = vunpack.c.l.b16 %v1052
        %v2589 = vunpack.c.l.b16 %v1053
        %v2590 = vunpack.c.l.b16 %v1054
        %v2591 = vunpack.c.l.b16 %v1055
        %v2592 = vunpack.c.l.b16 %v1056
        %v2593 = vunpack.c.l.b16 %v1057
        %v2594 = vunpack.c.l.b16 %v1058
        %v2595 = vunpack.c.l.b16 %v1059
        %v2596 = vunpack.c.l.b16 %v1060
        %v2597 = vunpack.c.l.b16 %v1061
        %v2598 = vunpack.c.l.b16 %v1062
        %v2599 = vunpack.c.l.b16 %v1063
        %v2600 = vunpack.c.l.b16 %v1064
        %v2601 = vunpack.c.l.b16 %v1065
        %v2602 = vunpack.c.l.b16 %v1066
        %v2603 = vunpack.c.l.b16 %v1067
        %v2604 = vunpack.c.l.b16 %v1068
        %v2605 = vunpack.c.l.b16 %v1069
        %v2606 = vunpack.c.l.b16 %v1070
        %v2607 = vunpack.c.l.b16 %v1071
        %v2608 = vunpack.c.l.b16 %v1072
        %v2609 = vunpack.c.l.b16 %v1073
        %v2610 = vunpack.c.l.b16 %v1074
        %v2611 = vunpack.c.l.b16 %v1075
        %v2612 = vunpack.c.l.b16 %v1076
        %v2613 = vunpack.c.l.b16 %v1077
        %v2614 = vunpack.c.l.b16 %v1078
        %v2615 = vunpack.c.l.b16 %v1079
        %v2616 = vunpack.c.l.b16 %v1080
        %v2617 = vunpack.c.l.b16 %v1081
        %v2618 = vunpack.c.l.b16 %v1082
        %v2619 = vunpack.c.l.b16 %v1083
        %v2620 = vunpack.c.l.b16 %v1084
        %v2621 = vunpack.c.l.b16 %v1085
        %v2622 = vunpack.c.l.b16 %v1086
        %v2623 = vunpack.c.l.b16 %v1087
        %v2624 = vunpack.c.l.b16 %v1088
        %v2625 = vunpack.c.l.b16 %v1089
        %v2626 = vunpack.c.l.b16 %v1090
        %v2627 = vunpack.c.l.b16 %v1091
        %v2628 = vunpack.c.l.b16 %v1092
        %v2629 = vunpack.c.l.b16 %v1093
        %v2630 = vunpack.c.l.b16 %v1094
        %v2631 = vunpack.c.l.b16 %v1095
        %v2632 = vunpack.c.l.b16 %v1096
        %v2633 = vunpack.c.l.b16 %v1097
        %v2634 = vunpack.c.l.b16 %v1098
        %v2635 = vunpack.c.l.b16 %v1099
        %v2636 = vunpack.c.l.b16 %v1100
        %v2637 = vunpack.c.l.b16 %v1101
        %v2638 = vunpack.c.l.b16 %v1102
        %v2639 = vunpack.c.l.b16 %v1103
        %v2640 = vunpack.c.l.b16 %v1104
        %v2641 = vunpack.c.l.b16 %v1105
        %v2642 = vunpack.c.l.b16 %v1106
        %v2643 = vunpack.c.l.b16 %v1107
        %v2644 = vunpack.c.l.b16 %v1108
        %v2645 = vunpack.c.l.b16 %v1109
        %v2646 = vunpack.c.l.b16 %v1110
        %v2647 = vunpack.c.l.b16 %v1111
        %v2648 = vunpack.c.l.b16 %v1112
        %v2649 = vunpack.c.l.b16 %v1113
        %v2650 = vunpack.c.l.b16 %v1114
        %v2651 = vunpack.c.l.b16 %v1115
        %v2652 = vunpack.c.l.b16 %v1116
        %v2653 = vunpack.c.l.b16 %v1117
        %v2654 = vunpack.c.l.b16 %v1118
        %v2655 = vunpack.c.l.b16 %v1119
        %v2656 = vunpack.c.l.b16 %v1120
        %v2657 = vunpack.c.l.b16 %v1121
        %v2658 = vunpack.c.l.b16 %v1122
        %v2659 = vunpack.c.l.b16 %v1123
        %v2660 = vunpack.c.l.b16 %v1124
        %v2661 = vunpack.c.l.b16 %v1125
        %v2662 = vunpack.c.l.b16 %v1126
        %v2663 = vunpack.c.l.b16 %v1127
        %v2664 = vunpack.c.l.b16 %v1128
        %v2665 = vunpack.c.l.b16 %v1129
        %v2666 = vunpack.c.l.b16 %v1130
        %v2667 = vunpack.c.l.b16 %v1131
        %v2668 = vunpack.c.l.b16 %v1132
        %v2669 = vunpack.c.l.b16 %v1133
        %v2670 = vunpack.c.l.b16 %v1134
        %v2671 = vunpack.c.l.b16 %v1135
        %v2672 = vunpack.c.l.b16 %v1136
        %v2673 = vunpack.c.l.b16 %v1137
        %v2674 = vunpack.c.l.b16 %v1138
        %v2675 = vunpack.c.l.b16 %v1139
        %v2676 = vunpack.c.l.b16 %v1140
        %v2677 = vunpack.c.l.b16 %v1141
        %v2678 = vunpack.c.l.b16 %v1142
        %v2679 = vunpack.c.l.b16 %v1143
        %v2680 = vunpack.c.l.b16 %v1144
        %v2681 = vunpack.c.l.b16 %v1145
        %v2682 = vunpack.c.l.b16 %v1146
        %v2683 = vunpack.c.l.b16 %v1147
        %v2684 = vunpack.c.l.b16 %v1148
        %v2685 = vunpack.c.l.b16 %v1149
        %v2686 = vunpack.c.l.b16 %v1150
        %v2687 = vunpack.c.l.b16 %v1151
        %v2688 = vunpack.c.l.b16 %v1152
        %v2689 = vunpack.c.l.b16 %v1153
        %v2690 = vunpack.c.l.b16 %v1154
        %v2691 = vunpack.c.l.b16 %v1155
        %v2692 = vunpack.c.l.b16 %v1156
        %v2693 = vunpack.c.l.b16 %v1157
        %v2694 = vunpack.c.l.b16 %v1158
        %v2695 = vunpack.c.l.b16 %v1159
        %v2696 = vunpack.c.l.b16 %v1160
        %v2697 = vunpack.c.l.b16 %v1161
        %v2698 = vunpack.c.l.b16 %v1162
        %v2699 = vunpack.c.l.b16 %v1163
        %v2700 = vunpack.c.l.b16 %v1164
        %v2701 = vunpack.c.l.b16 %v1165
        %v2702 = vunpack.c.l.b16 %v1166
        %v2703 = vunpack.c.l.b16 %v1167
        %v2704 = vunpack.c.l.b16 %v1168
        %v2705 = vunpack.c.l.b16 %v1169
        %v2706 = vunpack.c.l.b16 %v1170
        %v2707 = vunpack.c.l.b16 %v1171
        %v2708 = vunpack.c.l.b16 %v1172
        %v2709 = vunpack.c.l.b16 %v1173
        %v2710 = vunpack.c.l.b16 %v1174
        %v2711 = vunpack.c.l.b16 %v1175
        %v2712 = vunpack.c.l.b16 %v1176
        %v2713 = vunpack.c.l.b16 %v1177
        %v2714 = vunpack.c.l.b16 %v1178
        %v2715 = vunpack.c.l.b16 %v1179
        %v2716 = vunpack.c.l.b16 %v1180
        %v2717 = vunpack.c.l.b16 %v1181
        %v2718 = vunpack.c.l.b16 %v1182
        %v2719 = vunpack.c.l.b16 %v1183
        %v2720 = vunpack.c.l.b16 %v1184
        %v2721 = vunpack.c.l.b16 %v1185
        %v2722 = vunpack.c.l.b16 %v1186
        %v2723 = vunpack.c.l.b16 %v1187
        %v2724 = vunpack.c.l.b16 %v1188
        %v2725 = vunpack.c.l.b16 %v1189
        %v2726 = vunpack.c.l.b16 %v1190
        %v2727 = vunpack.c.l.b16 %v1191
        %v2728 = vunpack.c.l.b16 %v1192
        %v2729 = vunpack.c.l.b16 %v1193
        %v2730 = vunpack.c.l.b16 %v1194
        %v2731 = vunpack.c.l.b16 %v1195
        %v2732 = vunpack.c.l.b16 %v1196
        %v2733 = vunpack.c.l.b16 %v1197
        %v2734 = vunpack.c.l.b16 %v1198
        %v2735 = vunpack.c.l.b16 %v1199
        %v2736 = vunpack.c.l.b16 %v1200
        %v2737 = vunpack.c.l.b16 %v1201
        %v2738 = vunpack.c.l.b16 %v1202
        %v2739 = vunpack.c.l.b16 %v1203
        %v2740 = vunpack.c.l.b16 %v1204
        %v2741 = vunpack.c.l.b16 %v1205
        %v2742 = vunpack.c.l.b16 %v1206
        %v2743 = vunpack.c.l.b16 %v1207
        %v2744 = vunpack.c.l.b16 %v1208
        %v2745 = vunpack.c.l.b16 %v1209
        %v2746 = vunpack.c.l.b16 %v1210
        %v2747 = vunpack.c.l.b16 %v1211
        %v2748 = vunpack.c.l.b16 %v1212
        %v2749 = vunpack.c.l.b16 %v1213
        %v2750 = vunpack.c.l.b16 %v1214
        %v2751 = vunpack.c.l.b16 %v1215
        %v2752 = vunpack.c.l.b16 %v1216
        %v2753 = vunpack.c.l.b16 %v1217
        %v2754 = vunpack.c.l.b16 %v1218
        %v2755 = vunpack.c.l.b16 %v1219
        %v2756 = vunpack.c.l.b16 %v1220
        %v2757 = vunpack.c.l.b16 %v1221
        %v2758 = vunpack.c.l.b16 %v1222
        %v2759 = vunpack.c.l.b16 %v1223
        %v2760 = vunpack.c.l.b16 %v1224
        %v2761 = vunpack.c.l.b16 %v1225
        %v2762 = vunpack.c.l.b16 %v1226
        %v2763 = vunpack.c.l.b16 %v1227
        %v2764 = vunpack.c.l.b16 %v1228
        %v2765 = vunpack.c.l.b16 %v1229
        %v2766 = vunpack.c.l.b16 %v1230
        %v2767 = vunpack.c.l.b16 %v1231
        %v2768 = vunpack.c.l.b16 %v1232
        %v2769 = vunpack.c.l.b16 %v1233
        %v2770 = vunpack.c.l.b16 %v1234
        %v2771 = vunpack.c.l.b16 %v1235
        %v2772 = vunpack.c.l.b16 %v1236
        %v2773 = vunpack.c.l.b16 %v1237
        %v2774 = vunpack.c.l.b16 %v1238
        %v2775 = vunpack.c.l.b16 %v1239
        %v2776 = vunpack.c.l.b16 %v1240
        %v2777 = vunpack.c.l.b16 %v1241
        %v2778 = vunpack.c.l.b16 %v1242
        %v2779 = vunpack.c.l.b16 %v1243
        %v2780 = vunpack.c.l.b16 %v1244
        %v2781 = vunpack.c.l.b16 %v1245
        %v2782 = vunpack.c.l.b16 %v1246
        %v2783 = vunpack.c.l.b16 %v1247
        %v2784 = vunpack.c.l.b16 %v1248
        %v2785 = vunpack.c.l.b16 %v1249
        %v2786 = vunpack.c.l.b16 %v1250
        %v2787 = vunpack.c.l.b16 %v1251
        %v2788 = vunpack.c.l.b16 %v1252
        %v2789 = vunpack.c.l.b16 %v1253
        %v2790 = vunpack.c.l.b16 %v1254
        %v2791 = vunpack.c.l.b16 %v1255
        %v2792 = vunpack.c.l.b16 %v1256
        %v2793 = vunpack.c.l.b16 %v1257
        %v2794 = vunpack.c.l.b16 %v1258
        %v2795 = vunpack.c.l.b16 %v1259
        %v2796 = vunpack.c.l.b16 %v1260
        %v2797 = vunpack.c.l.b16 %v1261
        %v2798 = vunpack.c.l.b16 %v1262
        %v2799 = vunpack.c.l.b16 %v1263
        %v2800 = vunpack.c.l.b16 %v1264
        %v2801 = vunpack.c.l.b16 %v1265
        %v2802 = vunpack.c.l.b16 %v1266
        %v2803 = vunpack.c.l.b16 %v1267
        %v2804 = vunpack.c.l.b16 %v1268
        %v2805 = vunpack.c.l.b16 %v1269
        %v2806 = vunpack.c.l.b16 %v1270
        %v2807 = vunpack.c.l.b16 %v1271
        %v2808 = vunpack.c.l.b16 %v1272
        %v2809 = vunpack.c.l.b16 %v1273
        %v2810 = vunpack.c.l.b16 %v1274
        %v2811 = vunpack.c.l.b16 %v1275
        %v2812 = vunpack.c.l.b16 %v1276
        %v2813 = vunpack.c.l.b16 %v1277
        %v2814 = vunpack.c.l.b16 %v1278
        %v2815 = vunpack.c.l.b16 %v1279
        %v2816 = vunpack.c.l.b16 %v1280
        %v2817 = vunpack.c.l.b16 %v1281
        %v2818 = vunpack.c.l.b16 %v1282
        %v2819 = vunpack.c.l.b16 %v1283
        %v2820 = vunpack.c.l.b16 %v1284
        %v2821 = vunpack.c.l.b16 %v1285
        %v2822 = vunpack.c.l.b16 %v1286
        %v2823 = vunpack.c.l.b16 %v1287
        %v2824 = vunpack.c.l.b16 %v1288
        %v2825 = vunpack.c.l.b16 %v1289
        %v2826 = vunpack.c.l.b16 %v1290
        %v2827 = vunpack.c.l.b16 %v1291
        %v2828 = vunpack.c.l.b16 %v1292
        %v2829 = vunpack.c.l.b16 %v1293
        %v2830 = vunpack.c.l.b16 %v1294
        %v2831 = vunpack.c.l.b16 %v1295
        %v2832 = vunpack.c.l.b16 %v1296
        %v2833 = vunpack.c.l.b16 %v1297
        %v2834 = vunpack.c.l.b16 %v1298
        %v2835 = vunpack.c.l.b16 %v1299
        %v2836 = vunpack.c.l.b16 %v1300
        %v2837 = vunpack.c.l.b16 %v1301
        %v2838 = vunpack.c.l.b16 %v1302
        %v2839 = vunpack.c.l.b16 %v1303
        %v2840 = vunpack.c.l.b16 %v1304
        %v2841 = vunpack.c.l.b16 %v1305
        %v2842 = vunpack.c.l.b16 %v1306
        %v2843 = vunpack.c.l.b16 %v1307
        %v2844 = vunpack.c.l.b16 %v1308
        %v2845 = vunpack.c.l.b16 %v1309
        %v2846 = vunpack.c.l.b16 %v1310
        %v2847 = vunpack.c.l.b16 %v1311
        %v2848 = vunpack.c.l.b16 %v1312
        %v2849 = vunpack.c.l.b16 %v1313
        %v2850 = vunpack.c.l.b16 %v1314
        %v2851 = vunpack.c.l.b16 %v1315
        %v2852 = vunpack.c.l.b16 %v1316
        %v2853 = vunpack.c.l.b16 %v1317
        %v2854 = vunpack.c.l.b16 %v1318
        %v2855 = vunpack.c.l.b16 %v1319
        %v2856 = vunpack.c.l.b16 %v1320
        %v2857 = vunpack.c.l.b16 %v1321
        %v2858 = vunpack.c.l.b16 %v1322
        %v2859 = vunpack.c.l.b16 %v1323
        %v2860 = vunpack.c.l.b16 %v1324
        %v2861 = vunpack.c.l.b16 %v1325
        %v2862 = vunpack.c.l.b16 %v1326
        %v2863 = vunpack.c.l.b16 %v1327
        %v2864 = vunpack.c.l.b16 %v1328
        %v2865 = vunpack.c.l.b16 %v1329
        %v2866 = vunpack.c.l.b16 %v1330
        %v2867 = vunpack.c.l.b16 %v1331
        %v2868 = vunpack.c.l.b16 %v1332
        %v2869 = vunpack.c.l.b16 %v1333
        %v2870 = vunpack.c.l.b16 %v1334
        %v2871 = vunpack.c.l.b16 %v1335
        %v2872 = vunpack.c.l.b16 %v1336
        %v2873 = vunpack.c.l.b16 %v1337
        %v2874 = vunpack.c.l.b16 %v1338
        %v2875 = vunpack.c.l.b16 %v1339
        %v2876 = vunpack.c.l.b16 %v1340
        %v2877 = vunpack.c.l.b16 %v1341
        %v2878 = vunpack.c.l.b16 %v1342
        %v2879 = vunpack.c.l.b16 %v1343
        %v2880 = vunpack.c.l.b16 %v1344
        %v2881 = vunpack.c.l.b16 %v1345
        %v2882 = vunpack.c.l.b16 %v1346
        %v2883 = vunpack.c.l.b16 %v1347
        %v2884 = vunpack.c.l.b16 %v1348
        %v2885 = vunpack.c.l.b16 %v1349
        %v2886 = vunpack.c.l.b16 %v1350
        %v2887 = vunpack.c.l.b16 %v1351
        %v2888 = vunpack.c.l.b16 %v1352
        %v2889 = vunpack.c.l.b16 %v1353
        %v2890 = vunpack.c.l.b16 %v1354
        %v2891 = vunpack.c.l.b16 %v1355
        %v2892 = vunpack.c.l.b16 %v1356
        %v2893 = vunpack.c.l.b16 %v1357
        %v2894 = vunpack.c.l.b16 %v1358
        %v2895 = vunpack.c.l.b16 %v1359
        %v2896 = vunpack.c.l.b16 %v1360
        %v2897 = vunpack.c.l.b16 %v1361
        %v2898 = vunpack.c.l.b16 %v1362
        %v2899 = vunpack.c.l.b16 %v1363
        %v2900 = vunpack.c.l.b16 %v1364
        %v2901 = vunpack.c.l.b16 %v1365
        %v2902 = vunpack.c.l.b16 %v1366
        %v2903 = vunpack.c.l.b16 %v1367
        %v2904 = vunpack.c.l.b16 %v1368
        %v2905 = vunpack.c.l.b16 %v1369
        %v2906 = vunpack.c.l.b16 %v1370
        %v2907 = vunpack.c.l.b16 %v1371
        %v2908 = vunpack.c.l.b16 %v1372
        %v2909 = vunpack.c.l.b16 %v1373
        %v2910 = vunpack.c.l.b16 %v1374
        %v2911 = vunpack.c.l.b16 %v1375
        %v2912 = vunpack.c.l.b16 %v1376
        %v2913 = vunpack.c.l.b16 %v1377
        %v2914 = vunpack.c.l.b16 %v1378
        %v2915 = vunpack.c.l.b16 %v1379
        %v2916 = vunpack.c.l.b16 %v1380
        %v2917 = vunpack.c.l.b16 %v1381
        %v2918 = vunpack.c.l.b16 %v1382
        %v2919 = vunpack.c.l.b16 %v1383
        %v2920 = vunpack.c.l.b16 %v1384
        %v2921 = vunpack.c.l.b16 %v1385
        %v2922 = vunpack.c.l.b16 %v1386
        %v2923 = vunpack.c.l.b16 %v1387
        %v2924 = vunpack.c.l.b16 %v1388
        %v2925 = vunpack.c.l.b16 %v1389
        %v2926 = vunpack.c.l.b16 %v1390
        %v2927 = vunpack.c.l.b16 %v1391
        %v2928 = vunpack.c.l.b16 %v1392
        %v2929 = vunpack.c.l.b16 %v1393
        %v2930 = vunpack.c.l.b16 %v1394
        %v2931 = vunpack.c.l.b16 %v1395
        %v2932 = vunpack.c.l.b16 %v1396
        %v2933 = vunpack.c.l.b16 %v1397
        %v2934 = vunpack.c.l.b16 %v1398
        %v2935 = vunpack.c.l.b16 %v1399
        %v2936 = vunpack.c.l.b16 %v1400
        %v2937 = vunpack.c.l.b16 %v1401
        %v2938 = vunpack.c.l.b16 %v1402
        %v2939 = vunpack.c.l.b16 %v1403
        %v2940 = vunpack.c.l.b16 %v1404
        %v2941 = vunpack.c.l.b16 %v1405
        %v2942 = vunpack.c.l.b16 %v1406
        %v2943 = vunpack.c.l.b16 %v1407
        %v2944 = vunpack.c.l.b16 %v1408
        %v2945 = vunpack.c.l.b16 %v1409
        %v2946 = vunpack.c.l.b16 %v1410
        %v2947 = vunpack.c.l.b16 %v1411
        %v2948 = vunpack.c.l.b16 %v1412
        %v2949 = vunpack.c.l.b16 %v1413
        %v2950 = vunpack.c.l.b16 %v1414
        %v2951 = vunpack.c.l.b16 %v1415
        %v2952 = vunpack.c.l.b16 %v1416
        %v2953 = vunpack.c.l.b16 %v1417
        %v2954 = vunpack.c.l.b16 %v1418
        %v2955 = vunpack.c.l.b16 %v1419
        %v2956 = vunpack.c.l.b16 %v1420
        %v2957 = vunpack.c.l.b16 %v1421
        %v2958 = vunpack.c.l.b16 %v1422
        %v2959 = vunpack.c.l.b16 %v1423
        %v2960 = vunpack.c.l.b16 %v1424
        %v2961 = vunpack.c.l.b16 %v1425
        %v2962 = vunpack.c.l.b16 %v1426
        %v2963 = vunpack.c.l.b16 %v1427
        %v2964 = vunpack.c.l.b16 %v1428
        %v2965 = vunpack.c.l.b16 %v1429
        %v2966 = vunpack.c.l.b16 %v1430
        %v2967 = vunpack.c.l.b16 %v1431
        %v2968 = vunpack.c.l.b16 %v1432
        %v2969 = vunpack.c.l.b16 %v1433
        %v2970 = vunpack.c.l.b16 %v1434
        %v2971 = vunpack.c.l.b16 %v1435
        %v2972 = vunpack.c.l.b16 %v1436
        %v2973 = vunpack.c.l.b16 %v1437
        %v2974 = vunpack.c.l.b16 %v1438
        %v2975 = vunpack.c.l.b16 %v1439
        %v2976 = vunpack.c.l.b16 %v1440
        %v2977 = vunpack.c.l.b16 %v1441
        %v2978 = vunpack.c.l.b16 %v1442
        %v2979 = vunpack.c.l.b16 %v1443
        %v2980 = vunpack.c.l.b16 %v1444
        %v2981 = vunpack.c.l.b16 %v1445
        %v2982 = vunpack.c.l.b16 %v1446
        %v2983 = vunpack.c.l.b16 %v1447
        %v2984 = vunpack.c.l.b16 %v1448
        %v2985 = vunpack.c.l.b16 %v1449
        %v2986 = vunpack.c.l.b16 %v1450
        %v2987 = vunpack.c.l.b16 %v1451
        %v2988 = vunpack.c.l.b16 %v1452
        %v2989 = vunpack.c.l.b16 %v1453
        %v2990 = vunpack.c.l.b16 %v1454
        %v2991 = vunpack.c.l.b16 %v1455
        %v2992 = vunpack.c.l.b16 %v1456
        %v2993 = vunpack.c.l.b16 %v1457
        %v2994 = vunpack.c.l.b16 %v1458
        %v2995 = vunpack.c.l.b16 %v1459
        %v2996 = vunpack.c.l.b16 %v1460
        %v2997 = vunpack.c.l.b16 %v1461
        %v2998 = vunpack.c.l.b16 %v1462
        %v2999 = vunpack.c.l.b16 %v1463
        %v3000 = vunpack.c.l.b16 %v1464
        %v3001 = vunpack.c.l.b16 %v1465
        %v3002 = vunpack.c.l.b16 %v1466
        %v3003 = vunpack.c.l.b16 %v1467
        %v3004 = vunpack.c.l.b16 %v1468
        %v3005 = vunpack.c.l.b16 %v1469
        %v3006 = vunpack.c.l.b16 %v1470
        %v3007 = vunpack.c.l.b16 %v1471
        %v3008 = vunpack.c.l.b16 %v1472
        %v3009 = vunpack.c.l.b16 %v1473
        %v3010 = vunpack.c.l.b16 %v1474
        %v3011 = vunpack.c.l.b16 %v1475
        %v3012 = vunpack.c.l.b16 %v1476
        %v3013 = vunpack.c.l.b16 %v1477
        %v3014 = vunpack.c.l.b16 %v1478
        %v3015 = vunpack.c.l.b16 %v1479
        %v3016 = vunpack.c.l.b16 %v1480
        %v3017 = vunpack.c.l.b16 %v1481
        %v3018 = vunpack.c.l.b16 %v1482
        %v3019 = vunpack.c.l.b16 %v1483
        %v3020 = vunpack.c.l.b16 %v1484
        %v3021 = vunpack.c.l.b16 %v1485
        %v3022 = vunpack.c.l.b16 %v1486
        %v3023 = vunpack.c.l.b16 %v1487
        %v3024 = vunpack.c.l.b16 %v1488
        %v3025 = vunpack.c.l.b16 %v1489
        %v3026 = vunpack.c.l.b16 %v1490
        %v3027 = vunpack.c.l.b16 %v1491
        %v3028 = vunpack.c.l.b16 %v1492
        %v3029 = vunpack.c.l.b16 %v1493
        %v3030 = vunpack.c.l.b16 %v1494
        %v3031 = vunpack.c.l.b16 %v1495
        %v3032 = vunpack.c.l.b16 %v1496
        %v3033 = vunpack.c.l.b16 %v1497
        %v3034 = vunpack.c.l.b16 %v1498
        %v3035 = vunpack.c.l.b16 %v1499
        %v3036 = vunpack.c.l.b16 %v1500
        %v3037 = vunpack.c.l.b16 %v1501
        %v3038 = vunpack.c.l.b16 %v1502
        %v3039 = vunpack.c.l.b16 %v1503
        %v3040 = vunpack.c.l.b16 %v1504
        %v3041 = vpack.c.b16 %v2274, %v2273
        %v3042 = vpack.c.b16 %v2276, %v2275
        %v3043 = vpack.c.b16 %v2278, %v2277
        %v3044 = vpack.c.b16 %v2280, %v2279
        %v3045 = vpack.c.b16 %v2282, %v2281
        %v3046 = vpack.c.b16 %v2284, %v2283
        %v3047 = vpack.c.b16 %v2286, %v2285
        %v3048 = vpack.c.b16 %v2288, %v2287
        %v3049 = vpack.c.b16 %v2290, %v2289
        %v3050 = vpack.c.b16 %v2292, %v2291
        %v3051 = vpack.c.b16 %v2294, %v2293
        %v3052 = vpack.c.b16 %v2296, %v2295
        %v3053 = vpack.c.b16 %v2298, %v2297
        %v3054 = vpack.c.b16 %v2300, %v2299
        %v3055 = vpack.c.b16 %v2302, %v2301
        %v3056 = vpack.c.b16 %v2304, %v2303
        %v3057 = vpack.c.b16 %v2306, %v2305
        %v3058 = vpack.c.b16 %v2308, %v2307
        %v3059 = vpack.c.b16 %v2310, %v2309
        %v3060 = vpack.c.b16 %v2312, %v2311
        %v3061 = vpack.c.b16 %v2314, %v2313
        %v3062 = vpack.c.b16 %v2316, %v2315
        %v3063 = vpack.c.b16 %v2318, %v2317
        %v3064 = vpack.c.b16 %v2320, %v2319
        %v3065 = vpack.c.b16 %v2322, %v2321
        %v3066 = vpack.c.b16 %v2324, %v2323
        %v3067 = vpack.c.b16 %v2326, %v2325
        %v3068 = vpack.c.b16 %v2328, %v2327
        %v3069 = vpack.c.b16 %v2330, %v2329
        %v3070 = vpack.c.b16 %v2332, %v2331
        %v3071 = vpack.c.b16 %v2334, %v2333
        %v3072 = vpack.c.b16 %v2336, %v2335
        %v3073 = vpack.c.b16 %v2338, %v2337
        %v3074 = vpack.c.b16 %v2340, %v2339
        %v3075 = vpack.c.b16 %v2342, %v2341
        %v3076 = vpack.c.b16 %v2344, %v2343
        %v3077 = vpack.c.b16 %v2346, %v2345
        %v3078 = vpack.c.b16 %v2348, %v2347
        %v3079 = vpack.c.b16 %v2350, %v2349
        %v3080 = vpack.c.b16 %v2352, %v2351
        %v3081 = vpack.c.b16 %v2354, %v2353
        %v3082 = vpack.c.b16 %v2356, %v2355
        %v3083 = vpack.c.b16 %v2358, %v2357
        %v3084 = vpack.c.b16 %v2360, %v2359
        %v3085 = vpack.c.b16 %v2362, %v2361
        %v3086 = vpack.c.b16 %v2364, %v2363
        %v3087 = vpack.c.b16 %v2366, %v2365
        %v3088 = vpack.c.b16 %v2368, %v2367
        %v3089 = vpack.c.b16 %v2370, %v2369
        %v3090 = vpack.c.b16 %v2372, %v2371
        %v3091 = vpack.c.b16 %v2374, %v2373
        %v3092 = vpack.c.b16 %v2376, %v2375
        %v3093 = vpack.c.b16 %v2378, %v2377
        %v3094 = vpack.c.b16 %v2380, %v2379
        %v3095 = vpack.c.b16 %v2382, %v2381
        %v3096 = vpack.c.b16 %v2384, %v2383
        %v3097 = vpack.c.b16 %v2386, %v2385
        %v3098 = vpack.c.b16 %v2388, %v2387
        %v3099 = vpack.c.b16 %v2390, %v2389
        %v3100 = vpack.c.b16 %v2392, %v2391
        %v3101 = vpack.c.b16 %v2394, %v2393
        %v3102 = vpack.c.b16 %v2396, %v2395
        %v3103 = vpack.c.b16 %v2398, %v2397
        %v3104 = vpack.c.b16 %v2400, %v2399
        %v3105 = vpack.c.b16 %v2402, %v2401
        %v3106 = vpack.c.b16 %v2404, %v2403
        %v3107 = vpack.c.b16 %v2406, %v2405
        %v3108 = vpack.c.b16 %v2408, %v2407
        %v3109 = vpack.c.b16 %v2410, %v2409
        %v3110 = vpack.c.b16 %v2412, %v2411
        %v3111 = vpack.c.b16 %v2414, %v2413
        %v3112 = vpack.c.b16 %v2416, %v2415
        %v3113 = vpack.c.b16 %v2418, %v2417
        %v3114 = vpack.c.b16 %v2420, %v2419
        %v3115 = vpack.c.b16 %v2422, %v2421
        %v3116 = vpack.c.b16 %v2424, %v2423
        %v3117 = vpack.c.b16 %v2426, %v2425
        %v3118 = vpack.c.b16 %v2428, %v2427
        %v3119 = vpack.c.b16 %v2430, %v2429
        %v3120 = vpack.c.b16 %v2432, %v2431
        %v3121 = vpack.c.b16 %v2434, %v2433
        %v3122 = vpack.c.b16 %v2436, %v2435
        %v3123 = vpack.c.b16 %v2438, %v2437
        %v3124 = vpack.c.b16 %v2440, %v2439
        %v3125 = vpack.c.b16 %v2442, %v2441
        %v3126 = vpack.c.b16 %v2444, %v2443
        %v3127 = vpack.c.b16 %v2446, %v2445
        %v3128 = vpack.c.b16 %v2448, %v2447
        %v3129 = vpack.c.b16 %v2450, %v2449
        %v3130 = vpack.c.b16 %v2452, %v2451
        %v3131 = vpack.c.b16 %v2454, %v2453
        %v3132 = vpack.c.b16 %v2456, %v2455
        %v3133 = vpack.c.b16 %v2458, %v2457
        %v3134 = vpack.c.b16 %v2460, %v2459
        %v3135 = vpack.c.b16 %v2462, %v2461
        %v3136 = vpack.c.b16 %v2464, %v2463
        %v3137 = vpack.c.b16 %v2466, %v2465
        %v3138 = vpack.c.b16 %v2468, %v2467
        %v3139 = vpack.c.b16 %v2470, %v2469
        %v3140 = vpack.c.b16 %v2472, %v2471
        %v3141 = vpack.c.b16 %v2474, %v2473
        %v3142 = vpack.c.b16 %v2476, %v2475
        %v3143 = vpack.c.b16 %v2478, %v2477
        %v3144 = vpack.c.b16 %v2480, %v2479
        %v3145 = vpack.c.b16 %v2482, %v2481
        %v3146 = vpack.c.b16 %v2484, %v2483
        %v3147 = vpack.c.b16 %v2486, %v2485
        %v3148 = vpack.c.b16 %v2488, %v2487
        %v3149 = vpack.c.b16 %v2490, %v2489
        %v3150 = vpack.c.b16 %v2492, %v2491
        %v3151 = vpack.c.b16 %v2494, %v2493
        %v3152 = vpack.c.b16 %v2496, %v2495
        %v3153 = vpack.c.b16 %v2498, %v2497
        %v3154 = vpack.c.b16 %v2500, %v2499
        %v3155 = vpack.c.b16 %v2502, %v2501
        %v3156 = vpack.c.b16 %v2504, %v2503
        %v3157 = vpack.c.b16 %v2506, %v2505
        %v3158 = vpack.c.b16 %v2508, %v2507
        %v3159 = vpack.c.b16 %v2510, %v2509
        %v3160 = vpack.c.b16 %v2512, %v2511
        %v3161 = vpack.c.b16 %v2514, %v2513
        %v3162 = vpack.c.b16 %v2516, %v2515
        %v3163 = vpack.c.b16 %v2518, %v2517
        %v3164 = vpack.c.b16 %v2520, %v2519
        %v3165 = vpack.c.b16 %v2522, %v2521
        %v3166 = vpack.c.b16 %v2524, %v2523
        %v3167 = vpack.c.b16 %v2526, %v2525
        %v3168 = vpack.c.b16 %v2528, %v2527
        %v3169 = vpack.c.b16 %v2530, %v2529
        %v3170 = vpack.c.b16 %v2532, %v2531
        %v3171 = vpack.c.b16 %v2534, %v2533
        %v3172 = vpack.c.b16 %v2536, %v2535
        %v3173 = vpack.c.b16 %v2538, %v2537
        %v3174 = vpack.c.b16 %v2540, %v2539
        %v3175 = vpack.c.b16 %v2542, %v2541
        %v3176 = vpack.c.b16 %v2544, %v2543
        %v3177 = vpack.c.b16 %v2546, %v2545
        %v3178 = vpack.c.b16 %v2548, %v2547
        %v3179 = vpack.c.b16 %v2550, %v2549
        %v3180 = vpack.c.b16 %v2552, %v2551
        %v3181 = vpack.c.b16 %v2554, %v2553
        %v3182 = vpack.c.b16 %v2556, %v2555
        %v3183 = vpack.c.b16 %v2558, %v2557
        %v3184 = vpack.c.b16 %v2560, %v2559
        %v3185 = vpack.c.b16 %v2562, %v2561
        %v3186 = vpack.c.b16 %v2564, %v2563
        %v3187 = vpack.c.b16 %v2566, %v2565
        %v3188 = vpack.c.b16 %v2568, %v2567
        %v3189 = vpack.c.b16 %v2570, %v2569
        %v3190 = vpack.c.b16 %v2572, %v2571
        %v3191 = vpack.c.b16 %v2574, %v2573
        %v3192 = vpack.c.b16 %v2576, %v2575
        %v3193 = vpack.c.b16 %v2578, %v2577
        %v3194 = vpack.c.b16 %v2580, %v2579
        %v3195 = vpack.c.b16 %v2582, %v2581
        %v3196 = vpack.c.b16 %v2584, %v2583
        %v3197 = vpack.c.b16 %v2586, %v2585
        %v3198 = vpack.c.b16 %v2588, %v2587
        %v3199 = vpack.c.b16 %v2590, %v2589
        %v3200 = vpack.c.b16 %v2592, %v2591
        %v3201 = vpack.c.b16 %v2594, %v2593
        %v3202 = vpack.c.b16 %v2596, %v2595
        %v3203 = vpack.c.b16 %v2598, %v2597
        %v3204 = vpack.c.b16 %v2600, %v2599
        %v3205 = vpack.c.b16 %v2602, %v2601
        %v3206 = vpack.c.b16 %v2604, %v2603
        %v3207 = vpack.c.b16 %v2606, %v2605
        %v3208 = vpack.c.b16 %v2608, %v2607
        %v3209 = vpack.c.b16 %v2610, %v2609
        %v3210 = vpack.c.b16 %v2612, %v2611
        %v3211 = vpack.c.b16 %v2614, %v2613
        %v3212 = vpack.c.b16 %v2616, %v2615
        %v3213 = vpack.c.b16 %v2618, %v2617
        %v3214 = vpack.c.b16 %v2620, %v2619
        %v3215 = vpack.c.b16 %v2622, %v2621
        %v3216 = vpack.c.b16 %v2624, %v2623
        %v3217 = vpack.c.b16 %v2626, %v2625
        %v3218 = vpack.c.b16 %v2628, %v2627
        %v3219 = vpack.c.b16 %v2630, %v2629
        %v3220 = vpack.c.b16 %v2632, %v2631
        %v3221 = vpack.c.b16 %v2634, %v2633
        %v3222 = vpack.c.b16 %v2636, %v2635
        %v3223 = vpack.c.b16 %v2638, %v2637
        %v3224 = vpack.c.b16 %v2640, %v2639
        %v3225 = vpack.c.b16 %v2642, %v2641
        %v3226 = vpack.c.b16 %v2644, %v2643
        %v3227 = vpack.c.b16 %v2646, %v2645
        %v3228 = vpack.c.b16 %v2648, %v2647
        %v3229 = vpack.c.b16 %v2650, %v2649
        %v3230 = vpack.c.b16 %v2652, %v2651
        %v3231 = vpack.c.b16 %v2654, %v2653
        %v3232 = vpack.c.b16 %v2656, %v2655
        %v3233 = vpack.c.b16 %v2658, %v2657
        %v3234 = vpack.c.b16 %v2660, %v2659
        %v3235 = vpack.c.b16 %v2662, %v2661
        %v3236 = vpack.c.b16 %v2664, %v2663
        %v3237 = vpack.c.b16 %v2666, %v2665
        %v3238 = vpack.c.b16 %v2668, %v2667
        %v3239 = vpack.c.b16 %v2670, %v2669
        %v3240 = vpack.c.b16 %v2672, %v2671
        %v3241 = vpack.c.b16 %v2674, %v2673
        %v3242 = vpack.c.b16 %v2676, %v2675
        %v3243 = vpack.c.b16 %v2678, %v2677
        %v3244 = vpack.c.b16 %v2680, %v2679
        %v3245 = vpack.c.b16 %v2682, %v2681
        %v3246 = vpack.c.b16 %v2684, %v2683
        %v3247 = vpack.c.b16 %v2686, %v2685
        %v3248 = vpack.c.b16 %v2688, %v2687
        %v3249 = vpack.c.b16 %v2690, %v2689
        %v3250 = vpack.c.b16 %v2692, %v2691
        %v3251 = vpack.c.b16 %v2694, %v2693
        %v3252 = vpack.c.b16 %v2696, %v2695
        %v3253 = vpack.c.b16 %v2698, %v2697
        %v3254 = vpack.c.b16 %v2700, %v2699
        %v3255 = vpack.c.b16 %v2702, %v2701
        %v3256 = vpack.c.b16 %v2704, %v2703
        %v3257 = vpack.c.b16 %v2706, %v2705
        %v3258 = vpack.c.b16 %v2708, %v2707
        %v3259 = vpack.c.b16 %v2710, %v2709
        %v3260 = vpack.c.b16 %v2712, %v2711
        %v3261 = vpack.c.b16 %v2714, %v2713
        %v3262 = vpack.c.b16 %v2716, %v2715
        %v3263 = vpack.c.b16 %v2718, %v2717
        %v3264 = vpack.c.b16 %v2720, %v2719
        %v3265 = vpack.c.b16 %v2722, %v2721
        %v3266 = vpack.c.b16 %v2724, %v2723
        %v3267 = vpack.c.b16 %v2726, %v2725
        %v3268 = vpack.c.b16 %v2728, %v2727
        %v3269 = vpack.c.b16 %v2730, %v2729
        %v3270 = vpack.c.b16 %v2732, %v2731
        %v3271 = vpack.c.b16 %v2734, %v2733
        %v3272 = vpack.c.b16 %v2736, %v2735
        %v3273 = vpack.c.b16 %v2738, %v2737
        %v3274 = vpack.c.b16 %v2740, %v2739
        %v3275 = vpack.c.b16 %v2742, %v2741
        %v3276 = vpack.c.b16 %v2744, %v2743
        %v3277 = vpack.c.b16 %v2746, %v2745
        %v3278 = vpack.c.b16 %v2748, %v2747
        %v3279 = vpack.c.b16 %v2750, %v2749
        %v3280 = vpack.c.b16 %v2752, %v2751
        %v3281 = vpack.c.b16 %v2754, %v2753
        %v3282 = vpack.c.b16 %v2756, %v2755
        %v3283 = vpack.c.b16 %v2758, %v2757
        %v3284 = vpack.c.b16 %v2760, %v2759
        %v3285 = vpack.c.b16 %v2762, %v2761
        %v3286 = vpack.c.b16 %v2764, %v2763
        %v3287 = vpack.c.b16 %v2766, %v2765
        %v3288 = vpack.c.b16 %v2768, %v2767
        %v3289 = vpack.c.b16 %v2770, %v2769
        %v3290 = vpack.c.b16 %v2772, %v2771
        %v3291 = vpack.c.b16 %v2774, %v2773
        %v3292 = vpack.c.b16 %v2776, %v2775
        %v3293 = vpack.c.b16 %v2778, %v2777
        %v3294 = vpack.c.b16 %v2780, %v2779
        %v3295 = vpack.c.b16 %v2782, %v2781
        %v3296 = vpack.c.b16 %v2784, %v2783
        %v3297 = vpack.c.b16 %v2786, %v2785
        %v3298 = vpack.c.b16 %v2788, %v2787
        %v3299 = vpack.c.b16 %v2790, %v2789
        %v3300 = vpack.c.b16 %v2792, %v2791
        %v3301 = vpack.c.b16 %v2794, %v2793
        %v3302 = vpack.c.b16 %v2796, %v2795
        %v3303 = vpack.c.b16 %v2798, %v2797
        %v3304 = vpack.c.b16 %v2800, %v2799
        %v3305 = vpack.c.b16 %v2802, %v2801
        %v3306 = vpack.c.b16 %v2804, %v2803
        %v3307 = vpack.c.b16 %v2806, %v2805
        %v3308 = vpack.c.b16 %v2808, %v2807
        %v3309 = vpack.c.b16 %v2810, %v2809
        %v3310 = vpack.c.b16 %v2812, %v2811
        %v3311 = vpack.c.b16 %v2814, %v2813
        %v3312 = vpack.c.b16 %v2816, %v2815
        %v3313 = vpack.c.b16 %v2818, %v2817
        %v3314 = vpack.c.b16 %v2820, %v2819
        %v3315 = vpack.c.b16 %v2822, %v2821
        %v3316 = vpack.c.b16 %v2824, %v2823
        %v3317 = vpack.c.b16 %v2826, %v2825
        %v3318 = vpack.c.b16 %v2828, %v2827
        %v3319 = vpack.c.b16 %v2830, %v2829
        %v3320 = vpack.c.b16 %v2832, %v2831
        %v3321 = vpack.c.b16 %v2834, %v2833
        %v3322 = vpack.c.b16 %v2836, %v2835
        %v3323 = vpack.c.b16 %v2838, %v2837
        %v3324 = vpack.c.b16 %v2840, %v2839
        %v3325 = vpack.c.b16 %v2842, %v2841
        %v3326 = vpack.c.b16 %v2844, %v2843
        %v3327 = vpack.c.b16 %v2846, %v2845
        %v3328 = vpack.c.b16 %v2848, %v2847
        %v3329 = vpack.c.b16 %v2850, %v2849
        %v3330 = vpack.c.b16 %v2852, %v2851
        %v3331 = vpack.c.b16 %v2854, %v2853
        %v3332 = vpack.c.b16 %v2856, %v2855
        %v3333 = vpack.c.b16 %v2858, %v2857
        %v3334 = vpack.c.b16 %v2860, %v2859
        %v3335 = vpack.c.b16 %v2862, %v2861
        %v3336 = vpack.c.b16 %v2864, %v2863
        %v3337 = vpack.c.b16 %v2866, %v2865
        %v3338 = vpack.c.b16 %v2868, %v2867
        %v3339 = vpack.c.b16 %v2870, %v2869
        %v3340 = vpack.c.b16 %v2872, %v2871
        %v3341 = vpack.c.b16 %v2874, %v2873
        %v3342 = vpack.c.b16 %v2876, %v2875
        %v3343 = vpack.c.b16 %v2878, %v2877
        %v3344 = vpack.c.b16 %v2880, %v2879
        %v3345 = vpack.c.b16 %v2882, %v2881
        %v3346 = vpack.c.b16 %v2884, %v2883
        %v3347 = vpack.c.b16 %v2886, %v2885
        %v3348 = vpack.c.b16 %v2888, %v2887
        %v3349 = vpack.c.b16 %v2890, %v2889
        %v3350 = vpack.c.b16 %v2892, %v2891
        %v3351 = vpack.c.b16 %v2894, %v2893
        %v3352 = vpack.c.b16 %v2896, %v2895
        %v3353 = vpack.c.b16 %v2898, %v2897
        %v3354 = vpack.c.b16 %v2900, %v2899
        %v3355 = vpack.c.b16 %v2902, %v2901
        %v3356 = vpack.c.b16 %v2904, %v2903
        %v3357 = vpack.c.b16 %v2906, %v2905
        %v3358 = vpack.c.b16 %v2908, %v2907
        %v3359 = vpack.c.b16 %v2910, %v2909
        %v3360 = vpack.c.b16 %v2912, %v2911
        %v3361 = vpack.c.b16 %v2914, %v2913
        %v3362 = vpack.c.b16 %v2916, %v2915
        %v3363 = vpack.c.b16 %v2918, %v2917
        %v3364 = vpack.c.b16 %v2920, %v2919
        %v3365 = vpack.c.b16 %v2922, %v2921
        %v3366 = vpack.c.b16 %v2924, %v2923
        %v3367 = vpack.c.b16 %v2926, %v2925
        %v3368 = vpack.c.b16 %v2928, %v2927
        %v3369 = vpack.c.b16 %v2930, %v2929
        %v3370 = vpack.c.b16 %v2932, %v2931
        %v3371 = vpack.c.b16 %v2934, %v2933
        %v3372 = vpack.c.b16 %v2936, %v2935
        %v3373 = vpack.c.b16 %v2938, %v2937
        %v3374 = vpack.c.b16 %v2940, %v2939
        %v3375 = vpack.c.b16 %v2942, %v2941
        %v3376 = vpack.c.b16 %v2944, %v2943
        %v3377 = vpack.c.b16 %v2946, %v2945
        %v3378 = vpack.c.b16 %v2948, %v2947
        %v3379 = vpack.c.b16 %v2950, %v2949
        %v3380 = vpack.c.b16 %v2952, %v2951
        %v3381 = vpack.c.b16 %v2954, %v2953
        %v3382 = vpack.c.b16 %v2956, %v2955
        %v3383 = vpack.c.b16 %v2958, %v2957
        %v3384 = vpack.c.b16 %v2960, %v2959
        %v3385 = vpack.c.b16 %v2962, %v2961
        %v3386 = vpack.c.b16 %v2964, %v2963
        %v3387 = vpack.c.b16 %v2966, %v2965
        %v3388 = vpack.c.b16 %v2968, %v2967
        %v3389 = vpack.c.b16 %v2970, %v2969
        %v3390 = vpack.c.b16 %v2972, %v2971
        %v3391 = vpack.c.b16 %v2974, %v2973
        %v3392 = vpack.c.b16 %v2976, %v2975
        %v3393 = vpack.c.b16 %v2978, %v2977
        %v3394 = vpack.c.b16 %v2980, %v2979
        %v3395 = vpack.c.b16 %v2982, %v2981
        %v3396 = vpack.c.b16 %v2984, %v2983
        %v3397 = vpack.c.b16 %v2986, %v2985
        %v3398 = vpack.c.b16 %v2988, %v2987
        %v3399 = vpack.c.b16 %v2990, %v2989
        %v3400 = vpack.c.b16 %v2992, %v2991
        %v3401 = vpack.c.b16 %v2994, %v2993
        %v3402 = vpack.c.b16 %v2996, %v2995
        %v3403 = vpack.c.b16 %v2998, %v2997
        %v3404 = vpack.c.b16 %v3000, %v2999
        %v3405 = vpack.c.b16 %v3002, %v3001
        %v3406 = vpack.c.b16 %v3004, %v3003
        %v3407 = vpack.c.b16 %v3006, %v3005
        %v3408 = vpack.c.b16 %v3008, %v3007
        %v3409 = vpack.c.b16 %v3010, %v3009
        %v3410 = vpack.c.b16 %v3012, %v3011
        %v3411 = vpack.c.b16 %v3014, %v3013
        %v3412 = vpack.c.b16 %v3016, %v3015
        %v3413 = vpack.c.b16 %v3018, %v3017
        %v3414 = vpack.c.b16 %v3020, %v3019
        %v3415 = vpack.c.b16 %v3022, %v3021
        %v3416 = vpack.c.b16 %v3024, %v3023
        %v3417 = vpack.c.b16 %v3026, %v3025
        %v3418 = vpack.c.b16 %v3028, %v3027
        %v3419 = vpack.c.b16 %v3030, %v3029
        %v3420 = vpack.c.b16 %v3032, %v3031
        %v3421 = vpack.c.b16 %v3034, %v3033
        %v3422 = vpack.c.b16 %v3036, %v3035
        %v3423 = vpack.c.b16 %v3038, %v3037
        %v3424 = vpack.c.b16 %v3040, %v3039
        %3809 = vmatprep.subr.bf16.mxu0 0
        %3810 = vmatpush1.bf16.msra.mxu0 %v3048
        %3811 = vmatprep.subr.bf16.mxu0 0
        %3812 = vmatpush1.bf16.msra.mxu0 %v3047
        %3813 = vmatprep.subr.bf16.mxu0 0
        %3814 = vmatpush1.bf16.msra.mxu0 %v3046
        %3815 = vmatprep.subr.bf16.mxu0 0
        %3816 = vmatpush1.bf16.msra.mxu0 %v3045
        %3817 = vmatprep.subr.bf16.mxu0 0
        %3818 = vmatpush1.bf16.msra.mxu0 %v3044
        %3819 = vmatprep.subr.bf16.mxu0 0
        %3820 = vmatpush1.bf16.msra.mxu0 %v3043
        %3821 = vmatprep.subr.bf16.mxu0 0
        %3822 = vmatpush1.bf16.msra.mxu0 %v3042
        %3823 = vmatprep.subr.bf16.mxu0 0
        %3824 = vmatpush1.bf16.msra.mxu0 %v3041
        %3825 = vmatprep.subr.bf16.mxu0 0
        %3826 = vmatpush2.bf16.msra.mxu0 %v3056
        %3827 = vmatprep.subr.bf16.mxu0 0
        %3828 = vmatpush2.bf16.msra.mxu0 %v3055
        %3829 = vmatprep.subr.bf16.mxu0 0
        %3830 = vmatpush2.bf16.msra.mxu0 %v3054
        %3831 = vmatprep.subr.bf16.mxu0 0
        %3832 = vmatpush2.bf16.msra.mxu0 %v3053
        %3833 = vmatprep.subr.bf16.mxu0 0
        %3834 = vmatpush2.bf16.msra.mxu0 %v3052
        %3835 = vmatprep.subr.bf16.mxu0 0
        %3836 = vmatpush2.bf16.msra.mxu0 %v3051
        %3837 = vmatprep.subr.bf16.mxu0 0
        %3838 = vmatpush2.bf16.msra.mxu0 %v3050
        %3839 = vmatprep.subr.bf16.mxu0 0
        %3840 = vmatpush2.bf16.msra.mxu0 %v3049
        %3841 = vmatprep.mubr.bf16.mxu0 %v689
        %3842 = vmatmul.mubr.bf16.gmra.mxu0 %v688
        %v3843 = vpop.f32.mrf.mxu0
        %v3844 = vadd.f32 0.0, %v3843
        %v3845 = vpop.f32.mrf.mxu0
        %v3846 = vpop.f32.mrf.mxu0
        %v3847 = vpop.f32.mrf.mxu0
        %3848 = vdwg.mxu0
        %3849 = vmatprep.subr.bf16.mxu0 0
        %3850 = vmatpush1.bf16.msra.mxu0 %v3064
        %3851 = vmatprep.subr.bf16.mxu0 0
        %3852 = vmatpush1.bf16.msra.mxu0 %v3063
        %3853 = vmatprep.subr.bf16.mxu0 0
        %3854 = vmatpush1.bf16.msra.mxu0 %v3062
        %3855 = vmatprep.subr.bf16.mxu0 0
        %3856 = vmatpush1.bf16.msra.mxu0 %v3061
        %3857 = vmatprep.subr.bf16.mxu0 0
        %3858 = vmatpush1.bf16.msra.mxu0 %v3060
        %3859 = vmatprep.subr.bf16.mxu0 0
        %3860 = vmatpush1.bf16.msra.mxu0 %v3059
        %3861 = vmatprep.subr.bf16.mxu0 0
        %3862 = vmatpush1.bf16.msra.mxu0 %v3058
        %3863 = vmatprep.subr.bf16.mxu0 0
        %3864 = vmatpush1.bf16.msra.mxu0 %v3057
        %3865 = vmatprep.subr.bf16.mxu0 0
        %3866 = vmatpush2.bf16.msra.mxu0 %v3072
        %3867 = vmatprep.subr.bf16.mxu0 0
        %3868 = vmatpush2.bf16.msra.mxu0 %v3071
        %3869 = vmatprep.subr.bf16.mxu0 0
        %3870 = vmatpush2.bf16.msra.mxu0 %v3070
        %3871 = vmatprep.subr.bf16.mxu0 0
        %3872 = vmatpush2.bf16.msra.mxu0 %v3069
        %3873 = vmatprep.subr.bf16.mxu0 0
        %3874 = vmatpush2.bf16.msra.mxu0 %v3068
        %3875 = vmatprep.subr.bf16.mxu0 0
        %3876 = vmatpush2.bf16.msra.mxu0 %v3067
        %3877 = vmatprep.subr.bf16.mxu0 0
        %3878 = vmatpush2.bf16.msra.mxu0 %v3066
        %3879 = vmatprep.subr.bf16.mxu0 0
        %3880 = vmatpush2.bf16.msra.mxu0 %v3065
        %3881 = vmatprep.mubr.bf16.mxu0 %v691
        %3882 = vmatmul.mubr.bf16.gmra.mxu0 %v690
        %v3883 = vpop.f32.mrf.mxu0
        %v3884 = vadd.f32 %v3844, %v3883
        %v3885 = vpop.f32.mrf.mxu0
        %v3886 = vpop.f32.mrf.mxu0
        %v3887 = vpop.f32.mrf.mxu0
        %3888 = vdwg.mxu0
        %3889 = vmatprep.subr.bf16.mxu0 0
        %3890 = vmatpush1.bf16.msra.mxu0 %v3080
        %3891 = vmatprep.subr.bf16.mxu0 0
        %3892 = vmatpush1.bf16.msra.mxu0 %v3079
        %3893 = vmatprep.subr.bf16.mxu0 0
        %3894 = vmatpush1.bf16.msra.mxu0 %v3078
        %3895 = vmatprep.subr.bf16.mxu0 0
        %3896 = vmatpush1.bf16.msra.mxu0 %v3077
        %3897 = vmatprep.subr.bf16.mxu0 0
        %3898 = vmatpush1.bf16.msra.mxu0 %v3076
        %3899 = vmatprep.subr.bf16.mxu0 0
        %3900 = vmatpush1.bf16.msra.mxu0 %v3075
        %3901 = vmatprep.subr.bf16.mxu0 0
        %3902 = vmatpush1.bf16.msra.mxu0 %v3074
        %3903 = vmatprep.subr.bf16.mxu0 0
        %3904 = vmatpush1.bf16.msra.mxu0 %v3073
        %3905 = vmatprep.subr.bf16.mxu0 0
        %3906 = vmatpush2.bf16.msra.mxu0 %v3088
        %3907 = vmatprep.subr.bf16.mxu0 0
        %3908 = vmatpush2.bf16.msra.mxu0 %v3087
        %3909 = vmatprep.subr.bf16.mxu0 0
        %3910 = vmatpush2.bf16.msra.mxu0 %v3086
        %3911 = vmatprep.subr.bf16.mxu0 0
        %3912 = vmatpush2.bf16.msra.mxu0 %v3085
        %3913 = vmatprep.subr.bf16.mxu0 0
        %3914 = vmatpush2.bf16.msra.mxu0 %v3084
        %3915 = vmatprep.subr.bf16.mxu0 0
        %3916 = vmatpush2.bf16.msra.mxu0 %v3083
        %3917 = vmatprep.subr.bf16.mxu0 0
        %3918 = vmatpush2.bf16.msra.mxu0 %v3082
        %3919 = vmatprep.subr.bf16.mxu0 0
        %3920 = vmatpush2.bf16.msra.mxu0 %v3081
        %3921 = vmatprep.mubr.bf16.mxu0 %v693
        %3922 = vmatmul.mubr.bf16.gmra.mxu0 %v692
        %v3923 = vpop.f32.mrf.mxu0
        %v3924 = vadd.f32 %v3884, %v3923
        %v3925 = vpop.f32.mrf.mxu0
        %v3926 = vpop.f32.mrf.mxu0
        %v3927 = vpop.f32.mrf.mxu0
        %3928 = vdwg.mxu0
        %3929 = vmatprep.subr.bf16.mxu0 0
        %3930 = vmatpush1.bf16.msra.mxu0 %v3096
        %3931 = vmatprep.subr.bf16.mxu0 0
        %3932 = vmatpush1.bf16.msra.mxu0 %v3095
        %3933 = vmatprep.subr.bf16.mxu0 0
        %3934 = vmatpush1.bf16.msra.mxu0 %v3094
        %3935 = vmatprep.subr.bf16.mxu0 0
        %3936 = vmatpush1.bf16.msra.mxu0 %v3093
        %3937 = vmatprep.subr.bf16.mxu0 0
        %3938 = vmatpush1.bf16.msra.mxu0 %v3092
        %3939 = vmatprep.subr.bf16.mxu0 0
        %3940 = vmatpush1.bf16.msra.mxu0 %v3091
        %3941 = vmatprep.subr.bf16.mxu0 0
        %3942 = vmatpush1.bf16.msra.mxu0 %v3090
        %3943 = vmatprep.subr.bf16.mxu0 0
        %3944 = vmatpush1.bf16.msra.mxu0 %v3089
        %3945 = vmatprep.subr.bf16.mxu0 0
        %3946 = vmatpush2.bf16.msra.mxu0 %v3104
        %3947 = vmatprep.subr.bf16.mxu0 0
        %3948 = vmatpush2.bf16.msra.mxu0 %v3103
        %3949 = vmatprep.subr.bf16.mxu0 0
        %3950 = vmatpush2.bf16.msra.mxu0 %v3102
        %3951 = vmatprep.subr.bf16.mxu0 0
        %3952 = vmatpush2.bf16.msra.mxu0 %v3101
        %3953 = vmatprep.subr.bf16.mxu0 0
        %3954 = vmatpush2.bf16.msra.mxu0 %v3100
        %3955 = vmatprep.subr.bf16.mxu0 0
        %3956 = vmatpush2.bf16.msra.mxu0 %v3099
        %3957 = vmatprep.subr.bf16.mxu0 0
        %3958 = vmatpush2.bf16.msra.mxu0 %v3098
        %3959 = vmatprep.subr.bf16.mxu0 0
        %3960 = vmatpush2.bf16.msra.mxu0 %v3097
        %3961 = vmatprep.mubr.bf16.mxu0 %v695
        %3962 = vmatmul.mubr.bf16.gmra.mxu0 %v694
        %v3963 = vpop.f32.mrf.mxu0
        %v3964 = vadd.f32 %v3924, %v3963
        %v3965 = vpop.f32.mrf.mxu0
        %v3966 = vpop.f32.mrf.mxu0
        %v3967 = vpop.f32.mrf.mxu0
        %3968 = vdwg.mxu0
        %3969 = vmatprep.subr.bf16.mxu0 0
        %3970 = vmatpush1.bf16.msra.mxu0 %v3112
        %3971 = vmatprep.subr.bf16.mxu0 0
        %3972 = vmatpush1.bf16.msra.mxu0 %v3111
        %3973 = vmatprep.subr.bf16.mxu0 0
        %3974 = vmatpush1.bf16.msra.mxu0 %v3110
        %3975 = vmatprep.subr.bf16.mxu0 0
        %3976 = vmatpush1.bf16.msra.mxu0 %v3109
        %3977 = vmatprep.subr.bf16.mxu0 0
        %3978 = vmatpush1.bf16.msra.mxu0 %v3108
        %3979 = vmatprep.subr.bf16.mxu0 0
        %3980 = vmatpush1.bf16.msra.mxu0 %v3107
        %3981 = vmatprep.subr.bf16.mxu0 0
        %3982 = vmatpush1.bf16.msra.mxu0 %v3106
        %3983 = vmatprep.subr.bf16.mxu0 0
        %3984 = vmatpush1.bf16.msra.mxu0 %v3105
        %3985 = vmatprep.subr.bf16.mxu0 0
        %3986 = vmatpush2.bf16.msra.mxu0 %v3120
        %3987 = vmatprep.subr.bf16.mxu0 0
        %3988 = vmatpush2.bf16.msra.mxu0 %v3119
        %3989 = vmatprep.subr.bf16.mxu0 0
        %3990 = vmatpush2.bf16.msra.mxu0 %v3118
        %3991 = vmatprep.subr.bf16.mxu0 0
        %3992 = vmatpush2.bf16.msra.mxu0 %v3117
        %3993 = vmatprep.subr.bf16.mxu0 0
        %3994 = vmatpush2.bf16.msra.mxu0 %v3116
        %3995 = vmatprep.subr.bf16.mxu0 0
        %3996 = vmatpush2.bf16.msra.mxu0 %v3115
        %3997 = vmatprep.subr.bf16.mxu0 0
        %3998 = vmatpush2.bf16.msra.mxu0 %v3114
        %3999 = vmatprep.subr.bf16.mxu0 0
        %4000 = vmatpush2.bf16.msra.mxu0 %v3113
        %4001 = vmatprep.mubr.bf16.mxu0 %v697
        %4002 = vmatmul.mubr.bf16.gmra.mxu0 %v696
        %v4003 = vpop.f32.mrf.mxu0
        %v4004 = vadd.f32 %v3964, %v4003
        %v4005 = vpop.f32.mrf.mxu0
        %v4006 = vpop.f32.mrf.mxu0
        %v4007 = vpop.f32.mrf.mxu0
        %4008 = vdwg.mxu0
        %4009 = vmatprep.subr.bf16.mxu0 0
        %4010 = vmatpush1.bf16.msra.mxu0 %v3128
        %4011 = vmatprep.subr.bf16.mxu0 0
        %4012 = vmatpush1.bf16.msra.mxu0 %v3127
        %4013 = vmatprep.subr.bf16.mxu0 0
        %4014 = vmatpush1.bf16.msra.mxu0 %v3126
        %4015 = vmatprep.subr.bf16.mxu0 0
        %4016 = vmatpush1.bf16.msra.mxu0 %v3125
        %4017 = vmatprep.subr.bf16.mxu0 0
        %4018 = vmatpush1.bf16.msra.mxu0 %v3124
        %4019 = vmatprep.subr.bf16.mxu0 0
        %4020 = vmatpush1.bf16.msra.mxu0 %v3123
        %4021 = vmatprep.subr.bf16.mxu0 0
        %4022 = vmatpush1.bf16.msra.mxu0 %v3122
        %4023 = vmatprep.subr.bf16.mxu0 0
        %4024 = vmatpush1.bf16.msra.mxu0 %v3121
        %4025 = vmatprep.subr.bf16.mxu0 0
        %4026 = vmatpush2.bf16.msra.mxu0 %v3136
        %4027 = vmatprep.subr.bf16.mxu0 0
        %4028 = vmatpush2.bf16.msra.mxu0 %v3135
        %4029 = vmatprep.subr.bf16.mxu0 0
        %4030 = vmatpush2.bf16.msra.mxu0 %v3134
        %4031 = vmatprep.subr.bf16.mxu0 0
        %4032 = vmatpush2.bf16.msra.mxu0 %v3133
        %4033 = vmatprep.subr.bf16.mxu0 0
        %4034 = vmatpush2.bf16.msra.mxu0 %v3132
        %4035 = vmatprep.subr.bf16.mxu0 0
        %4036 = vmatpush2.bf16.msra.mxu0 %v3131
        %4037 = vmatprep.subr.bf16.mxu0 0
        %4038 = vmatpush2.bf16.msra.mxu0 %v3130
        %4039 = vmatprep.subr.bf16.mxu0 0
        %4040 = vmatpush2.bf16.msra.mxu0 %v3129
        %4041 = vmatprep.mubr.bf16.mxu0 %v699
        %4042 = vmatmul.mubr.bf16.gmra.mxu0 %v698
        %v4043 = vpop.f32.mrf.mxu0
        %v4044 = vadd.f32 %v4004, %v4043
        %v4045 = vpop.f32.mrf.mxu0
        %v4046 = vpop.f32.mrf.mxu0
        %v4047 = vpop.f32.mrf.mxu0
        %4048 = vdwg.mxu0
        %4049 = vmatprep.subr.bf16.mxu0 0
        %4050 = vmatpush1.bf16.msra.mxu0 %v3144
        %4051 = vmatprep.subr.bf16.mxu0 0
        %4052 = vmatpush1.bf16.msra.mxu0 %v3143
        %4053 = vmatprep.subr.bf16.mxu0 0
        %4054 = vmatpush1.bf16.msra.mxu0 %v3142
        %4055 = vmatprep.subr.bf16.mxu0 0
        %4056 = vmatpush1.bf16.msra.mxu0 %v3141
        %4057 = vmatprep.subr.bf16.mxu0 0
        %4058 = vmatpush1.bf16.msra.mxu0 %v3140
        %4059 = vmatprep.subr.bf16.mxu0 0
        %4060 = vmatpush1.bf16.msra.mxu0 %v3139
        %4061 = vmatprep.subr.bf16.mxu0 0
        %4062 = vmatpush1.bf16.msra.mxu0 %v3138
        %4063 = vmatprep.subr.bf16.mxu0 0
        %4064 = vmatpush1.bf16.msra.mxu0 %v3137
        %4065 = vmatprep.subr.bf16.mxu0 0
        %4066 = vmatpush2.bf16.msra.mxu0 %v3152
        %4067 = vmatprep.subr.bf16.mxu0 0
        %4068 = vmatpush2.bf16.msra.mxu0 %v3151
        %4069 = vmatprep.subr.bf16.mxu0 0
        %4070 = vmatpush2.bf16.msra.mxu0 %v3150
        %4071 = vmatprep.subr.bf16.mxu0 0
        %4072 = vmatpush2.bf16.msra.mxu0 %v3149
        %4073 = vmatprep.subr.bf16.mxu0 0
        %4074 = vmatpush2.bf16.msra.mxu0 %v3148
        %4075 = vmatprep.subr.bf16.mxu0 0
        %4076 = vmatpush2.bf16.msra.mxu0 %v3147
        %4077 = vmatprep.subr.bf16.mxu0 0
        %4078 = vmatpush2.bf16.msra.mxu0 %v3146
        %4079 = vmatprep.subr.bf16.mxu0 0
        %4080 = vmatpush2.bf16.msra.mxu0 %v3145
        %4081 = vmatprep.mubr.bf16.mxu0 %v701
        %4082 = vmatmul.mubr.bf16.gmra.mxu0 %v700
        %v4083 = vpop.f32.mrf.mxu0
        %v4084 = vadd.f32 %v4044, %v4083
        %v4085 = vpop.f32.mrf.mxu0
        %v4086 = vpop.f32.mrf.mxu0
        %v4087 = vpop.f32.mrf.mxu0
        %4088 = vdwg.mxu0
        %4089 = vmatprep.subr.bf16.mxu0 0
        %4090 = vmatpush1.bf16.msra.mxu0 %v3160
        %4091 = vmatprep.subr.bf16.mxu0 0
        %4092 = vmatpush1.bf16.msra.mxu0 %v3159
        %4093 = vmatprep.subr.bf16.mxu0 0
        %4094 = vmatpush1.bf16.msra.mxu0 %v3158
        %4095 = vmatprep.subr.bf16.mxu0 0
        %4096 = vmatpush1.bf16.msra.mxu0 %v3157
        %4097 = vmatprep.subr.bf16.mxu0 0
        %4098 = vmatpush1.bf16.msra.mxu0 %v3156
        %4099 = vmatprep.subr.bf16.mxu0 0
        %4100 = vmatpush1.bf16.msra.mxu0 %v3155
        %4101 = vmatprep.subr.bf16.mxu0 0
        %4102 = vmatpush1.bf16.msra.mxu0 %v3154
        %4103 = vmatprep.subr.bf16.mxu0 0
        %4104 = vmatpush1.bf16.msra.mxu0 %v3153
        %4105 = vmatprep.subr.bf16.mxu0 0
        %4106 = vmatpush2.bf16.msra.mxu0 %v3168
        %4107 = vmatprep.subr.bf16.mxu0 0
        %4108 = vmatpush2.bf16.msra.mxu0 %v3167
        %4109 = vmatprep.subr.bf16.mxu0 0
        %4110 = vmatpush2.bf16.msra.mxu0 %v3166
        %4111 = vmatprep.subr.bf16.mxu0 0
        %4112 = vmatpush2.bf16.msra.mxu0 %v3165
        %4113 = vmatprep.subr.bf16.mxu0 0
        %4114 = vmatpush2.bf16.msra.mxu0 %v3164
        %4115 = vmatprep.subr.bf16.mxu0 0
        %4116 = vmatpush2.bf16.msra.mxu0 %v3163
        %4117 = vmatprep.subr.bf16.mxu0 0
        %4118 = vmatpush2.bf16.msra.mxu0 %v3162
        %4119 = vmatprep.subr.bf16.mxu0 0
        %4120 = vmatpush2.bf16.msra.mxu0 %v3161
        %4121 = vmatprep.mubr.bf16.mxu0 %v703
        %4122 = vmatmul.mubr.bf16.gmra.mxu0 %v702
        %v4123 = vpop.f32.mrf.mxu0
        %v4124 = vadd.f32 %v4084, %v4123
        %v4125 = vpop.f32.mrf.mxu0
        %v4126 = vpop.f32.mrf.mxu0
        %v4127 = vpop.f32.mrf.mxu0
        %4128 = vdwg.mxu0
        %4129 = vmatprep.subr.bf16.mxu0 0
        %4130 = vmatpush1.bf16.msra.mxu0 %v3176
        %4131 = vmatprep.subr.bf16.mxu0 0
        %4132 = vmatpush1.bf16.msra.mxu0 %v3175
        %4133 = vmatprep.subr.bf16.mxu0 0
        %4134 = vmatpush1.bf16.msra.mxu0 %v3174
        %4135 = vmatprep.subr.bf16.mxu0 0
        %4136 = vmatpush1.bf16.msra.mxu0 %v3173
        %4137 = vmatprep.subr.bf16.mxu0 0
        %4138 = vmatpush1.bf16.msra.mxu0 %v3172
        %4139 = vmatprep.subr.bf16.mxu0 0
        %4140 = vmatpush1.bf16.msra.mxu0 %v3171
        %4141 = vmatprep.subr.bf16.mxu0 0
        %4142 = vmatpush1.bf16.msra.mxu0 %v3170
        %4143 = vmatprep.subr.bf16.mxu0 0
        %4144 = vmatpush1.bf16.msra.mxu0 %v3169
        %4145 = vmatprep.subr.bf16.mxu0 0
        %4146 = vmatpush2.bf16.msra.mxu0 %v3184
        %4147 = vmatprep.subr.bf16.mxu0 0
        %4148 = vmatpush2.bf16.msra.mxu0 %v3183
        %4149 = vmatprep.subr.bf16.mxu0 0
        %4150 = vmatpush2.bf16.msra.mxu0 %v3182
        %4151 = vmatprep.subr.bf16.mxu0 0
        %4152 = vmatpush2.bf16.msra.mxu0 %v3181
        %4153 = vmatprep.subr.bf16.mxu0 0
        %4154 = vmatpush2.bf16.msra.mxu0 %v3180
        %4155 = vmatprep.subr.bf16.mxu0 0
        %4156 = vmatpush2.bf16.msra.mxu0 %v3179
        %4157 = vmatprep.subr.bf16.mxu0 0
        %4158 = vmatpush2.bf16.msra.mxu0 %v3178
        %4159 = vmatprep.subr.bf16.mxu0 0
        %4160 = vmatpush2.bf16.msra.mxu0 %v3177
        %4161 = vmatprep.mubr.bf16.mxu0 %v705
        %4162 = vmatmul.mubr.bf16.gmra.mxu0 %v704
        %v4163 = vpop.f32.mrf.mxu0
        %v4164 = vadd.f32 %v4124, %v4163
        %v4165 = vpop.f32.mrf.mxu0
        %v4166 = vpop.f32.mrf.mxu0
        %v4167 = vpop.f32.mrf.mxu0
        %4168 = vdwg.mxu0
        %4169 = vmatprep.subr.bf16.mxu0 0
        %4170 = vmatpush1.bf16.msra.mxu0 %v3192
        %4171 = vmatprep.subr.bf16.mxu0 0
        %4172 = vmatpush1.bf16.msra.mxu0 %v3191
        %4173 = vmatprep.subr.bf16.mxu0 0
        %4174 = vmatpush1.bf16.msra.mxu0 %v3190
        %4175 = vmatprep.subr.bf16.mxu0 0
        %4176 = vmatpush1.bf16.msra.mxu0 %v3189
        %4177 = vmatprep.subr.bf16.mxu0 0
        %4178 = vmatpush1.bf16.msra.mxu0 %v3188
        %4179 = vmatprep.subr.bf16.mxu0 0
        %4180 = vmatpush1.bf16.msra.mxu0 %v3187
        %4181 = vmatprep.subr.bf16.mxu0 0
        %4182 = vmatpush1.bf16.msra.mxu0 %v3186
        %4183 = vmatprep.subr.bf16.mxu0 0
        %4184 = vmatpush1.bf16.msra.mxu0 %v3185
        %4185 = vmatprep.subr.bf16.mxu0 0
        %4186 = vmatpush2.bf16.msra.mxu0 %v3200
        %4187 = vmatprep.subr.bf16.mxu0 0
        %4188 = vmatpush2.bf16.msra.mxu0 %v3199
        %4189 = vmatprep.subr.bf16.mxu0 0
        %4190 = vmatpush2.bf16.msra.mxu0 %v3198
        %4191 = vmatprep.subr.bf16.mxu0 0
        %4192 = vmatpush2.bf16.msra.mxu0 %v3197
        %4193 = vmatprep.subr.bf16.mxu0 0
        %4194 = vmatpush2.bf16.msra.mxu0 %v3196
        %4195 = vmatprep.subr.bf16.mxu0 0
        %4196 = vmatpush2.bf16.msra.mxu0 %v3195
        %4197 = vmatprep.subr.bf16.mxu0 0
        %4198 = vmatpush2.bf16.msra.mxu0 %v3194
        %4199 = vmatprep.subr.bf16.mxu0 0
        %4200 = vmatpush2.bf16.msra.mxu0 %v3193
        %4201 = vmatprep.mubr.bf16.mxu0 %v707
        %4202 = vmatmul.mubr.bf16.gmra.mxu0 %v706
        %v4203 = vpop.f32.mrf.mxu0
        %v4204 = vadd.f32 %v4164, %v4203
        %v4205 = vpop.f32.mrf.mxu0
        %v4206 = vpop.f32.mrf.mxu0
        %v4207 = vpop.f32.mrf.mxu0
        %4208 = vdwg.mxu0
        %4209 = vmatprep.subr.bf16.mxu0 0
        %4210 = vmatpush1.bf16.msra.mxu0 %v3208
        %4211 = vmatprep.subr.bf16.mxu0 0
        %4212 = vmatpush1.bf16.msra.mxu0 %v3207
        %4213 = vmatprep.subr.bf16.mxu0 0
        %4214 = vmatpush1.bf16.msra.mxu0 %v3206
        %4215 = vmatprep.subr.bf16.mxu0 0
        %4216 = vmatpush1.bf16.msra.mxu0 %v3205
        %4217 = vmatprep.subr.bf16.mxu0 0
        %4218 = vmatpush1.bf16.msra.mxu0 %v3204
        %4219 = vmatprep.subr.bf16.mxu0 0
        %4220 = vmatpush1.bf16.msra.mxu0 %v3203
        %4221 = vmatprep.subr.bf16.mxu0 0
        %4222 = vmatpush1.bf16.msra.mxu0 %v3202
        %4223 = vmatprep.subr.bf16.mxu0 0
        %4224 = vmatpush1.bf16.msra.mxu0 %v3201
        %4225 = vmatprep.subr.bf16.mxu0 0
        %4226 = vmatpush2.bf16.msra.mxu0 %v3216
        %4227 = vmatprep.subr.bf16.mxu0 0
        %4228 = vmatpush2.bf16.msra.mxu0 %v3215
        %4229 = vmatprep.subr.bf16.mxu0 0
        %4230 = vmatpush2.bf16.msra.mxu0 %v3214
        %4231 = vmatprep.subr.bf16.mxu0 0
        %4232 = vmatpush2.bf16.msra.mxu0 %v3213
        %4233 = vmatprep.subr.bf16.mxu0 0
        %4234 = vmatpush2.bf16.msra.mxu0 %v3212
        %4235 = vmatprep.subr.bf16.mxu0 0
        %4236 = vmatpush2.bf16.msra.mxu0 %v3211
        %4237 = vmatprep.subr.bf16.mxu0 0
        %4238 = vmatpush2.bf16.msra.mxu0 %v3210
        %4239 = vmatprep.subr.bf16.mxu0 0
        %4240 = vmatpush2.bf16.msra.mxu0 %v3209
        %4241 = vmatprep.mubr.bf16.mxu0 %v709
        %4242 = vmatmul.mubr.bf16.gmra.mxu0 %v708
        %v4243 = vpop.f32.mrf.mxu0
        %v4244 = vadd.f32 %v4204, %v4243
        %v4245 = vpop.f32.mrf.mxu0
        %v4246 = vpop.f32.mrf.mxu0
        %v4247 = vpop.f32.mrf.mxu0
        %4248 = vdwg.mxu0
        %4249 = vmatprep.subr.bf16.mxu0 0
        %4250 = vmatpush1.bf16.msra.mxu0 %v3224
        %4251 = vmatprep.subr.bf16.mxu0 0
        %4252 = vmatpush1.bf16.msra.mxu0 %v3223
        %4253 = vmatprep.subr.bf16.mxu0 0
        %4254 = vmatpush1.bf16.msra.mxu0 %v3222
        %4255 = vmatprep.subr.bf16.mxu0 0
        %4256 = vmatpush1.bf16.msra.mxu0 %v3221
        %4257 = vmatprep.subr.bf16.mxu0 0
        %4258 = vmatpush1.bf16.msra.mxu0 %v3220
        %4259 = vmatprep.subr.bf16.mxu0 0
        %4260 = vmatpush1.bf16.msra.mxu0 %v3219
        %4261 = vmatprep.subr.bf16.mxu0 0
        %4262 = vmatpush1.bf16.msra.mxu0 %v3218
        %4263 = vmatprep.subr.bf16.mxu0 0
        %4264 = vmatpush1.bf16.msra.mxu0 %v3217
        %4265 = vmatprep.subr.bf16.mxu0 0
        %4266 = vmatpush2.bf16.msra.mxu0 %v3232
        %4267 = vmatprep.subr.bf16.mxu0 0
        %4268 = vmatpush2.bf16.msra.mxu0 %v3231
        %4269 = vmatprep.subr.bf16.mxu0 0
        %4270 = vmatpush2.bf16.msra.mxu0 %v3230
        %4271 = vmatprep.subr.bf16.mxu0 0
        %4272 = vmatpush2.bf16.msra.mxu0 %v3229
        %4273 = vmatprep.subr.bf16.mxu0 0
        %4274 = vmatpush2.bf16.msra.mxu0 %v3228
        %4275 = vmatprep.subr.bf16.mxu0 0
        %4276 = vmatpush2.bf16.msra.mxu0 %v3227
        %4277 = vmatprep.subr.bf16.mxu0 0
        %4278 = vmatpush2.bf16.msra.mxu0 %v3226
        %4279 = vmatprep.subr.bf16.mxu0 0
        %4280 = vmatpush2.bf16.msra.mxu0 %v3225
        %4281 = vmatprep.mubr.bf16.mxu0 %v711
        %4282 = vmatmul.mubr.bf16.gmra.mxu0 %v710
        %v4283 = vpop.f32.mrf.mxu0
        %v4284 = vadd.f32 %v4244, %v4283
        %v4285 = vpop.f32.mrf.mxu0
        %v4286 = vpop.f32.mrf.mxu0
        %v4287 = vpop.f32.mrf.mxu0
        %4288 = vdwg.mxu0
        %4289 = vmatprep.subr.bf16.mxu0 0
        %4290 = vmatpush1.bf16.msra.mxu0 %v3240
        %4291 = vmatprep.subr.bf16.mxu0 0
        %4292 = vmatpush1.bf16.msra.mxu0 %v3239
        %4293 = vmatprep.subr.bf16.mxu0 0
        %4294 = vmatpush1.bf16.msra.mxu0 %v3238
        %4295 = vmatprep.subr.bf16.mxu0 0
        %4296 = vmatpush1.bf16.msra.mxu0 %v3237
        %4297 = vmatprep.subr.bf16.mxu0 0
        %4298 = vmatpush1.bf16.msra.mxu0 %v3236
        %4299 = vmatprep.subr.bf16.mxu0 0
        %4300 = vmatpush1.bf16.msra.mxu0 %v3235
        %4301 = vmatprep.subr.bf16.mxu0 0
        %4302 = vmatpush1.bf16.msra.mxu0 %v3234
        %4303 = vmatprep.subr.bf16.mxu0 0
        %4304 = vmatpush1.bf16.msra.mxu0 %v3233
        %4305 = vmatprep.subr.bf16.mxu0 0
        %4306 = vmatpush2.bf16.msra.mxu0 %v3248
        %4307 = vmatprep.subr.bf16.mxu0 0
        %4308 = vmatpush2.bf16.msra.mxu0 %v3247
        %4309 = vmatprep.subr.bf16.mxu0 0
        %4310 = vmatpush2.bf16.msra.mxu0 %v3246
        %4311 = vmatprep.subr.bf16.mxu0 0
        %4312 = vmatpush2.bf16.msra.mxu0 %v3245
        %4313 = vmatprep.subr.bf16.mxu0 0
        %4314 = vmatpush2.bf16.msra.mxu0 %v3244
        %4315 = vmatprep.subr.bf16.mxu0 0
        %4316 = vmatpush2.bf16.msra.mxu0 %v3243
        %4317 = vmatprep.subr.bf16.mxu0 0
        %4318 = vmatpush2.bf16.msra.mxu0 %v3242
        %4319 = vmatprep.subr.bf16.mxu0 0
        %4320 = vmatpush2.bf16.msra.mxu0 %v3241
        %4321 = vmatprep.mubr.bf16.mxu0 %v713
        %4322 = vmatmul.mubr.bf16.gmra.mxu0 %v712
        %v4323 = vpop.f32.mrf.mxu0
        %v4324 = vadd.f32 %v4284, %v4323
        %v4325 = vpop.f32.mrf.mxu0
        %v4326 = vpop.f32.mrf.mxu0
        %v4327 = vpop.f32.mrf.mxu0
        %4328 = vdwg.mxu0
        %4329 = vmatprep.subr.bf16.mxu0 0
        %4330 = vmatpush1.bf16.msra.mxu0 %v3256
        %4331 = vmatprep.subr.bf16.mxu0 0
        %4332 = vmatpush1.bf16.msra.mxu0 %v3255
        %4333 = vmatprep.subr.bf16.mxu0 0
        %4334 = vmatpush1.bf16.msra.mxu0 %v3254
        %4335 = vmatprep.subr.bf16.mxu0 0
        %4336 = vmatpush1.bf16.msra.mxu0 %v3253
        %4337 = vmatprep.subr.bf16.mxu0 0
        %4338 = vmatpush1.bf16.msra.mxu0 %v3252
        %4339 = vmatprep.subr.bf16.mxu0 0
        %4340 = vmatpush1.bf16.msra.mxu0 %v3251
        %4341 = vmatprep.subr.bf16.mxu0 0
        %4342 = vmatpush1.bf16.msra.mxu0 %v3250
        %4343 = vmatprep.subr.bf16.mxu0 0
        %4344 = vmatpush1.bf16.msra.mxu0 %v3249
        %4345 = vmatprep.subr.bf16.mxu0 0
        %4346 = vmatpush2.bf16.msra.mxu0 %v3264
        %4347 = vmatprep.subr.bf16.mxu0 0
        %4348 = vmatpush2.bf16.msra.mxu0 %v3263
        %4349 = vmatprep.subr.bf16.mxu0 0
        %4350 = vmatpush2.bf16.msra.mxu0 %v3262
        %4351 = vmatprep.subr.bf16.mxu0 0
        %4352 = vmatpush2.bf16.msra.mxu0 %v3261
        %4353 = vmatprep.subr.bf16.mxu0 0
        %4354 = vmatpush2.bf16.msra.mxu0 %v3260
        %4355 = vmatprep.subr.bf16.mxu0 0
        %4356 = vmatpush2.bf16.msra.mxu0 %v3259
        %4357 = vmatprep.subr.bf16.mxu0 0
        %4358 = vmatpush2.bf16.msra.mxu0 %v3258
        %4359 = vmatprep.subr.bf16.mxu0 0
        %4360 = vmatpush2.bf16.msra.mxu0 %v3257
        %4361 = vmatprep.mubr.bf16.mxu0 %v715
        %4362 = vmatmul.mubr.bf16.gmra.mxu0 %v714
        %v4363 = vpop.f32.mrf.mxu0
        %v4364 = vadd.f32 %v4324, %v4363
        %v4365 = vpop.f32.mrf.mxu0
        %v4366 = vpop.f32.mrf.mxu0
        %v4367 = vpop.f32.mrf.mxu0
        %4368 = vdwg.mxu0
        %4369 = vmatprep.subr.bf16.mxu0 0
        %4370 = vmatpush1.bf16.msra.mxu0 %v3272
        %4371 = vmatprep.subr.bf16.mxu0 0
        %4372 = vmatpush1.bf16.msra.mxu0 %v3271
        %4373 = vmatprep.subr.bf16.mxu0 0
        %4374 = vmatpush1.bf16.msra.mxu0 %v3270
        %4375 = vmatprep.subr.bf16.mxu0 0
        %4376 = vmatpush1.bf16.msra.mxu0 %v3269
        %4377 = vmatprep.subr.bf16.mxu0 0
        %4378 = vmatpush1.bf16.msra.mxu0 %v3268
        %4379 = vmatprep.subr.bf16.mxu0 0
        %4380 = vmatpush1.bf16.msra.mxu0 %v3267
        %4381 = vmatprep.subr.bf16.mxu0 0
        %4382 = vmatpush1.bf16.msra.mxu0 %v3266
        %4383 = vmatprep.subr.bf16.mxu0 0
        %4384 = vmatpush1.bf16.msra.mxu0 %v3265
        %4385 = vmatprep.subr.bf16.mxu0 0
        %4386 = vmatpush2.bf16.msra.mxu0 %v3280
        %4387 = vmatprep.subr.bf16.mxu0 0
        %4388 = vmatpush2.bf16.msra.mxu0 %v3279
        %4389 = vmatprep.subr.bf16.mxu0 0
        %4390 = vmatpush2.bf16.msra.mxu0 %v3278
        %4391 = vmatprep.subr.bf16.mxu0 0
        %4392 = vmatpush2.bf16.msra.mxu0 %v3277
        %4393 = vmatprep.subr.bf16.mxu0 0
        %4394 = vmatpush2.bf16.msra.mxu0 %v3276
        %4395 = vmatprep.subr.bf16.mxu0 0
        %4396 = vmatpush2.bf16.msra.mxu0 %v3275
        %4397 = vmatprep.subr.bf16.mxu0 0
        %4398 = vmatpush2.bf16.msra.mxu0 %v3274
        %4399 = vmatprep.subr.bf16.mxu0 0
        %4400 = vmatpush2.bf16.msra.mxu0 %v3273
        %4401 = vmatprep.mubr.bf16.mxu0 %v717
        %4402 = vmatmul.mubr.bf16.gmra.mxu0 %v716
        %v4403 = vpop.f32.mrf.mxu0
        %v4404 = vadd.f32 %v4364, %v4403
        %v4405 = vpop.f32.mrf.mxu0
        %v4406 = vpop.f32.mrf.mxu0
        %v4407 = vpop.f32.mrf.mxu0
        %4408 = vdwg.mxu0
        %4409 = vmatprep.subr.bf16.mxu0 0
        %4410 = vmatpush1.bf16.msra.mxu0 %v3288
        %4411 = vmatprep.subr.bf16.mxu0 0
        %4412 = vmatpush1.bf16.msra.mxu0 %v3287
        %4413 = vmatprep.subr.bf16.mxu0 0
        %4414 = vmatpush1.bf16.msra.mxu0 %v3286
        %4415 = vmatprep.subr.bf16.mxu0 0
        %4416 = vmatpush1.bf16.msra.mxu0 %v3285
        %4417 = vmatprep.subr.bf16.mxu0 0
        %4418 = vmatpush1.bf16.msra.mxu0 %v3284
        %4419 = vmatprep.subr.bf16.mxu0 0
        %4420 = vmatpush1.bf16.msra.mxu0 %v3283
        %4421 = vmatprep.subr.bf16.mxu0 0
        %4422 = vmatpush1.bf16.msra.mxu0 %v3282
        %4423 = vmatprep.subr.bf16.mxu0 0
        %4424 = vmatpush1.bf16.msra.mxu0 %v3281
        %4425 = vmatprep.subr.bf16.mxu0 0
        %4426 = vmatpush2.bf16.msra.mxu0 %v3296
        %4427 = vmatprep.subr.bf16.mxu0 0
        %4428 = vmatpush2.bf16.msra.mxu0 %v3295
        %4429 = vmatprep.subr.bf16.mxu0 0
        %4430 = vmatpush2.bf16.msra.mxu0 %v3294
        %4431 = vmatprep.subr.bf16.mxu0 0
        %4432 = vmatpush2.bf16.msra.mxu0 %v3293
        %4433 = vmatprep.subr.bf16.mxu0 0
        %4434 = vmatpush2.bf16.msra.mxu0 %v3292
        %4435 = vmatprep.subr.bf16.mxu0 0
        %4436 = vmatpush2.bf16.msra.mxu0 %v3291
        %4437 = vmatprep.subr.bf16.mxu0 0
        %4438 = vmatpush2.bf16.msra.mxu0 %v3290
        %4439 = vmatprep.subr.bf16.mxu0 0
        %4440 = vmatpush2.bf16.msra.mxu0 %v3289
        %4441 = vmatprep.mubr.bf16.mxu0 %v719
        %4442 = vmatmul.mubr.bf16.gmra.mxu0 %v718
        %v4443 = vpop.f32.mrf.mxu0
        %v4444 = vadd.f32 %v4404, %v4443
        %v4445 = vpop.f32.mrf.mxu0
        %v4446 = vpop.f32.mrf.mxu0
        %v4447 = vpop.f32.mrf.mxu0
        %4448 = vdwg.mxu0
        %4449 = vmatprep.subr.bf16.mxu0 0
        %4450 = vmatpush1.bf16.msra.mxu0 %v3304
        %4451 = vmatprep.subr.bf16.mxu0 0
        %4452 = vmatpush1.bf16.msra.mxu0 %v3303
        %4453 = vmatprep.subr.bf16.mxu0 0
        %4454 = vmatpush1.bf16.msra.mxu0 %v3302
        %4455 = vmatprep.subr.bf16.mxu0 0
        %4456 = vmatpush1.bf16.msra.mxu0 %v3301
        %4457 = vmatprep.subr.bf16.mxu0 0
        %4458 = vmatpush1.bf16.msra.mxu0 %v3300
        %4459 = vmatprep.subr.bf16.mxu0 0
        %4460 = vmatpush1.bf16.msra.mxu0 %v3299
        %4461 = vmatprep.subr.bf16.mxu0 0
        %4462 = vmatpush1.bf16.msra.mxu0 %v3298
        %4463 = vmatprep.subr.bf16.mxu0 0
        %4464 = vmatpush1.bf16.msra.mxu0 %v3297
        %4465 = vmatprep.subr.bf16.mxu0 0
        %4466 = vmatpush2.bf16.msra.mxu0 %v3312
        %4467 = vmatprep.subr.bf16.mxu0 0
        %4468 = vmatpush2.bf16.msra.mxu0 %v3311
        %4469 = vmatprep.subr.bf16.mxu0 0
        %4470 = vmatpush2.bf16.msra.mxu0 %v3310
        %4471 = vmatprep.subr.bf16.mxu0 0
        %4472 = vmatpush2.bf16.msra.mxu0 %v3309
        %4473 = vmatprep.subr.bf16.mxu0 0
        %4474 = vmatpush2.bf16.msra.mxu0 %v3308
        %4475 = vmatprep.subr.bf16.mxu0 0
        %4476 = vmatpush2.bf16.msra.mxu0 %v3307
        %4477 = vmatprep.subr.bf16.mxu0 0
        %4478 = vmatpush2.bf16.msra.mxu0 %v3306
        %4479 = vmatprep.subr.bf16.mxu0 0
        %4480 = vmatpush2.bf16.msra.mxu0 %v3305
        %4481 = vmatprep.mubr.bf16.mxu0 %v721
        %4482 = vmatmul.mubr.bf16.gmra.mxu0 %v720
        %v4483 = vpop.f32.mrf.mxu0
        %v4484 = vadd.f32 %v4444, %v4483
        %v4485 = vpop.f32.mrf.mxu0
        %v4486 = vpop.f32.mrf.mxu0
        %v4487 = vpop.f32.mrf.mxu0
        %4488 = vdwg.mxu0
        %4489 = vmatprep.subr.bf16.mxu0 0
        %4490 = vmatpush1.bf16.msra.mxu0 %v3320
        %4491 = vmatprep.subr.bf16.mxu0 0
        %4492 = vmatpush1.bf16.msra.mxu0 %v3319
        %4493 = vmatprep.subr.bf16.mxu0 0
        %4494 = vmatpush1.bf16.msra.mxu0 %v3318
        %4495 = vmatprep.subr.bf16.mxu0 0
        %4496 = vmatpush1.bf16.msra.mxu0 %v3317
        %4497 = vmatprep.subr.bf16.mxu0 0
        %4498 = vmatpush1.bf16.msra.mxu0 %v3316
        %4499 = vmatprep.subr.bf16.mxu0 0
        %4500 = vmatpush1.bf16.msra.mxu0 %v3315
        %4501 = vmatprep.subr.bf16.mxu0 0
        %4502 = vmatpush1.bf16.msra.mxu0 %v3314
        %4503 = vmatprep.subr.bf16.mxu0 0
        %4504 = vmatpush1.bf16.msra.mxu0 %v3313
        %4505 = vmatprep.subr.bf16.mxu0 0
        %4506 = vmatpush2.bf16.msra.mxu0 %v3328
        %4507 = vmatprep.subr.bf16.mxu0 0
        %4508 = vmatpush2.bf16.msra.mxu0 %v3327
        %4509 = vmatprep.subr.bf16.mxu0 0
        %4510 = vmatpush2.bf16.msra.mxu0 %v3326
        %4511 = vmatprep.subr.bf16.mxu0 0
        %4512 = vmatpush2.bf16.msra.mxu0 %v3325
        %4513 = vmatprep.subr.bf16.mxu0 0
        %4514 = vmatpush2.bf16.msra.mxu0 %v3324
        %4515 = vmatprep.subr.bf16.mxu0 0
        %4516 = vmatpush2.bf16.msra.mxu0 %v3323
        %4517 = vmatprep.subr.bf16.mxu0 0
        %4518 = vmatpush2.bf16.msra.mxu0 %v3322
        %4519 = vmatprep.subr.bf16.mxu0 0
        %4520 = vmatpush2.bf16.msra.mxu0 %v3321
        %4521 = vmatprep.mubr.bf16.mxu0 %v723
        %4522 = vmatmul.mubr.bf16.gmra.mxu0 %v722
        %v4523 = vpop.f32.mrf.mxu0
        %v4524 = vadd.f32 %v4484, %v4523
        %v4525 = vpop.f32.mrf.mxu0
        %v4526 = vpop.f32.mrf.mxu0
        %v4527 = vpop.f32.mrf.mxu0
        %4528 = vdwg.mxu0
        %4529 = vmatprep.subr.bf16.mxu0 0
        %4530 = vmatpush1.bf16.msra.mxu0 %v3336
        %4531 = vmatprep.subr.bf16.mxu0 0
        %4532 = vmatpush1.bf16.msra.mxu0 %v3335
        %4533 = vmatprep.subr.bf16.mxu0 0
        %4534 = vmatpush1.bf16.msra.mxu0 %v3334
        %4535 = vmatprep.subr.bf16.mxu0 0
        %4536 = vmatpush1.bf16.msra.mxu0 %v3333
        %4537 = vmatprep.subr.bf16.mxu0 0
        %4538 = vmatpush1.bf16.msra.mxu0 %v3332
        %4539 = vmatprep.subr.bf16.mxu0 0
        %4540 = vmatpush1.bf16.msra.mxu0 %v3331
        %4541 = vmatprep.subr.bf16.mxu0 0
        %4542 = vmatpush1.bf16.msra.mxu0 %v3330
        %4543 = vmatprep.subr.bf16.mxu0 0
        %4544 = vmatpush1.bf16.msra.mxu0 %v3329
        %4545 = vmatprep.subr.bf16.mxu0 0
        %4546 = vmatpush2.bf16.msra.mxu0 %v3344
        %4547 = vmatprep.subr.bf16.mxu0 0
        %4548 = vmatpush2.bf16.msra.mxu0 %v3343
        %4549 = vmatprep.subr.bf16.mxu0 0
        %4550 = vmatpush2.bf16.msra.mxu0 %v3342
        %4551 = vmatprep.subr.bf16.mxu0 0
        %4552 = vmatpush2.bf16.msra.mxu0 %v3341
        %4553 = vmatprep.subr.bf16.mxu0 0
        %4554 = vmatpush2.bf16.msra.mxu0 %v3340
        %4555 = vmatprep.subr.bf16.mxu0 0
        %4556 = vmatpush2.bf16.msra.mxu0 %v3339
        %4557 = vmatprep.subr.bf16.mxu0 0
        %4558 = vmatpush2.bf16.msra.mxu0 %v3338
        %4559 = vmatprep.subr.bf16.mxu0 0
        %4560 = vmatpush2.bf16.msra.mxu0 %v3337
        %4561 = vmatprep.mubr.bf16.mxu0 %v725
        %4562 = vmatmul.mubr.bf16.gmra.mxu0 %v724
        %v4563 = vpop.f32.mrf.mxu0
        %v4564 = vadd.f32 %v4524, %v4563
        %v4565 = vpop.f32.mrf.mxu0
        %v4566 = vpop.f32.mrf.mxu0
        %v4567 = vpop.f32.mrf.mxu0
        %4568 = vdwg.mxu0
        %4569 = vmatprep.subr.bf16.mxu0 0
        %4570 = vmatpush1.bf16.msra.mxu0 %v3352
        %4571 = vmatprep.subr.bf16.mxu0 0
        %4572 = vmatpush1.bf16.msra.mxu0 %v3351
        %4573 = vmatprep.subr.bf16.mxu0 0
        %4574 = vmatpush1.bf16.msra.mxu0 %v3350
        %4575 = vmatprep.subr.bf16.mxu0 0
        %4576 = vmatpush1.bf16.msra.mxu0 %v3349
        %4577 = vmatprep.subr.bf16.mxu0 0
        %4578 = vmatpush1.bf16.msra.mxu0 %v3348
        %4579 = vmatprep.subr.bf16.mxu0 0
        %4580 = vmatpush1.bf16.msra.mxu0 %v3347
        %4581 = vmatprep.subr.bf16.mxu0 0
        %4582 = vmatpush1.bf16.msra.mxu0 %v3346
        %4583 = vmatprep.subr.bf16.mxu0 0
        %4584 = vmatpush1.bf16.msra.mxu0 %v3345
        %4585 = vmatprep.subr.bf16.mxu0 0
        %4586 = vmatpush2.bf16.msra.mxu0 %v3360
        %4587 = vmatprep.subr.bf16.mxu0 0
        %4588 = vmatpush2.bf16.msra.mxu0 %v3359
        %4589 = vmatprep.subr.bf16.mxu0 0
        %4590 = vmatpush2.bf16.msra.mxu0 %v3358
        %4591 = vmatprep.subr.bf16.mxu0 0
        %4592 = vmatpush2.bf16.msra.mxu0 %v3357
        %4593 = vmatprep.subr.bf16.mxu0 0
        %4594 = vmatpush2.bf16.msra.mxu0 %v3356
        %4595 = vmatprep.subr.bf16.mxu0 0
        %4596 = vmatpush2.bf16.msra.mxu0 %v3355
        %4597 = vmatprep.subr.bf16.mxu0 0
        %4598 = vmatpush2.bf16.msra.mxu0 %v3354
        %4599 = vmatprep.subr.bf16.mxu0 0
        %4600 = vmatpush2.bf16.msra.mxu0 %v3353
        %4601 = vmatprep.mubr.bf16.mxu0 %v727
        %4602 = vmatmul.mubr.bf16.gmra.mxu0 %v726
        %v4603 = vpop.f32.mrf.mxu0
        %v4604 = vadd.f32 %v4564, %v4603
        %v4605 = vpop.f32.mrf.mxu0
        %v4606 = vpop.f32.mrf.mxu0
        %v4607 = vpop.f32.mrf.mxu0
        %4608 = vdwg.mxu0
        %4609 = vmatprep.subr.bf16.mxu0 0
        %4610 = vmatpush1.bf16.msra.mxu0 %v3368
        %4611 = vmatprep.subr.bf16.mxu0 0
        %4612 = vmatpush1.bf16.msra.mxu0 %v3367
        %4613 = vmatprep.subr.bf16.mxu0 0
        %4614 = vmatpush1.bf16.msra.mxu0 %v3366
        %4615 = vmatprep.subr.bf16.mxu0 0
        %4616 = vmatpush1.bf16.msra.mxu0 %v3365
        %4617 = vmatprep.subr.bf16.mxu0 0
        %4618 = vmatpush1.bf16.msra.mxu0 %v3364
        %4619 = vmatprep.subr.bf16.mxu0 0
        %4620 = vmatpush1.bf16.msra.mxu0 %v3363
        %4621 = vmatprep.subr.bf16.mxu0 0
        %4622 = vmatpush1.bf16.msra.mxu0 %v3362
        %4623 = vmatprep.subr.bf16.mxu0 0
        %4624 = vmatpush1.bf16.msra.mxu0 %v3361
        %4625 = vmatprep.subr.bf16.mxu0 0
        %4626 = vmatpush2.bf16.msra.mxu0 %v3376
        %4627 = vmatprep.subr.bf16.mxu0 0
        %4628 = vmatpush2.bf16.msra.mxu0 %v3375
        %4629 = vmatprep.subr.bf16.mxu0 0
        %4630 = vmatpush2.bf16.msra.mxu0 %v3374
        %4631 = vmatprep.subr.bf16.mxu0 0
        %4632 = vmatpush2.bf16.msra.mxu0 %v3373
        %4633 = vmatprep.subr.bf16.mxu0 0
        %4634 = vmatpush2.bf16.msra.mxu0 %v3372
        %4635 = vmatprep.subr.bf16.mxu0 0
        %4636 = vmatpush2.bf16.msra.mxu0 %v3371
        %4637 = vmatprep.subr.bf16.mxu0 0
        %4638 = vmatpush2.bf16.msra.mxu0 %v3370
        %4639 = vmatprep.subr.bf16.mxu0 0
        %4640 = vmatpush2.bf16.msra.mxu0 %v3369
        %4641 = vmatprep.mubr.bf16.mxu0 %v729
        %4642 = vmatmul.mubr.bf16.gmra.mxu0 %v728
        %v4643 = vpop.f32.mrf.mxu0
        %v4644 = vadd.f32 %v4604, %v4643
        %v4645 = vpop.f32.mrf.mxu0
        %v4646 = vpop.f32.mrf.mxu0
        %v4647 = vpop.f32.mrf.mxu0
        %4648 = vdwg.mxu0
        %4649 = vmatprep.subr.bf16.mxu0 0
        %4650 = vmatpush1.bf16.msra.mxu0 %v3384
        %4651 = vmatprep.subr.bf16.mxu0 0
        %4652 = vmatpush1.bf16.msra.mxu0 %v3383
        %4653 = vmatprep.subr.bf16.mxu0 0
        %4654 = vmatpush1.bf16.msra.mxu0 %v3382
        %4655 = vmatprep.subr.bf16.mxu0 0
        %4656 = vmatpush1.bf16.msra.mxu0 %v3381
        %4657 = vmatprep.subr.bf16.mxu0 0
        %4658 = vmatpush1.bf16.msra.mxu0 %v3380
        %4659 = vmatprep.subr.bf16.mxu0 0
        %4660 = vmatpush1.bf16.msra.mxu0 %v3379
        %4661 = vmatprep.subr.bf16.mxu0 0
        %4662 = vmatpush1.bf16.msra.mxu0 %v3378
        %4663 = vmatprep.subr.bf16.mxu0 0
        %4664 = vmatpush1.bf16.msra.mxu0 %v3377
        %4665 = vmatprep.subr.bf16.mxu0 0
        %4666 = vmatpush2.bf16.msra.mxu0 %v3392
        %4667 = vmatprep.subr.bf16.mxu0 0
        %4668 = vmatpush2.bf16.msra.mxu0 %v3391
        %4669 = vmatprep.subr.bf16.mxu0 0
        %4670 = vmatpush2.bf16.msra.mxu0 %v3390
        %4671 = vmatprep.subr.bf16.mxu0 0
        %4672 = vmatpush2.bf16.msra.mxu0 %v3389
        %4673 = vmatprep.subr.bf16.mxu0 0
        %4674 = vmatpush2.bf16.msra.mxu0 %v3388
        %4675 = vmatprep.subr.bf16.mxu0 0
        %4676 = vmatpush2.bf16.msra.mxu0 %v3387
        %4677 = vmatprep.subr.bf16.mxu0 0
        %4678 = vmatpush2.bf16.msra.mxu0 %v3386
        %4679 = vmatprep.subr.bf16.mxu0 0
        %4680 = vmatpush2.bf16.msra.mxu0 %v3385
        %4681 = vmatprep.mubr.bf16.mxu0 %v731
        %4682 = vmatmul.mubr.bf16.gmra.mxu0 %v730
        %v4683 = vpop.f32.mrf.mxu0
        %v4684 = vadd.f32 %v4644, %v4683
        %v4685 = vpop.f32.mrf.mxu0
        %v4686 = vpop.f32.mrf.mxu0
        %v4687 = vpop.f32.mrf.mxu0
        %4688 = vdwg.mxu0
        %4689 = vmatprep.subr.bf16.mxu0 0
        %4690 = vmatpush1.bf16.msra.mxu0 %v3400
        %4691 = vmatprep.subr.bf16.mxu0 0
        %4692 = vmatpush1.bf16.msra.mxu0 %v3399
        %4693 = vmatprep.subr.bf16.mxu0 0
        %4694 = vmatpush1.bf16.msra.mxu0 %v3398
        %4695 = vmatprep.subr.bf16.mxu0 0
        %4696 = vmatpush1.bf16.msra.mxu0 %v3397
        %4697 = vmatprep.subr.bf16.mxu0 0
        %4698 = vmatpush1.bf16.msra.mxu0 %v3396
        %4699 = vmatprep.subr.bf16.mxu0 0
        %4700 = vmatpush1.bf16.msra.mxu0 %v3395
        %4701 = vmatprep.subr.bf16.mxu0 0
        %4702 = vmatpush1.bf16.msra.mxu0 %v3394
        %4703 = vmatprep.subr.bf16.mxu0 0
        %4704 = vmatpush1.bf16.msra.mxu0 %v3393
        %4705 = vmatprep.subr.bf16.mxu0 0
        %4706 = vmatpush2.bf16.msra.mxu0 %v3408
        %4707 = vmatprep.subr.bf16.mxu0 0
        %4708 = vmatpush2.bf16.msra.mxu0 %v3407
        %4709 = vmatprep.subr.bf16.mxu0 0
        %4710 = vmatpush2.bf16.msra.mxu0 %v3406
        %4711 = vmatprep.subr.bf16.mxu0 0
        %4712 = vmatpush2.bf16.msra.mxu0 %v3405
        %4713 = vmatprep.subr.bf16.mxu0 0
        %4714 = vmatpush2.bf16.msra.mxu0 %v3404
        %4715 = vmatprep.subr.bf16.mxu0 0
        %4716 = vmatpush2.bf16.msra.mxu0 %v3403
        %4717 = vmatprep.subr.bf16.mxu0 0
        %4718 = vmatpush2.bf16.msra.mxu0 %v3402
        %4719 = vmatprep.subr.bf16.mxu0 0
        %4720 = vmatpush2.bf16.msra.mxu0 %v3401
        %4721 = vmatprep.mubr.bf16.mxu0 %v733
        %4722 = vmatmul.mubr.bf16.gmra.mxu0 %v732
        %v4723 = vpop.f32.mrf.mxu0
        %v4724 = vadd.f32 %v4684, %v4723
        %v4725 = vpop.f32.mrf.mxu0
        %v4726 = vpop.f32.mrf.mxu0
        %v4727 = vpop.f32.mrf.mxu0
        %4728 = vdwg.mxu0
        %4729 = vmatprep.subr.bf16.mxu0 0
        %4730 = vmatpush1.bf16.msra.mxu0 %v3416
        %4731 = vmatprep.subr.bf16.mxu0 0
        %4732 = vmatpush1.bf16.msra.mxu0 %v3415
        %4733 = vmatprep.subr.bf16.mxu0 0
        %4734 = vmatpush1.bf16.msra.mxu0 %v3414
        %4735 = vmatprep.subr.bf16.mxu0 0
        %4736 = vmatpush1.bf16.msra.mxu0 %v3413
        %4737 = vmatprep.subr.bf16.mxu0 0
        %4738 = vmatpush1.bf16.msra.mxu0 %v3412
        %4739 = vmatprep.subr.bf16.mxu0 0
        %4740 = vmatpush1.bf16.msra.mxu0 %v3411
        %4741 = vmatprep.subr.bf16.mxu0 0
        %4742 = vmatpush1.bf16.msra.mxu0 %v3410
        %4743 = vmatprep.subr.bf16.mxu0 0
        %4744 = vmatpush1.bf16.msra.mxu0 %v3409
        %4745 = vmatprep.subr.bf16.mxu0 0
        %4746 = vmatpush2.bf16.msra.mxu0 %v3424
        %4747 = vmatprep.subr.bf16.mxu0 0
        %4748 = vmatpush2.bf16.msra.mxu0 %v3423
        %4749 = vmatprep.subr.bf16.mxu0 0
        %4750 = vmatpush2.bf16.msra.mxu0 %v3422
        %4751 = vmatprep.subr.bf16.mxu0 0
        %4752 = vmatpush2.bf16.msra.mxu0 %v3421
        %4753 = vmatprep.subr.bf16.mxu0 0
        %4754 = vmatpush2.bf16.msra.mxu0 %v3420
        %4755 = vmatprep.subr.bf16.mxu0 0
        %4756 = vmatpush2.bf16.msra.mxu0 %v3419
        %4757 = vmatprep.subr.bf16.mxu0 0
        %4758 = vmatpush2.bf16.msra.mxu0 %v3418
        %4759 = vmatprep.subr.bf16.mxu0 0
        %4760 = vmatpush2.bf16.msra.mxu0 %v3417
        %4761 = vmatprep.mubr.bf16.mxu0 %v735
        %4762 = vmatmul.mubr.bf16.gmra.mxu0 %v734
        %v4763 = vpop.f32.mrf.mxu0
        %v4764 = vadd.f32 %v4724, %v4763
        %v4765 = vpop.f32.mrf.mxu0
        %v4766 = vpop.f32.mrf.mxu0
        %v4767 = vpop.f32.mrf.mxu0
        %4768 = vdwg.mxu0
        %v4769 = vadd.f32 %v736, %v4764
        %4770 = vst [vmem:[#allocation2] sm:$0x3] %v4769
        %p4771 = scmp.eq.s32.totalorder %s30, 1
        // Predicated region
        $region77: #{nn7_forward.1} parent=47 // pred_check
          %p4772 = pneg %p4771
        $region78: #{nn7_forward.1} parent=47 // pred_check_branch
          %4774 = sbr.rel (%p4772) target = $region80
        $region79: #{nn7_forward.1} parent=47 // pred_region
          %v4775 = vld [vmem:[#allocation2] sm:$0x3]
          %v4776 = vld [vmem:[#allocation6] sm:$0x1]
          %v4778 = vlaneseq
          %v4779 = vshrl.u32 %v4778, 7
          %v4780 = vsub.s32 0, %v4779
          %v4781 = vrot.slane %v4776, %v4780
          %v4783 = vadd.f32 %v4775, %v4781
          %v4784 = vmax.f32 %v4783, 0.0
          %v4785 = vpack.c.bf16 %v4784, %v4784
          %v4786 = vld [vmem:[#allocation8] sm:$0xf]
          %v4787 = vld [vmem:[#allocation8 + $0x4] sm:$0xf]
          %v4788 = vld [vmem:[#allocation8 + $0x8] sm:$0xf]
          %v4789 = vld [vmem:[#allocation8 + $0xc] sm:$0xf]
          %v4790 = vld [vmem:[#allocation8 + $0x10] sm:$0xf]
          %v4791 = vld [vmem:[#allocation8 + $0x14] sm:$0xf]
          %v4792 = vld [vmem:[#allocation8 + $0x18] sm:$0xf]
          %v4793 = vld [vmem:[#allocation8 + $0x1c] sm:$0xf]
          %v4794 = vld [vmem:[#allocation8 + $0x20] sm:$0xf]
          %v4795 = vld [vmem:[#allocation8 + $0x24] sm:$0xf]
          %v4796 = vld [vmem:[#allocation8 + $0x28] sm:$0xf]
          %v4797 = vld [vmem:[#allocation8 + $0x2c] sm:$0xf]
          %v4798 = vld [vmem:[#allocation8 + $0x30] sm:$0xf]
          %v4799 = vld [vmem:[#allocation8 + $0x34] sm:$0xf]
          %v4800 = vld [vmem:[#allocation8 + $0x38] sm:$0xf]
          %v4801 = vld [vmem:[#allocation8 + $0x3c] sm:$0xf]
          %v4802 = vld [vmem:[#allocation9] sm:$0x1]
          %v4804 = vlaneseq
          %v4805 = vshrl.u32 %v4804, 7
          %v4806 = vsub.s32 0, %v4805
          %v4807 = vrot.slane %v4802, %v4806
          %v4825 = vunpack.c.l.b16 %v4786
          %v4826 = vunpack.c.l.b16 %v4787
          %v4827 = vunpack.c.l.b16 %v4788
          %v4828 = vunpack.c.l.b16 %v4789
          %v4829 = vunpack.c.l.b16 %v4790
          %v4830 = vunpack.c.l.b16 %v4791
          %v4831 = vunpack.c.l.b16 %v4792
          %v4832 = vunpack.c.l.b16 %v4793
          %v4833 = vunpack.c.l.b16 %v4794
          %v4834 = vunpack.c.l.b16 %v4795
          %v4835 = vunpack.c.l.b16 %v4796
          %v4836 = vunpack.c.l.b16 %v4797
          %v4837 = vunpack.c.l.b16 %v4798
          %v4838 = vunpack.c.l.b16 %v4799
          %v4839 = vunpack.c.l.b16 %v4800
          %v4840 = vunpack.c.l.b16 %v4801
          %v4841 = vpack.c.b16 %v4826, %v4825
          %v4842 = vpack.c.b16 %v4828, %v4827
          %v4843 = vpack.c.b16 %v4830, %v4829
          %v4844 = vpack.c.b16 %v4832, %v4831
          %v4845 = vpack.c.b16 %v4834, %v4833
          %v4846 = vpack.c.b16 %v4836, %v4835
          %v4847 = vpack.c.b16 %v4838, %v4837
          %v4848 = vpack.c.b16 %v4840, %v4839
          %4857 = vmatprep.subr.bf16.mxu0 0
          %4858 = vmatpush1.bf16.msra.mxu0 %v4848
          %4859 = vmatprep.subr.bf16.mxu0 0
          %4860 = vmatpush1.bf16.msra.mxu0 %v4847
          %4861 = vmatprep.subr.bf16.mxu0 0
          %4862 = vmatpush1.bf16.msra.mxu0 %v4846
          %4863 = vmatprep.subr.bf16.mxu0 0
          %4864 = vmatpush1.bf16.msra.mxu0 %v4845
          %4865 = vmatprep.subr.bf16.mxu0 0
          %4866 = vmatpush1.bf16.msra.mxu0 %v4844
          %4867 = vmatprep.subr.bf16.mxu0 0
          %4868 = vmatpush1.bf16.msra.mxu0 %v4843
          %4869 = vmatprep.subr.bf16.mxu0 0
          %4870 = vmatpush1.bf16.msra.mxu0 %v4842
          %4871 = vmatprep.subr.bf16.mxu0 0
          %4872 = vmatpush1.bf16.msra.mxu0 %v4841
          %4873 = vmatprep.subr.bf16.mxu0 0
          %4874 = vmatpush2.bf16.msra.mxu0 0
          %4875 = vmatprep.subr.bf16.mxu0 0
          %4876 = vmatpush2.bf16.msra.mxu0 0
          %4877 = vmatprep.subr.bf16.mxu0 0
          %4878 = vmatpush2.bf16.msra.mxu0 0
          %4879 = vmatprep.subr.bf16.mxu0 0
          %4880 = vmatpush2.bf16.msra.mxu0 0
          %4881 = vmatprep.subr.bf16.mxu0 0
          %4882 = vmatpush2.bf16.msra.mxu0 0
          %4883 = vmatprep.subr.bf16.mxu0 0
          %4884 = vmatpush2.bf16.msra.mxu0 0
          %4885 = vmatprep.subr.bf16.mxu0 0
          %4886 = vmatpush2.bf16.msra.mxu0 0
          %4887 = vmatprep.subr.bf16.mxu0 0
          %4888 = vmatpush2.bf16.msra.mxu0 0
          %4889 = vmatprep.mubr.bf16.mxu0 0
          %4890 = vmatmul.mubr.bf16.gmra.mxu0 %v4785
          %v4891 = vpop.f32.mrf.mxu0
          %v4892 = vadd.f32 %v4807, %v4891
          %v4893 = vpop.f32.mrf.mxu0
          %v4894 = vpop.f32.mrf.mxu0
          %v4895 = vpop.f32.mrf.mxu0
          %4896 = vdwg.mxu0
          %v4897 = vmax.f32 %v4892, 0.0
          %v4898 = vpack.c.bf16 %v4897, %v4897
          %v4899 = vld [vmem:[#allocation11] sm:$0xf]
          %v4900 = vld [vmem:[#allocation11 + $0x4] sm:$0xf]
          %v4901 = vld [vmem:[#allocation11 + $0x8] sm:$0xf]
          %v4902 = vld [vmem:[#allocation11 + $0xc] sm:$0xf]
          %v4903 = vld [vmem:[#allocation11 + $0x10] sm:$0xf]
          %v4904 = vld [vmem:[#allocation11 + $0x14] sm:$0xf]
          %v4905 = vld [vmem:[#allocation11 + $0x18] sm:$0xf]
          %v4906 = vld [vmem:[#allocation11 + $0x1c] sm:$0xf]
          %v4907 = vld [vmem:[#allocation11 + $0x20] sm:$0xf]
          %v4908 = vld [vmem:[#allocation11 + $0x24] sm:$0xf]
          %v4909 = vld [vmem:[#allocation11 + $0x28] sm:$0xf]
          %v4910 = vld [vmem:[#allocation11 + $0x2c] sm:$0xf]
          %v4911 = vld [vmem:[#allocation11 + $0x30] sm:$0xf]
          %v4912 = vld [vmem:[#allocation11 + $0x34] sm:$0xf]
          %v4913 = vld [vmem:[#allocation11 + $0x38] sm:$0xf]
          %v4914 = vld [vmem:[#allocation11 + $0x3c] sm:$0xf]
          %v4915 = vld [vmem:[#allocation12] sm:$0x1]
          %v4917 = vlaneseq
          %v4918 = vshrl.u32 %v4917, 7
          %v4919 = vsub.s32 0, %v4918
          %v4920 = vrot.slane %v4915, %v4919
          %v4938 = vunpack.c.l.b16 %v4899
          %v4939 = vunpack.c.l.b16 %v4900
          %v4940 = vunpack.c.l.b16 %v4901
          %v4941 = vunpack.c.l.b16 %v4902
          %v4942 = vunpack.c.l.b16 %v4903
          %v4943 = vunpack.c.l.b16 %v4904
          %v4944 = vunpack.c.l.b16 %v4905
          %v4945 = vunpack.c.l.b16 %v4906
          %v4946 = vunpack.c.l.b16 %v4907
          %v4947 = vunpack.c.l.b16 %v4908
          %v4948 = vunpack.c.l.b16 %v4909
          %v4949 = vunpack.c.l.b16 %v4910
          %v4950 = vunpack.c.l.b16 %v4911
          %v4951 = vunpack.c.l.b16 %v4912
          %v4952 = vunpack.c.l.b16 %v4913
          %v4953 = vunpack.c.l.b16 %v4914
          %v4954 = vpack.c.b16 %v4939, %v4938
          %v4955 = vpack.c.b16 %v4941, %v4940
          %v4956 = vpack.c.b16 %v4943, %v4942
          %v4957 = vpack.c.b16 %v4945, %v4944
          %v4958 = vpack.c.b16 %v4947, %v4946
          %v4959 = vpack.c.b16 %v4949, %v4948
          %v4960 = vpack.c.b16 %v4951, %v4950
          %v4961 = vpack.c.b16 %v4953, %v4952
          %4970 = vmatprep.subr.bf16.mxu0 0
          %4971 = vmatpush1.bf16.msra.mxu0 %v4961
          %4972 = vmatprep.subr.bf16.mxu0 0
          %4973 = vmatpush1.bf16.msra.mxu0 %v4960
          %4974 = vmatprep.subr.bf16.mxu0 0
          %4975 = vmatpush1.bf16.msra.mxu0 %v4959
          %4976 = vmatprep.subr.bf16.mxu0 0
          %4977 = vmatpush1.bf16.msra.mxu0 %v4958
          %4978 = vmatprep.subr.bf16.mxu0 0
          %4979 = vmatpush1.bf16.msra.mxu0 %v4957
          %4980 = vmatprep.subr.bf16.mxu0 0
          %4981 = vmatpush1.bf16.msra.mxu0 %v4956
          %4982 = vmatprep.subr.bf16.mxu0 0
          %4983 = vmatpush1.bf16.msra.mxu0 %v4955
          %4984 = vmatprep.subr.bf16.mxu0 0
          %4985 = vmatpush1.bf16.msra.mxu0 %v4954
          %4986 = vmatprep.subr.bf16.mxu0 0
          %4987 = vmatpush2.bf16.msra.mxu0 0
          %4988 = vmatprep.subr.bf16.mxu0 0
          %4989 = vmatpush2.bf16.msra.mxu0 0
          %4990 = vmatprep.subr.bf16.mxu0 0
          %4991 = vmatpush2.bf16.msra.mxu0 0
          %4992 = vmatprep.subr.bf16.mxu0 0
          %4993 = vmatpush2.bf16.msra.mxu0 0
          %4994 = vmatprep.subr.bf16.mxu0 0
          %4995 = vmatpush2.bf16.msra.mxu0 0
          %4996 = vmatprep.subr.bf16.mxu0 0
          %4997 = vmatpush2.bf16.msra.mxu0 0
          %4998 = vmatprep.subr.bf16.mxu0 0
          %4999 = vmatpush2.bf16.msra.mxu0 0
          %5000 = vmatprep.subr.bf16.mxu0 0
          %5001 = vmatpush2.bf16.msra.mxu0 0
          %5002 = vmatprep.mubr.bf16.mxu0 0
          %5003 = vmatmul.mubr.bf16.gmra.mxu0 %v4898
          %v5004 = vpop.f32.mrf.mxu0
          %v5005 = vadd.f32 %v4920, %v5004
          %v5006 = vpop.f32.mrf.mxu0
          %v5007 = vpop.f32.mrf.mxu0
          %v5008 = vpop.f32.mrf.mxu0
          %5009 = vdwg.mxu0
          %5010 = vst [vmem:[#allocation14] sm:$0x3] %v5005
        $region80: #{nn7_forward.1} parent=47 // pred_fallthru
          _
        // Predicated region
        $region81: #{nn7_forward.1} parent=47 // pred_check
          %p5011 = pneg %p214
        $region82: #{nn7_forward.1} parent=47 // pred_check_branch
          %5013 = sbr.rel (%p5011) target = $region84
        $region83: #{nn7_forward.1} parent=47 // pred_region
          %s5015 = ssub.s32 32, 32
          %5016 = vsyncadd [#allocation5], %s5015
          %s5017 = smul.addr %s29, 32
          %s5018 = scalar_lea.hbm %s7, %s5017
          %s5020 = sshll.u32 [#allocation14], 4
          %s5021 = int_to_ptr.vmem [resolvable:$true] %s5020
          %5023 = dma.vmem_to_hbm [thread:$0]  %s5021, 32, %s5018, [#allocation5]
        $region84: #{nn7_forward.1} parent=47 // pred_fallthru
          _
        // Predicated region
        $region85: #{nn7_forward.1} parent=47 // pred_check
          %p5024 = pneg %p214
        $region86: #{nn7_forward.1} parent=47 // pred_check_branch
          %5026 = sbr.rel (%p5024) target = $region88
        $region87: #{nn7_forward.1} parent=47 // pred_region
          %5027 = dma.done [#allocation5], 32
        $region88: #{nn7_forward.1} parent=47 // pred_fallthru
          _
      $region48: #{nn7_forward.1} parent=5 // pred_fallthru
        _
      %p5028 = scmp.le.s32.totalorder 2, %s20
      // Predicated region
      $region89: #{nn7_forward.1} parent=5 // pred_check
        %p5029 = pneg %p5028
      $region90: #{nn7_forward.1} parent=5 // pred_check_branch
        %5031 = sbr.rel (%p5029) target = $region92
      $region91: #{nn7_forward.1} parent=5 // pred_region
        %s5032 = ssub.s32 %s20, 2
      $region92: #{nn7_forward.1} parent=5 // pred_fallthru
        _
    $region6: #{nn7_forward.1} parent=1 // loop_footer
      %s24 = sadd.s32 1, %s20
    $region7: #{nn7_forward.1} parent=1 // loop_footer_branch
      %19 = sbr.rel target = $region3
    $region8: #{nn7_forward.1} parent=1 // loop_exit
      _
    %5033 = vsyncpa [#allocation4], 1
    %s5034 = scalar_lea.sflag [#allocation4], 1
    %5035 = vsyncpa %s5034, 1
    %5036 = vsyncpa [#allocation7], 1
    %5037 = vsyncpa [#allocation10], 1
    %5038 = vsyncpa [#allocation13], 1
    %5039 = vsyncpa [#allocation5], 1
    %s5040 = scalar_lea.sflag [#allocation5], 1
    %5041 = vsyncpa %s5040, 1

</llo_original>
